<compile_context>
chip_gen: v7x
topology: tpu7x:2x2x1
jax: 0.10.0
libtpu: 0.0.40
codegen_flags: <defaults>
</compile_context>

<pallas_src>
import functools
import math

import jax
import jax.numpy as jnp
from jax.experimental import pallas as pl
from jax.experimental.pallas import tpu as pltpu

LN_EPS = 1e-5                                  # torch nn.LayerNorm default
RMS_EPS = float(jnp.finfo(jnp.float32).eps)    # torch nn.RMSNorm(eps=None) default

_MIB = 1024 * 1024


# ----------------------------------------------------------------------------
# Capability / device probes (module level, outside any jit trace)
# ----------------------------------------------------------------------------
def _probe_single_buffer():
    """Check that BlockSpec(pipeline_mode=pl.Buffered(1)) compiles & runs."""
    try:
        def k(x_ref, o_ref):
            o_ref[...] = x_ref[...] + 1.0
        f = pl.pallas_call(
            k,
            out_shape=jax.ShapeDtypeStruct((16, 128), jnp.float32),
            grid=(2,),
            in_specs=[pl.BlockSpec((8, 128), lambda i: (0, 0),
                                   pipeline_mode=pl.Buffered(1))],
            out_specs=pl.BlockSpec((8, 128), lambda i: (i, 0)),
        )
        jax.block_until_ready(f(jnp.zeros((8, 128), jnp.float32)))
        return True
    except Exception:
        return False


def _vmem_cap_bytes():
    try:
        return int(pltpu.get_tpu_info().vmem_capacity_bytes * 7 // 8)
    except Exception:
        return 64 * _MIB


def _is_v5():
    try:
        return "v5" in jax.devices()[0].device_kind.lower()
    except Exception:
        return False


_SINGLE_BUFFER_OK = _probe_single_buffer()
_VMEM_CAP = _vmem_cap_bytes()
_IS_V5 = _is_v5()


def _vmem_limit(need_bytes):
    return int(min(max(int(need_bytes * 1.25) + 4 * _MIB, 32 * _MIB), _VMEM_CAP))


def _spec(shape, index_map, *, single_buffer=False):
    """BlockSpec; constant (revisited) blocks are single-buffered when supported."""
    if single_buffer and _SINGLE_BUFFER_OK:
        return pl.BlockSpec(shape, index_map, pipeline_mode=pl.Buffered(1))
    return pl.BlockSpec(shape, index_map)


def _pick_seq_tile(s):
    # v5e: smaller score/prob intermediates, 128-wide MXU.  v6e/v7x: 256.
    pref = (128, 256) if _IS_V5 else (256, 128)
    for t in pref:
        if s % t == 0:
            return t
    return s


def _pick_ffn_tile(ffn_size, d_model, budget=12 * _MIB):
    if 3 * d_model * ffn_size * 2 <= budget:
        return ffn_size
    for t in (4096, 2048, 1024, 512, 256, 128):
        if ffn_size % t == 0 and 3 * d_model * t * 2 <= budget:
            return t
    return 128 if ffn_size % 128 == 0 else ffn_size


def _pick_vocab_tile(vocab, d_model, seq_tile, budget=24 * _MIB):
    for t in (4096, 2048, 1024, 512, 256, 128):
        if vocab % t == 0 and (d_model * t * 2 + 3 * seq_tile * t * 4) <= budget:
            return t
    return vocab


def _rotate_half(t):
    """rotate_half(t) = concat([-t2, t1]) for t = [t1, t2] along the last axis."""
    hd = t.shape[-1]
    half = hd // 2
    if hd % 128 == 0:
        sign = jnp.where(
            jax.lax.broadcasted_iota(jnp.int32, (1, hd), 1) < half, -1.0, 1.0)
        return pltpu.roll(t, shift=half, axis=-1) * sign
    return jnp.concatenate([-t[:, half:], t[:, :half]], axis=-1)


# ----------------------------------------------------------------------------
# Kernel 1: LayerNorm + merged QKV projection + RoPE.  Grid = (B, S // ts).
# Outputs roped Q (B,S,D), pre-transposed roped K (B,D,S) and V (B,S,D), all bf16.
# ----------------------------------------------------------------------------
def _qkv_rope_kernel(x_ref, cos_ref, sin_ref, ln1w_ref, ln1b_ref, wqkv_ref,
                     q_ref, kT_ref, v_ref, *, num_heads):
    H = num_heads
    D = x_ref.shape[2]
    hd = D // H

    x = x_ref[0].astype(jnp.float32)                                 # (ts, D)
    mu = jnp.mean(x, axis=-1, keepdims=True)
    var = jnp.mean((x - mu) ** 2, axis=-1, keepdims=True)
    h = (x - mu) * jax.lax.rsqrt(var + LN_EPS) * ln1w_ref[0] + ln1b_ref[0]

    qkv = jnp.dot(h.astype(jnp.bfloat16), wqkv_ref[...],
                  preferred_element_type=jnp.float32)                # (ts, 3D) f32
    cos = cos_ref[0]                                                 # (ts, hd)
    sin = sin_ref[0]

    v_ref[0] = qkv[:, 2 * D:].astype(jnp.bfloat16)
    for hi in range(H):
        sl = slice(hi * hd, (hi + 1) * hd)
        qh = qkv[:, hi * hd:(hi + 1) * hd]
        kh = qkv[:, D + hi * hd:D + (hi + 1) * hd]
        q_ref[0, :, sl] = (qh * cos + _rotate_half(qh) * sin).astype(jnp.bfloat16)
        kr = kh * cos + _rotate_half(kh) * sin
        kT_ref[0, sl, :] = kr.T.astype(jnp.bfloat16)   # transpose once, amortized


def qkv_rope(x, cos, sin, p, num_heads):
    B, S, D = x.shape
    hd = D // num_heads
    ts = _pick_seq_tile(S)
    n_st = S // ts
    nb = 1 if _SINGLE_BUFFER_OK else 2

    need = (2 * ts * D * 2 + 4 * ts * hd * 4 + nb * 2 * D * 4
            + nb * D * 3 * D * 2 + 2 * (2 * ts * D * 2 + D * ts * 2)
            + ts * 3 * D * 4 + 3 * ts * D * 4)

    kernel = functools.partial(_qkv_rope_kernel, num_heads=num_heads)
    return pl.pallas_call(
        kernel,
        out_shape=(jax.ShapeDtypeStruct((B, S, D), jnp.bfloat16),
                   jax.ShapeDtypeStruct((B, D, S), jnp.bfloat16),
                   jax.ShapeDtypeStruct((B, S, D), jnp.bfloat16)),
        grid=(B, n_st),
        in_specs=[
            _spec((1, ts, D), lambda b, s: (b, s, 0)),
            _spec((1, ts, hd), lambda b, s: (b, s, 0)),
            _spec((1, ts, hd), lambda b, s: (b, s, 0)),
            _spec((1, D), lambda b, s: (0, 0), single_buffer=True),
            _spec((1, D), lambda b, s: (0, 0), single_buffer=True),
            _spec((D, 3 * D), lambda b, s: (0, 0), single_buffer=True),
        ],
        out_specs=[
            pl.BlockSpec((1, ts, D), lambda b, s: (b, s, 0)),
            pl.BlockSpec((1, D, ts), lambda b, s: (b, 0, s)),
            pl.BlockSpec((1, ts, D), lambda b, s: (b, s, 0)),
        ],
        compiler_params=pltpu.CompilerParams(
            dimension_semantics=("parallel", "parallel"),
            vmem_limit_bytes=_vmem_limit(need)),
    )(x, cos, sin, p["ln1w"], p["ln1b"], p["wqkv"])


# ----------------------------------------------------------------------------
# Kernel 2: causal attention (online softmax over KV chunks) + Wo + residual.
# Grid = (B, n_qt, n_kv); kv innermost/arbitrary carries the per-head accumulators.
# ----------------------------------------------------------------------------
def _attn_kernel(xq_ref, q_ref, kT_ref, v_ref, wo_ref, out_ref,
                 m_scr, l_scr, acc_scr, *, num_heads, q_tile, kv_tile):
    H = num_heads
    tq, tkv = q_tile, kv_tile
    D = q_ref.shape[2]
    hd = D // H
    qi = pl.program_id(1)
    kv = pl.program_id(2)
    n_kv = pl.num_programs(2)
    scale = 1.0 / math.sqrt(hd)

    @pl.when(kv == 0)
    def _():
        m_scr[...] = jnp.full(m_scr.shape, -jnp.inf, jnp.float32)
        l_scr[...] = jnp.zeros(l_scr.shape, jnp.float32)
        acc_scr[...] = jnp.zeros(acc_scr.shape, jnp.float32)

    @pl.when(kv <= qi)     # causality: skip fully-masked KV chunks entirely
    def _():
        q0 = qi * tq
        k0 = kv * tkv
        row = q0 + jax.lax.broadcasted_iota(jnp.int32, (tq, tkv), 0)
        col = k0 + jax.lax.broadcasted_iota(jnp.int32, (tq, tkv), 1)
        causal = row >= col
        for hi in range(H):
            sl = slice(hi * hd, (hi + 1) * hd)
            qh = q_ref[0, :, sl]                      # (tq, hd)  bf16
            kTh = kT_ref[0, sl, :]                    # (hd, tkv) bf16 (pre-transposed)
            vh = v_ref[0, :, sl]                      # (tkv, hd) bf16
            s = jnp.dot(qh, kTh, preferred_element_type=jnp.float32) * scale
            s = jnp.where(causal, s, -1e30)
            m_prev = m_scr[:, hi:hi + 1]
            m_new = jnp.maximum(m_prev, jnp.max(s, axis=-1, keepdims=True))
            alpha = jnp.exp(m_prev - m_new)
            p = jnp.exp(s - m_new)
            l_scr[:, hi:hi + 1] = (alpha * l_scr[:, hi:hi + 1]
                                   + jnp.sum(p, axis=-1, keepdims=True))
            acc_scr[:, sl] = alpha * acc_scr[:, sl] + jnp.dot(
                p.astype(jnp.bfloat16), vh, preferred_element_type=jnp.float32)
            m_scr[:, hi:hi + 1] = m_new

    @pl.when(kv == n_kv - 1)
    def _():
        for hi in range(H):
            sl = slice(hi * hd, (hi + 1) * hd)
            acc_scr[:, sl] = acc_scr[:, sl] * pl.reciprocal(
                l_scr[:, hi:hi + 1], approx=True)
        attn = jnp.dot(acc_scr[...].astype(jnp.bfloat16), wo_ref[...],
                       preferred_element_type=jnp.float32)
        out_ref[0] = (xq_ref[0].astype(jnp.float32) + attn).astype(out_ref.dtype)


def attention(x, q, kT, v, wo, num_heads):
    B, S, D = x.shape
    H = num_heads
    tq = _pick_seq_tile(S)
    tkv = tq
    n_qt = S // tq
    nb = 1 if _SINGLE_BUFFER_OK else 2

    need = (3 * 2 * tq * D * 2 + 2 * D * tkv * 2 + 2 * tkv * D * 2
            + nb * D * D * 2 + 2 * tq * D * 2
            + 2 * tq * 128 * 4 + tq * D * 4 + 4 * tq * tkv * 4)

    kernel = functools.partial(_attn_kernel, num_heads=H, q_tile=tq, kv_tile=tkv)
    return pl.pallas_call(
        kernel,
        out_shape=jax.ShapeDtypeStruct((B, S, D), jnp.bfloat16),
        grid=(B, n_qt, n_qt),
        in_specs=[
            _spec((1, tq, D), lambda b, qi, kv: (b, qi, 0)),       # residual rows
            _spec((1, tq, D), lambda b, qi, kv: (b, qi, 0)),       # roped Q rows
            # min(kv, qi): masked-out chunks collapse onto an already-fetched block,
            # so Pallas skips the (useless) DMA for them.
            _spec((1, D, tkv), lambda b, qi, kv: (b, 0, jnp.minimum(kv, qi))),
            _spec((1, tkv, D), lambda b, qi, kv: (b, jnp.minimum(kv, qi), 0)),
            _spec((D, D), lambda b, qi, kv: (0, 0), single_buffer=True),
        ],
        out_specs=pl.BlockSpec((1, tq, D), lambda b, qi, kv: (b, qi, 0)),
        scratch_shapes=[
            pltpu.VMEM((tq, H), jnp.float32),       # running max per head
            pltpu.VMEM((tq, H), jnp.float32),       # running denom per head
            pltpu.VMEM((tq, D), jnp.float32),       # output accumulator
        ],
        compiler_params=pltpu.CompilerParams(
            dimension_semantics=("parallel", "parallel", "arbitrary"),
            vmem_limit_bytes=_vmem_limit(need)),
    )(x, q, kT, v, wo)


# ----------------------------------------------------------------------------
# Kernel 3: LayerNorm + SiLU-GLU FFN, tiled over F, + residual.
# Grid = (B, n_qt, n_ft); f innermost/arbitrary carries the down-proj accumulator.
# ----------------------------------------------------------------------------
def _ffn_kernel(x_ref, ln2w_ref, ln2b_ref, wgu_ref, wd_ref, out_ref,
                h_scr, acc_scr):
    f = pl.program_id(2)

    @pl.when(f == 0)
    def _():
        x = x_ref[0].astype(jnp.float32)
        mu = jnp.mean(x, axis=-1, keepdims=True)
        var = jnp.mean((x - mu) ** 2, axis=-1, keepdims=True)
        h = (x - mu) * jax.lax.rsqrt(var + LN_EPS) * ln2w_ref[0] + ln2b_ref[0]
        h_scr[...] = h.astype(jnp.bfloat16)
        acc_scr[...] = jnp.zeros(acc_scr.shape, jnp.float32)

    h = h_scr[...]                                                   # (tq, D) bf16
    gate = jnp.dot(h, wgu_ref[0], preferred_element_type=jnp.float32)
    up = jnp.dot(h, wgu_ref[1], preferred_element_type=jnp.float32)
    act = (gate * jax.nn.sigmoid(gate) * up).astype(jnp.bfloat16)
    acc_scr[...] += jnp.dot(act, wd_ref[...], preferred_element_type=jnp.float32)

    @pl.when(f == pl.num_programs(2) - 1)
    def _():
        out_ref[0] = (x_ref[0].astype(jnp.float32) + acc_scr[...]).astype(out_ref.dtype)


def glu_ffn(x, p):
    B, S, D = x.shape
    F = p["wd"].shape[0]
    tq = _pick_seq_tile(S)
    n_qt = S // tq
    tf = _pick_ffn_tile(F, D)
    n_ft = F // tf
    nb_w = 1 if (_SINGLE_BUFFER_OK and n_ft == 1) else 2
    nb_c = 1 if _SINGLE_BUFFER_OK else 2

    need = (2 * tq * D * 2 + nb_c * 4 * D * 4 + nb_w * 3 * D * tf * 2
            + 2 * tq * D * 2 + tq * D * 2 + tq * D * 4
            + 2 * tq * tf * 4 + tq * tf * 2 + tq * D * 4)

    return pl.pallas_call(
        _ffn_kernel,
        out_shape=jax.ShapeDtypeStruct((B, S, D), jnp.bfloat16),
        grid=(B, n_qt, n_ft),
        in_specs=[
            _spec((1, tq, D), lambda b, q, f: (b, q, 0)),
            _spec((1, D), lambda b, q, f: (0, 0), single_buffer=True),
            _spec((1, D), lambda b, q, f: (0, 0), single_buffer=True),
            _spec((2, D, tf), lambda b, q, f: (0, 0, f), single_buffer=(n_ft == 1)),
            _spec((tf, D), lambda b, q, f: (f, 0), single_buffer=(n_ft == 1)),
        ],
        out_specs=pl.BlockSpec((1, tq, D), lambda b, q, f: (b, q, 0)),
        scratch_shapes=[
            pltpu.VMEM((tq, D), jnp.bfloat16),      # LN'd input, reused over f
            pltpu.VMEM((tq, D), jnp.float32),       # down-proj accumulator
        ],
        compiler_params=pltpu.CompilerParams(
            dimension_semantics=("parallel", "parallel", "arbitrary"),
            vmem_limit_bytes=_vmem_limit(need)),
    )(x, p["ln2w"], p["ln2b"], p["wgu"], p["wd"])


# ----------------------------------------------------------------------------
# Final kernel: RMSNorm (hoisted out of the vocab loop) + tied-embedding logits.
# Grid = (B, n_st, n_vt).
# ----------------------------------------------------------------------------
def _logits_kernel(x_ref, rmsw_ref, embt_ref, out_ref, h_scr):
    v = pl.program_id(2)

    @pl.when(v == 0)
    def _():
        x = x_ref[0].astype(jnp.float32)
        ms = jnp.mean(x * x, axis=-1, keepdims=True)
        h_scr[...] = (x * jax.lax.rsqrt(ms + RMS_EPS) * rmsw_ref[0]).astype(jnp.bfloat16)

    out_ref[0] = jnp.dot(h_scr[...], embt_ref[...],
                         preferred_element_type=jnp.float32).astype(out_ref.dtype)


def final_norm_logits(x, rms_w, emb_t):
    B, S, D = x.shape
    V = emb_t.shape[1]
    ts = _pick_seq_tile(S)
    n_st = S // ts
    tv = _pick_vocab_tile(V, D, ts)
    n_vt = V // tv
    nb_w = 1 if (_SINGLE_BUFFER_OK and n_vt == 1) else 2

    need = (2 * ts * D * 2 + 2 * D * 4 + nb_w * D * tv * 2
            + 2 * ts * tv * 4 + ts * D * 2 + ts * tv * 4 + ts * D * 4)

    return pl.pallas_call(
        _logits_kernel,
        out_shape=jax.ShapeDtypeStruct((B, S, V), jnp.float32),
        grid=(B, n_st, n_vt),
        in_specs=[
            _spec((1, ts, D), lambda b, s, v: (b, s, 0)),
            _spec((1, D), lambda b, s, v: (0, 0), single_buffer=True),
            _spec((D, tv), lambda b, s, v: (0, v), single_buffer=(n_vt == 1)),
        ],
        out_specs=pl.BlockSpec((1, ts, tv), lambda b, s, v: (b, s, v)),
        scratch_shapes=[pltpu.VMEM((ts, D), jnp.bfloat16)],
        compiler_params=pltpu.CompilerParams(
            dimension_semantics=("parallel", "parallel", "arbitrary"),
            vmem_limit_bytes=_vmem_limit(need)),
    )(x, rms_w, emb_t)


# ----------------------------------------------------------------------------
# Glue: RoPE tables, layer composition, parameter init, full forward
# ----------------------------------------------------------------------------
def rope_tables(positions, head_dim, theta=10000.0):
    half = head_dim // 2
    inv_freq = 1.0 / (theta ** (jnp.arange(half, dtype=jnp.float32) / half))
    ang = positions[..., None].astype(jnp.float32) * inv_freq       # (B, S, half)
    ang = jnp.concatenate([ang, ang], axis=-1)                      # (B, S, head_dim)
    return jnp.cos(ang), jnp.sin(ang)


def transformer_layer(x, cos, sin, p, num_heads):
    q, kT, v = qkv_rope(x, cos, sin, p, num_heads)
    x = attention(x, q, kT, v, p["wo"], num_heads)
    x = glu_ffn(x, p)
    return x


def init_params(key, vocab_size, num_layers, num_heads, d_model, ffn_size):
    keys = jax.random.split(key, 1 + num_layers)
    emb = 0.02 * jax.random.normal(keys[0], (vocab_size, d_model), jnp.float32)
    params = {
        "embedding": emb,                                # f32, encode lookup
        "emb_t": emb.T.astype(jnp.bfloat16),             # pre-transposed decode weight
        "rms_w": jnp.ones((1, d_model), jnp.float32),
        "layers": [],
    }
    s_attn = 1.0 / math.sqrt(d_model)
    s_down = 1.0 / math.sqrt(ffn_size)
    for i in range(num_layers):
        ks = jax.random.split(keys[1 + i], 7)
        wq = s_attn * jax.random.normal(ks[0], (d_model, d_model), jnp.float32)
        wk = s_attn * jax.random.normal(ks[1], (d_model, d_model), jnp.float32)
        wv = s_attn * jax.random.normal(ks[2], (d_model, d_model), jnp.float32)
        wo = s_attn * jax.random.normal(ks[3], (d_model, d_model), jnp.float32)
        wg = s_attn * jax.random.normal(ks[4], (d_model, ffn_size), jnp.float32)
        wu = s_attn * jax.random.normal(ks[5], (d_model, ffn_size), jnp.float32)
        wd = s_down * jax.random.normal(ks[6], (ffn_size, d_model), jnp.float32)
        params["layers"].append({
            "ln1w": jnp.ones((1, d_model), jnp.float32),
            "ln1b": jnp.zeros((1, d_model), jnp.float32),
            "wqkv": jnp.concatenate([wq, wk, wv], axis=1).astype(jnp.bfloat16),
            "wo": wo.astype(jnp.bfloat16),
            "ln2w": jnp.ones((1, d_model), jnp.float32),
            "ln2b": jnp.zeros((1, d_model), jnp.float32),
            "wgu": jnp.stack([wg, wu], axis=0).astype(jnp.bfloat16),   # (2, D, F)
            "wd": wd.astype(jnp.bfloat16),
        })
    return params


@functools.partial(jax.jit, static_argnames=("num_heads",))
def transformer_forward(params, inputs, positions, *, num_heads):
    emb = params["embedding"]                                        # (V, D) f32
    D = emb.shape[1]
    # Embedder encode (decode=False): lookup scaled by sqrt(d_model); residual bf16.
    x = (emb[inputs] * jnp.sqrt(jnp.float32(D))).astype(jnp.bfloat16)
    cos, sin = rope_tables(positions, D // num_heads)
    for lp in params["layers"]:
        x = transformer_layer(x, cos, sin, lp, num_heads)
    # output_norm (RMSNorm) + Embedder decode (x @ E^T, tied weights)
    return final_norm_logits(x, params["rms_w"], params["emb_t"])


if __name__ == "__main__":
    VOCAB, NUM_LAYERS, NUM_HEADS, D_MODEL, FFN = 64, 2, 4, 32, 64
    B, S = 2, 8

    key = jax.random.PRNGKey(0)
    pkey, ikey = jax.random.split(key)
    params = init_params(pkey, VOCAB, NUM_LAYERS, NUM_HEADS, D_MODEL, FFN)

    inputs = jax.random.randint(ikey, (B, S), 0, VOCAB, dtype=jnp.int32)
    positions = jnp.broadcast_to(jnp.arange(S, dtype=jnp.int32), (B, S))

    logits = transformer_forward(params, inputs, positions, num_heads=NUM_HEADS)
    jax.block_until_ready(logits)
    assert logits.shape == (B, S, VOCAB) and logits.dtype == jnp.float32
    print("KERNEL_OK")
</pallas_src>

<mosaic_0001>
module attributes {stable_mosaic.version = 11 : i64} {
  func.func @k(%arg0: i32, %arg1: memref<8x128xf32, #tpu.memory_space<vmem>>, %arg2: memref<8x128xf32, #tpu.memory_space<vmem>>) attributes {dimension_semantics = [#tpu.dimension_semantics<arbitrary>], iteration_bounds = array<i64: 2>, scalar_prefetch = 0 : i64, scratch_operands = 0 : i64, tpu.core_type = #tpu.core_type<tc>, window_params = [{pipeline_mode = #tpu.pipeline_mode<synchronous>, transform_indices = @transform_0, window_bounds = array<i64: 8, 128>}, {transform_indices = @transform_1, window_bounds = array<i64: 8, 128>}]} {
    %c0 = arith.constant 0 : index
    %c0_0 = arith.constant 0 : index
    %0 = vector.load %arg1[%c0, %c0_0] : memref<8x128xf32, #tpu.memory_space<vmem>>, vector<8x128xf32>
    %cst = arith.constant 1.000000e+00 : f32
    %1 = vector.broadcast %cst : f32 to vector<8x128xf32>
    %2 = arith.addf %0, %1 : vector<8x128xf32>
    %c0_1 = arith.constant 0 : index
    %c0_2 = arith.constant 0 : index
    %3 = vector.load %arg2[%c0_1, %c0_2] : memref<8x128xf32, #tpu.memory_space<vmem>>, vector<8x128xf32>
    tpu.vector_store %arg2[%c0_1, %c0_2], %2 {strides = array<i32>} : memref<8x128xf32, #tpu.memory_space<vmem>>, vector<8x128xf32>,
    return
  }
  func.func @transform_0(%arg0: i32) -> (i32, i32) {
    %c0_i32 = arith.constant 0 : i32
    %c0_i32_0 = arith.constant 0 : i32
    %c0_i32_1 = arith.constant 0 : i32
    return %c0_i32, %c0_i32_0 : i32, i32
  }
  func.func @transform_1(%arg0: i32) -> (i32, i32) {
    %c0_i32 = arith.constant 0 : i32
    %c0_i32_0 = arith.constant 0 : i32
    return %arg0, %c0_i32 : i32, i32
  }
}

module attributes {stable_mosaic.version = 11 : i64} {
  func.func @_attn_kernel(%arg0: i32, %arg1: i32, %arg2: i32, %arg3: memref<1x8x32xbf16, #tpu.memory_space<vmem>>, %arg4: memref<1x8x32xbf16, #tpu.memory_space<vmem>>, %arg5: memref<1x32x8xbf16, #tpu.memory_space<vmem>>, %arg6: memref<1x8x32xbf16, #tpu.memory_space<vmem>>, %arg7: memref<32x32xbf16, #tpu.memory_space<vmem>>, %arg8: memref<1x8x32xbf16, #tpu.memory_space<vmem>>, %arg9: memref<8x4xf32, #tpu.memory_space<vmem>>, %arg10: memref<8x4xf32, #tpu.memory_space<vmem>>, %arg11: memref<8x32xf32, #tpu.memory_space<vmem>>) attributes {dimension_semantics = [#tpu.dimension_semantics<parallel>, #tpu.dimension_semantics<parallel>, #tpu.dimension_semantics<arbitrary>], iteration_bounds = array<i64: 2, 1, 1>, scalar_prefetch = 0 : i64, scratch_operands = 3 : i64, tpu.core_type = #tpu.core_type<tc>, window_params = [{transform_indices = @transform_0, window_bounds = array<i64: 1, 8, 32>}, {transform_indices = @transform_1, window_bounds = array<i64: 1, 8, 32>}, {transform_indices = @transform_2, window_bounds = array<i64: 1, 32, 8>}, {transform_indices = @transform_3, window_bounds = array<i64: 1, 8, 32>}, {pipeline_mode = #tpu.pipeline_mode<synchronous>, transform_indices = @transform_4, window_bounds = array<i64: 32, 32>}, {transform_indices = @transform_5, window_bounds = array<i64: 1, 8, 32>}]} {
    %c0_i32 = arith.constant 0 : i32
    %0 = arith.cmpi eq, %arg2, %c0_i32 : i32
    %1 = arith.extui %0 : i1 to i32
    %c0_i32_0 = arith.constant 0 : i32
    %2 = arith.cmpi ne, %1, %c0_i32_0 : i32
    scf.if %2 {
      %cst = arith.constant 0xFF800000 : f32
      %9 = vector.broadcast %cst : f32 to vector<8x4xf32>
      %c0 = arith.constant 0 : index
      %c0_4 = arith.constant 0 : index
      %10 = vector.load %arg9[%c0, %c0_4] : memref<8x4xf32, #tpu.memory_space<vmem>>, vector<8x4xf32>
      tpu.vector_store %arg9[%c0, %c0_4], %9 {strides = array<i32>} : memref<8x4xf32, #tpu.memory_space<vmem>>, vector<8x4xf32>,
      %cst_5 = arith.constant 0.000000e+00 : f32
      %11 = vector.broadcast %cst_5 : f32 to vector<8x4xf32>
      %c0_6 = arith.constant 0 : index
      %c0_7 = arith.constant 0 : index
      %12 = vector.load %arg10[%c0_6, %c0_7] : memref<8x4xf32, #tpu.memory_space<vmem>>, vector<8x4xf32>
      tpu.vector_store %arg10[%c0_6, %c0_7], %11 {strides = array<i32>} : memref<8x4xf32, #tpu.memory_space<vmem>>, vector<8x4xf32>,
      %cst_8 = arith.constant 0.000000e+00 : f32
      %13 = vector.broadcast %cst_8 : f32 to vector<8x32xf32>
      %c0_9 = arith.constant 0 : index
      %c0_10 = arith.constant 0 : index
      %14 = vector.load %arg11[%c0_9, %c0_10] : memref<8x32xf32, #tpu.memory_space<vmem>>, vector<8x32xf32>
      tpu.vector_store %arg11[%c0_9, %c0_10], %13 {strides = array<i32>} : memref<8x32xf32, #tpu.memory_space<vmem>>, vector<8x32xf32>,
    } else {
    }
    %3 = arith.cmpi sle, %arg2, %arg1 : i32
    %4 = arith.extui %3 : i1 to i32
    %c0_i32_1 = arith.constant 0 : i32
    %5 = arith.cmpi ne, %4, %c0_i32_1 : i32
    scf.if %5 {
      %c8_i32 = arith.constant 8 : i32
      %9 = arith.muli %arg1, %c8_i32 : i32
      %c8_i32_4 = arith.constant 8 : i32
      %10 = arith.muli %arg2, %c8_i32_4 : i32
      %11 = tpu.iota {dimensions = array<i32: 0>} : vector<8x8xi32>
      %12 = vector.broadcast %9 : i32 to vector<8x8xi32>
      %13 = arith.addi %12, %11 : vector<8x8xi32>
      %14 = tpu.iota {dimensions = array<i32: 1>} : vector<8x8xi32>
      %15 = vector.broadcast %10 : i32 to vector<8x8xi32>
      %16 = arith.addi %15, %14 : vector<8x8xi32>
      %17 = arith.cmpi sge, %13, %16 : vector<8x8xi32>
      %c0 = arith.constant 0 : index
      %c0_5 = arith.constant 0 : index
      %c0_6 = arith.constant 0 : index
      %18 = vector.load %arg4[%c0, %c0_5, %c0_6] : memref<1x8x32xbf16, #tpu.memory_space<vmem>>, vector<1x8x8xbf16>
      %19 = vector.shape_cast %18 : vector<1x8x8xbf16> to vector<8x8xbf16>
      %c0_7 = arith.constant 0 : index
      %c0_8 = arith.constant 0 : index
      %c0_9 = arith.constant 0 : index
      %20 = vector.load %arg5[%c0_7, %c0_8, %c0_9] : memref<1x32x8xbf16, #tpu.memory_space<vmem>>, vector<1x8x8xbf16>
      %21 = vector.shape_cast %20 : vector<1x8x8xbf16> to vector<8x8xbf16>
      %c0_10 = arith.constant 0 : index
      %c0_11 = arith.constant 0 : index
      %c0_12 = arith.constant 0 : index
      %22 = vector.load %arg6[%c0_10, %c0_11, %c0_12] : memref<1x8x32xbf16, #tpu.memory_space<vmem>>, vector<1x8x8xbf16>
      %23 = vector.shape_cast %22 : vector<1x8x8xbf16> to vector<8x8xbf16>
      %cst = arith.constant dense<0.000000e+00> : vector<8x8xf32>
      %24 = tpu.matmul %19, %21, %cst {dimension_numbers = #tpu.dot_dimension_numbers<[1], [0], [0], [1], [0, 0, 1, 1], [], []>} : vector<8x8xbf16>, vector<8x8xbf16>, vector<8x8xf32> -> vector<8x8xf32>
      %cst_13 = arith.constant 0.353553385 : f32
      %25 = vector.broadcast %cst_13 : f32 to vector<8x8xf32>
      %26 = arith.mulf %24, %25 : vector<8x8xf32>
      %cst_14 = arith.constant -1.000000e+30 : f32
      %27 = vector.broadcast %cst_14 : f32 to vector<8x8xf32>
      %28 = arith.select %17, %26, %27 : vector<8x8xi1>, vector<8x8xf32>
      %c0_15 = arith.constant 0 : index
      %c0_16 = arith.constant 0 : index
      %29 = vector.load %arg9[%c0_15, %c0_16] : memref<8x4xf32, #tpu.memory_space<vmem>>, vector<8x1xf32>
      %cst_17 = arith.constant dense<0xFF800000> : vector<8xf32>
      %30 = vector.multi_reduction <maximumf>, %28, %cst_17 [1] : vector<8x8xf32> to vector<8xf32>
      %31 = vector.shape_cast %30 : vector<8xf32> to vector<8x1xf32>
      %32 = arith.maximumf %29, %31 : vector<8x1xf32>
      %33 = arith.subf %29, %32 : vector<8x1xf32>
      %34 = math.exp %33 : vector<8x1xf32>
      %35 = vector.broadcast %32 : vector<8x1xf32> to vector<8x8xf32>
      %36 = arith.subf %28, %35 : vector<8x8xf32>
      %37 = math.exp %36 : vector<8x8xf32>
      %c0_18 = arith.constant 0 : index
      %c0_19 = arith.constant 0 : index
      %38 = vector.load %arg10[%c0_18, %c0_19] : memref<8x4xf32, #tpu.memory_space<vmem>>, vector<8x1xf32>
      %39 = arith.mulf %34, %38 : vector<8x1xf32>
      %cst_20 = arith.constant dense<0.000000e+00> : vector<8xf32>
      %40 = vector.multi_reduction <add>, %37, %cst_20 [1] : vector<8x8xf32> to vector<8xf32>
      %41 = vector.shape_cast %40 : vector<8xf32> to vector<8x1xf32>
      %42 = arith.addf %39, %41 : vector<8x1xf32>
      %c0_21 = arith.constant 0 : index
      %c0_22 = arith.constant 0 : index
      %43 = vector.load %arg10[%c0_21, %c0_22] : memref<8x4xf32, #tpu.memory_space<vmem>>, vector<8x1xf32>
      tpu.vector_store %arg10[%c0_21, %c0_22], %42 {strides = array<i32>} : memref<8x4xf32, #tpu.memory_space<vmem>>, vector<8x1xf32>,
      %c0_23 = arith.constant 0 : index
      %c0_24 = arith.constant 0 : index
      %44 = vector.load %arg11[%c0_23, %c0_24] : memref<8x32xf32, #tpu.memory_space<vmem>>, vector<8x8xf32>
      %45 = vector.broadcast %34 : vector<8x1xf32> to vector<8x8xf32>
      %46 = arith.mulf %45, %44 : vector<8x8xf32>
      %47 = arith.truncf %37 : vector<8x8xf32> to vector<8x8xbf16>
      %cst_25 = arith.constant dense<0.000000e+00> : vector<8x8xf32>
      %48 = tpu.matmul %47, %23, %cst_25 {dimension_numbers = #tpu.dot_dimension_numbers<[1], [0], [0], [1], [0, 0, 1, 1], [], []>} : vector<8x8xbf16>, vector<8x8xbf16>, vector<8x8xf32> -> vector<8x8xf32>
      %49 = arith.addf %46, %48 : vector<8x8xf32>
      %c0_26 = arith.constant 0 : index
      %c0_27 = arith.constant 0 : index
      %50 = vector.load %arg11[%c0_26, %c0_27] : memref<8x32xf32, #tpu.memory_space<vmem>>, vector<8x8xf32>
      tpu.vector_store %arg11[%c0_26, %c0_27], %49 {strides = array<i32>} : memref<8x32xf32, #tpu.memory_space<vmem>>, vector<8x8xf32>,
      %c0_28 = arith.constant 0 : index
      %c0_29 = arith.constant 0 : index
      %51 = vector.load %arg9[%c0_28, %c0_29] : memref<8x4xf32, #tpu.memory_space<vmem>>, vector<8x1xf32>
      tpu.vector_store %arg9[%c0_28, %c0_29], %32 {strides = array<i32>} : memref<8x4xf32, #tpu.memory_space<vmem>>, vector<8x1xf32>,
      %c0_30 = arith.constant 0 : index
      %c0_31 = arith.constant 0 : index
      %c8 = arith.constant 8 : index
      %52 = vector.load %arg4[%c0_30, %c0_31, %c8] : memref<1x8x32xbf16, #tpu.memory_space<vmem>>, vector<1x8x8xbf16>
      %53 = vector.shape_cast %52 : vector<1x8x8xbf16> to vector<8x8xbf16>
      %c0_32 = arith.constant 0 : index
      %c8_33 = arith.constant 8 : index
      %c0_34 = arith.constant 0 : index
      %54 = vector.load %arg5[%c0_32, %c8_33, %c0_34] : memref<1x32x8xbf16, #tpu.memory_space<vmem>>, vector<1x8x8xbf16>
      %55 = vector.shape_cast %54 : vector<1x8x8xbf16> to vector<8x8xbf16>
      %c0_35 = arith.constant 0 : index
      %c0_36 = arith.constant 0 : index
      %c8_37 = arith.constant 8 : index
      %56 = vector.load %arg6[%c0_35, %c0_36, %c8_37] : memref<1x8x32xbf16, #tpu.memory_space<vmem>>, vector<1x8x8xbf16>
      %57 = vector.shape_cast %56 : vector<1x8x8xbf16> to vector<8x8xbf16>
      %cst_38 = arith.constant dense<0.000000e+00> : vector<8x8xf32>
      %58 = tpu.matmul %53, %55, %cst_38 {dimension_numbers = #tpu.dot_dimension_numbers<[1], [0], [0], [1], [0, 0, 1, 1], [], []>} : vector<8x8xbf16>, vector<8x8xbf16>, vector<8x8xf32> -> vector<8x8xf32>
      %cst_39 = arith.constant 0.353553385 : f32
      %59 = vector.broadcast %cst_39 : f32 to vector<8x8xf32>
      %60 = arith.mulf %58, %59 : vector<8x8xf32>
      %cst_40 = arith.constant -1.000000e+30 : f32
      %61 = vector.broadcast %cst_40 : f32 to vector<8x8xf32>
      %62 = arith.select %17, %60, %61 : vector<8x8xi1>, vector<8x8xf32>
      %c0_41 = arith.constant 0 : index
      %c1 = arith.constant 1 : index
      %63 = vector.load %arg9[%c0_41, %c1] : memref<8x4xf32, #tpu.memory_space<vmem>>, vector<8x1xf32>
      %cst_42 = arith.constant dense<0xFF800000> : vector<8xf32>
      %64 = vector.multi_reduction <maximumf>, %62, %cst_42 [1] : vector<8x8xf32> to vector<8xf32>
      %65 = vector.shape_cast %64 : vector<8xf32> to vector<8x1xf32>
      %66 = arith.maximumf %63, %65 : vector<8x1xf32>
      %67 = arith.subf %63, %66 : vector<8x1xf32>
      %68 = math.exp %67 : vector<8x1xf32>
      %69 = vector.broadcast %66 : vector<8x1xf32> to vector<8x8xf32>
      %70 = arith.subf %62, %69 : vector<8x8xf32>
      %71 = math.exp %70 : vector<8x8xf32>
      %c0_43 = arith.constant 0 : index
      %c1_44 = arith.constant 1 : index
      %72 = vector.load %arg10[%c0_43, %c1_44] : memref<8x4xf32, #tpu.memory_space<vmem>>, vector<8x1xf32>
      %73 = arith.mulf %68, %72 : vector<8x1xf32>
      %cst_45 = arith.constant dense<0.000000e+00> : vector<8xf32>
      %74 = vector.multi_reduction <add>, %71, %cst_45 [1] : vector<8x8xf32> to vector<8xf32>
      %75 = vector.shape_cast %74 : vector<8xf32> to vector<8x1xf32>
      %76 = arith.addf %73, %75 : vector<8x1xf32>
      %c0_46 = arith.constant 0 : index
      %c1_47 = arith.constant 1 : index
      %77 = vector.load %arg10[%c0_46, %c1_47] : memref<8x4xf32, #tpu.memory_space<vmem>>, vector<8x1xf32>
      tpu.vector_store %arg10[%c0_46, %c1_47], %76 {strides = array<i32>} : memref<8x4xf32, #tpu.memory_space<vmem>>, vector<8x1xf32>,
      %c0_48 = arith.constant 0 : index
      %c8_49 = arith.constant 8 : index
      %78 = vector.load %arg11[%c0_48, %c8_49] : memref<8x32xf32, #tpu.memory_space<vmem>>, vector<8x8xf32>
      %79 = vector.broadcast %68 : vector<8x1xf32> to vector<8x8xf32>
      %80 = arith.mulf %79, %78 : vector<8x8xf32>
      %81 = arith.truncf %71 : vector<8x8xf32> to vector<8x8xbf16>
      %cst_50 = arith.constant dense<0.000000e+00> : vector<8x8xf32>
      %82 = tpu.matmul %81, %57, %cst_50 {dimension_numbers = #tpu.dot_dimension_numbers<[1], [0], [0], [1], [0, 0, 1, 1], [], []>} : vector<8x8xbf16>, vector<8x8xbf16>, vector<8x8xf32> -> vector<8x8xf32>
      %83 = arith.addf %80, %82 : vector<8x8xf32>
      %c0_51 = arith.constant 0 : index
      %c8_52 = arith.constant 8 : index
      %84 = vector.load %arg11[%c0_51, %c8_52] : memref<8x32xf32, #tpu.memory_space<vmem>>, vector<8x8xf32>
      tpu.vector_store %arg11[%c0_51, %c8_52], %83 {strides = array<i32>} : memref<8x32xf32, #tpu.memory_space<vmem>>, vector<8x8xf32>,
      %c0_53 = arith.constant 0 : index
      %c1_54 = arith.constant 1 : index
      %85 = vector.load %arg9[%c0_53, %c1_54] : memref<8x4xf32, #tpu.memory_space<vmem>>, vector<8x1xf32>
      tpu.vector_store %arg9[%c0_53, %c1_54], %66 {strides = array<i32>} : memref<8x4xf32, #tpu.memory_space<vmem>>, vector<8x1xf32>,
      %c0_55 = arith.constant 0 : index
      %c0_56 = arith.constant 0 : index
      %c16 = arith.constant 16 : index
      %86 = vector.load %arg4[%c0_55, %c0_56, %c16] : memref<1x8x32xbf16, #tpu.memory_space<vmem>>, vector<1x8x8xbf16>
      %87 = vector.shape_cast %86 : vector<1x8x8xbf16> to vector<8x8xbf16>
      %c0_57 = arith.constant 0 : index
      %c16_58 = arith.constant 16 : index
      %c0_59 = arith.constant 0 : index
      %88 = vector.load %arg5[%c0_57, %c16_58, %c0_59] : memref<1x32x8xbf16, #tpu.memory_space<vmem>>, vector<1x8x8xbf16>
      %89 = vector.shape_cast %88 : vector<1x8x8xbf16> to vector<8x8xbf16>
      %c0_60 = arith.constant 0 : index
      %c0_61 = arith.constant 0 : index
      %c16_62 = arith.constant 16 : index
      %90 = vector.load %arg6[%c0_60, %c0_61, %c16_62] : memref<1x8x32xbf16, #tpu.memory_space<vmem>>, vector<1x8x8xbf16>
      %91 = vector.shape_cast %90 : vector<1x8x8xbf16> to vector<8x8xbf16>
      %cst_63 = arith.constant dense<0.000000e+00> : vector<8x8xf32>
      %92 = tpu.matmul %87, %89, %cst_63 {dimension_numbers = #tpu.dot_dimension_numbers<[1], [0], [0], [1], [0, 0, 1, 1], [], []>} : vector<8x8xbf16>, vector<8x8xbf16>, vector<8x8xf32> -> vector<8x8xf32>
      %cst_64 = arith.constant 0.353553385 : f32
      %93 = vector.broadcast %cst_64 : f32 to vector<8x8xf32>
      %94 = arith.mulf %92, %93 : vector<8x8xf32>
      %cst_65 = arith.constant -1.000000e+30 : f32
      %95 = vector.broadcast %cst_65 : f32 to vector<8x8xf32>
      %96 = arith.select %17, %94, %95 : vector<8x8xi1>, vector<8x8xf32>
      %c0_66 = arith.constant 0 : index
      %c2 = arith.constant 2 : index
      %97 = vector.load %arg9[%c0_66, %c2] : memref<8x4xf32, #tpu.memory_space<vmem>>, vector<8x1xf32>
      %cst_67 = arith.constant dense<0xFF800000> : vector<8xf32>
      %98 = vector.multi_reduction <maximumf>, %96, %cst_67 [1] : vector<8x8xf32> to vector<8xf32>
      %99 = vector.shape_cast %98 : vector<8xf32> to vector<8x1xf32>
      %100 = arith.maximumf %97, %99 : vector<8x1xf32>
      %101 = arith.subf %97, %100 : vector<8x1xf32>
      %102 = math.exp %101 : vector<8x1xf32>
      %103 = vector.broadcast %100 : vector<8x1xf32> to vector<8x8xf32>
      %104 = arith.subf %96, %103 : vector<8x8xf32>
      %105 = math.exp %104 : vector<8x8xf32>
      %c0_68 = arith.constant 0 : index
      %c2_69 = arith.constant 2 : index
      %106 = vector.load %arg10[%c0_68, %c2_69] : memref<8x4xf32, #tpu.memory_space<vmem>>, vector<8x1xf32>
      %107 = arith.mulf %102, %106 : vector<8x1xf32>
      %cst_70 = arith.constant dense<0.000000e+00> : vector<8xf32>
      %108 = vector.multi_reduction <add>, %105, %cst_70 [1] : vector<8x8xf32> to vector<8xf32>
      %109 = vector.shape_cast %108 : vector<8xf32> to vector<8x1xf32>
      %110 = arith.addf %107, %109 : vector<8x1xf32>
      %c0_71 = arith.constant 0 : index
      %c2_72 = arith.constant 2 : index
      %111 = vector.load %arg10[%c0_71, %c2_72] : memref<8x4xf32, #tpu.memory_space<vmem>>, vector<8x1xf32>
      tpu.vector_store %arg10[%c0_71, %c2_72], %110 {strides = array<i32>} : memref<8x4xf32, #tpu.memory_space<vmem>>, vector<8x1xf32>,
      %c0_73 = arith.constant 0 : index
      %c16_74 = arith.constant 16 : index
      %112 = vector.load %arg11[%c0_73, %c16_74] : memref<8x32xf32, #tpu.memory_space<vmem>>, vector<8x8xf32>
      %113 = vector.broadcast %102 : vector<8x1xf32> to vector<8x8xf32>
      %114 = arith.mulf %113, %112 : vector<8x8xf32>
      %115 = arith.truncf %105 : vector<8x8xf32> to vector<8x8xbf16>
      %cst_75 = arith.constant dense<0.000000e+00> : vector<8x8xf32>
      %116 = tpu.matmul %115, %91, %cst_75 {dimension_numbers = #tpu.dot_dimension_numbers<[1], [0], [0], [1], [0, 0, 1, 1], [], []>} : vector<8x8xbf16>, vector<8x8xbf16>, vector<8x8xf32> -> vector<8x8xf32>
      %117 = arith.addf %114, %116 : vector<8x8xf32>
      %c0_76 = arith.constant 0 : index
      %c16_77 = arith.constant 16 : index
      %118 = vector.load %arg11[%c0_76, %c16_77] : memref<8x32xf32, #tpu.memory_space<vmem>>, vector<8x8xf32>
      tpu.vector_store %arg11[%c0_76, %c16_77], %117 {strides = array<i32>} : memref<8x32xf32, #tpu.memory_space<vmem>>, vector<8x8xf32>,
      %c0_78 = arith.constant 0 : index
      %c2_79 = arith.constant 2 : index
      %119 = vector.load %arg9[%c0_78, %c2_79] : memref<8x4xf32, #tpu.memory_space<vmem>>, vector<8x1xf32>
      tpu.vector_store %arg9[%c0_78, %c2_79], %100 {strides = array<i32>} : memref<8x4xf32, #tpu.memory_space<vmem>>, vector<8x1xf32>,
      %c0_80 = arith.constant 0 : index
      %c0_81 = arith.constant 0 : index
      %c24 = arith.constant 24 : index
      %120 = vector.load %arg4[%c0_80, %c0_81, %c24] : memref<1x8x32xbf16, #tpu.memory_space<vmem>>, vector<1x8x8xbf16>
      %121 = vector.shape_cast %120 : vector<1x8x8xbf16> to vector<8x8xbf16>
      %c0_82 = arith.constant 0 : index
      %c24_83 = arith.constant 24 : index
      %c0_84 = arith.constant 0 : index
      %122 = vector.load %arg5[%c0_82, %c24_83, %c0_84] : memref<1x32x8xbf16, #tpu.memory_space<vmem>>, vector<1x8x8xbf16>
      %123 = vector.shape_cast %122 : vector<1x8x8xbf16> to vector<8x8xbf16>
      %c0_85 = arith.constant 0 : index
      %c0_86 = arith.constant 0 : index
      %c24_87 = arith.constant 24 : index
      %124 = vector.load %arg6[%c0_85, %c0_86, %c24_87] : memref<1x8x32xbf16, #tpu.memory_space<vmem>>, vector<1x8x8xbf16>
      %125 = vector.shape_cast %124 : vector<1x8x8xbf16> to vector<8x8xbf16>
      %cst_88 = arith.constant dense<0.000000e+00> : vector<8x8xf32>
      %126 = tpu.matmul %121, %123, %cst_88 {dimension_numbers = #tpu.dot_dimension_numbers<[1], [0], [0], [1], [0, 0, 1, 1], [], []>} : vector<8x8xbf16>, vector<8x8xbf16>, vector<8x8xf32> -> vector<8x8xf32>
      %cst_89 = arith.constant 0.353553385 : f32
      %127 = vector.broadcast %cst_89 : f32 to vector<8x8xf32>
      %128 = arith.mulf %126, %127 : vector<8x8xf32>
      %cst_90 = arith.constant -1.000000e+30 : f32
      %129 = vector.broadcast %cst_90 : f32 to vector<8x8xf32>
      %130 = arith.select %17, %128, %129 : vector<8x8xi1>, vector<8x8xf32>
      %c0_91 = arith.constant 0 : index
      %c3 = arith.constant 3 : index
      %131 = vector.load %arg9[%c0_91, %c3] : memref<8x4xf32, #tpu.memory_space<vmem>>, vector<8x1xf32>
      %cst_92 = arith.constant dense<0xFF800000> : vector<8xf32>
      %132 = vector.multi_reduction <maximumf>, %130, %cst_92 [1] : vector<8x8xf32> to vector<8xf32>
      %133 = vector.shape_cast %132 : vector<8xf32> to vector<8x1xf32>
      %134 = arith.maximumf %131, %133 : vector<8x1xf32>
      %135 = arith.subf %131, %134 : vector<8x1xf32>
      %136 = math.exp %135 : vector<8x1xf32>
      %137 = vector.broadcast %134 : vector<8x1xf32> to vector<8x8xf32>
      %138 = arith.subf %130, %137 : vector<8x8xf32>
      %139 = math.exp %138 : vector<8x8xf32>
      %c0_93 = arith.constant 0 : index
      %c3_94 = arith.constant 3 : index
      %140 = vector.load %arg10[%c0_93, %c3_94] : memref<8x4xf32, #tpu.memory_space<vmem>>, vector<8x1xf32>
      %141 = arith.mulf %136, %140 : vector<8x1xf32>
      %cst_95 = arith.constant dense<0.000000e+00> : vector<8xf32>
      %142 = vector.multi_reduction <add>, %139, %cst_95 [1] : vector<8x8xf32> to vector<8xf32>
      %143 = vector.shape_cast %142 : vector<8xf32> to vector<8x1xf32>
      %144 = arith.addf %141, %143 : vector<8x1xf32>
      %c0_96 = arith.constant 0 : index
      %c3_97 = arith.constant 3 : index
      %145 = vector.load %arg10[%c0_96, %c3_97] : memref<8x4xf32, #tpu.memory_space<vmem>>, vector<8x1xf32>
      tpu.vector_store %arg10[%c0_96, %c3_97], %144 {strides = array<i32>} : memref<8x4xf32, #tpu.memory_space<vmem>>, vector<8x1xf32>,
      %c0_98 = arith.constant 0 : index
      %c24_99 = arith.constant 24 : index
      %146 = vector.load %arg11[%c0_98, %c24_99] : memref<8x32xf32, #tpu.memory_space<vmem>>, vector<8x8xf32>
      %147 = vector.broadcast %136 : vector<8x1xf32> to vector<8x8xf32>
      %148 = arith.mulf %147, %146 : vector<8x8xf32>
      %149 = arith.truncf %139 : vector<8x8xf32> to vector<8x8xbf16>
      %cst_100 = arith.constant dense<0.000000e+00> : vector<8x8xf32>
      %150 = tpu.matmul %149, %125, %cst_100 {dimension_numbers = #tpu.dot_dimension_numbers<[1], [0], [0], [1], [0, 0, 1, 1], [], []>} : vector<8x8xbf16>, vector<8x8xbf16>, vector<8x8xf32> -> vector<8x8xf32>
      %151 = arith.addf %148, %150 : vector<8x8xf32>
      %c0_101 = arith.constant 0 : index
      %c24_102 = arith.constant 24 : index
      %152 = vector.load %arg11[%c0_101, %c24_102] : memref<8x32xf32, #tpu.memory_space<vmem>>, vector<8x8xf32>
      tpu.vector_store %arg11[%c0_101, %c24_102], %151 {strides = array<i32>} : memref<8x32xf32, #tpu.memory_space<vmem>>, vector<8x8xf32>,
      %c0_103 = arith.constant 0 : index
      %c3_104 = arith.constant 3 : index
      %153 = vector.load %arg9[%c0_103, %c3_104] : memref<8x4xf32, #tpu.memory_space<vmem>>, vector<8x1xf32>
      tpu.vector_store %arg9[%c0_103, %c3_104], %134 {strides = array<i32>} : memref<8x4xf32, #tpu.memory_space<vmem>>, vector<8x1xf32>,
    } else {
    }
    %c0_i32_2 = arith.constant 0 : i32
    %6 = arith.cmpi eq, %arg2, %c0_i32_2 : i32
    %7 = arith.extui %6 : i1 to i32
    %c0_i32_3 = arith.constant 0 : i32
    %8 = arith.cmpi ne, %7, %c0_i32_3 : i32
    scf.if %8 {
      %c0 = arith.constant 0 : index
      %c0_4 = arith.constant 0 : index
      %9 = vector.load %arg11[%c0, %c0_4] : memref<8x32xf32, #tpu.memory_space<vmem>>, vector<8x8xf32>
      %c0_5 = arith.constant 0 : index
      %c0_6 = arith.constant 0 : index
      %10 = vector.load %arg10[%c0_5, %c0_6] : memref<8x4xf32, #tpu.memory_space<vmem>>, vector<8x1xf32>
      %11 = tpu.reciprocal %10 {approx = true} : vector<8x1xf32> -> vector<8x1xf32>
      %12 = vector.broadcast %11 : vector<8x1xf32> to vector<8x8xf32>
      %13 = arith.mulf %9, %12 : vector<8x8xf32>
      %c0_7 = arith.constant 0 : index
      %c0_8 = arith.constant 0 : index
      %14 = vector.load %arg11[%c0_7, %c0_8] : memref<8x32xf32, #tpu.memory_space<vmem>>, vector<8x8xf32>
      tpu.vector_store %arg11[%c0_7, %c0_8], %13 {strides = array<i32>} : memref<8x32xf32, #tpu.memory_space<vmem>>, vector<8x8xf32>,
      %c0_9 = arith.constant 0 : index
      %c8 = arith.constant 8 : index
      %15 = vector.load %arg11[%c0_9, %c8] : memref<8x32xf32, #tpu.memory_space<vmem>>, vector<8x8xf32>
      %c0_10 = arith.constant 0 : index
      %c1 = arith.constant 1 : index
      %16 = vector.load %arg10[%c0_10, %c1] : memref<8x4xf32, #tpu.memory_space<vmem>>, vector<8x1xf32>
      %17 = tpu.reciprocal %16 {approx = true} : vector<8x1xf32> -> vector<8x1xf32>
      %18 = vector.broadcast %17 : vector<8x1xf32> to vector<8x8xf32>
      %19 = arith.mulf %15, %18 : vector<8x8xf32>
      %c0_11 = arith.constant 0 : index
      %c8_12 = arith.constant 8 : index
      %20 = vector.load %arg11[%c0_11, %c8_12] : memref<8x32xf32, #tpu.memory_space<vmem>>, vector<8x8xf32>
      tpu.vector_store %arg11[%c0_11, %c8_12], %19 {strides = array<i32>} : memref<8x32xf32, #tpu.memory_space<vmem>>, vector<8x8xf32>,
      %c0_13 = arith.constant 0 : index
      %c16 = arith.constant 16 : index
      %21 = vector.load %arg11[%c0_13, %c16] : memref<8x32xf32, #tpu.memory_space<vmem>>, vector<8x8xf32>
      %c0_14 = arith.constant 0 : index
      %c2 = arith.constant 2 : index
      %22 = vector.load %arg10[%c0_14, %c2] : memref<8x4xf32, #tpu.memory_space<vmem>>, vector<8x1xf32>
      %23 = tpu.reciprocal %22 {approx = true} : vector<8x1xf32> -> vector<8x1xf32>
      %24 = vector.broadcast %23 : vector<8x1xf32> to vector<8x8xf32>
      %25 = arith.mulf %21, %24 : vector<8x8xf32>
      %c0_15 = arith.constant 0 : index
      %c16_16 = arith.constant 16 : index
      %26 = vector.load %arg11[%c0_15, %c16_16] : memref<8x32xf32, #tpu.memory_space<vmem>>, vector<8x8xf32>
      tpu.vector_store %arg11[%c0_15, %c16_16], %25 {strides = array<i32>} : memref<8x32xf32, #tpu.memory_space<vmem>>, vector<8x8xf32>,
      %c0_17 = arith.constant 0 : index
      %c24 = arith.constant 24 : index
      %27 = vector.load %arg11[%c0_17, %c24] : memref<8x32xf32, #tpu.memory_space<vmem>>, vector<8x8xf32>
      %c0_18 = arith.constant 0 : index
      %c3 = arith.constant 3 : index
      %28 = vector.load %arg10[%c0_18, %c3] : memref<8x4xf32, #tpu.memory_space<vmem>>, vector<8x1xf32>
      %29 = tpu.reciprocal %28 {approx = true} : vector<8x1xf32> -> vector<8x1xf32>
      %30 = vector.broadcast %29 : vector<8x1xf32> to vector<8x8xf32>
      %31 = arith.mulf %27, %30 : vector<8x8xf32>
      %c0_19 = arith.constant 0 : index
      %c24_20 = arith.constant 24 : index
      %32 = vector.load %arg11[%c0_19, %c24_20] : memref<8x32xf32, #tpu.memory_space<vmem>>, vector<8x8xf32>
      tpu.vector_store %arg11[%c0_19, %c24_20], %31 {strides = array<i32>} : memref<8x32xf32, #tpu.memory_space<vmem>>, vector<8x8xf32>,
      %c0_21 = arith.constant 0 : index
      %c0_22 = arith.constant 0 : index
      %33 = vector.load %arg11[%c0_21, %c0_22] : memref<8x32xf32, #tpu.memory_space<vmem>>, vector<8x32xf32>
      %34 = arith.truncf %33 : vector<8x32xf32> to vector<8x32xbf16>
      %c0_23 = arith.constant 0 : index
      %c0_24 = arith.constant 0 : index
      %35 = vector.load %arg7[%c0_23, %c0_24] : memref<32x32xbf16, #tpu.memory_space<vmem>>, vector<32x32xbf16>
      %cst = arith.constant dense<0.000000e+00> : vector<8x32xf32>
      %36 = tpu.matmul %34, %35, %cst {dimension_numbers = #tpu.dot_dimension_numbers<[1], [0], [0], [1], [0, 0, 1, 1], [], []>} : vector<8x32xbf16>, vector<32x32xbf16>, vector<8x32xf32> -> vector<8x32xf32>
      %c0_25 = arith.constant 0 : index
      %c0_26 = arith.constant 0 : index
      %c0_27 = arith.constant 0 : index
      %37 = vector.load %arg3[%c0_25, %c0_26, %c0_27] : memref<1x8x32xbf16, #tpu.memory_space<vmem>>, vector<1x8x32xbf16>
      %38 = vector.shape_cast %37 : vector<1x8x32xbf16> to vector<8x32xbf16>
      %39 = arith.extf %38 : vector<8x32xbf16> to vector<8x32xf32>
      %40 = arith.addf %39, %36 : vector<8x32xf32>
      %41 = arith.truncf %40 : vector<8x32xf32> to vector<8x32xbf16>
      %c0_28 = arith.constant 0 : index
      %c0_29 = arith.constant 0 : index
      %c0_30 = arith.constant 0 : index
      %42 = vector.load %arg8[%c0_28, %c0_29, %c0_30] : memref<1x8x32xbf16, #tpu.memory_space<vmem>>, vector<1x8x32xbf16>
      %43 = vector.shape_cast %42 : vector<1x8x32xbf16> to vector<8x32xbf16>
      %44 = vector.shape_cast %41 : vector<8x32xbf16> to vector<1x8x32xbf16>
      tpu.vector_store %arg8[%c0_28, %c0_29, %c0_30], %44 {strides = array<i32>} : memref<1x8x32xbf16, #tpu.memory_space<vmem>>, vector<1x8x32xbf16>,
    } else {
    }
    return
  }
  func.func @transform_0(%arg0: i32, %arg1: i32, %arg2: i32) -> (i32, i32, i32) {
    %c0_i32 = arith.constant 0 : i32
    %c0_i32_0 = arith.constant 0 : i32
    return %arg0, %arg1, %c0_i32 : i32, i32, i32
  }
  func.func @transform_1(%arg0: i32, %arg1: i32, %arg2: i32) -> (i32, i32, i32) {
    %c0_i32 = arith.constant 0 : i32
    %c0_i32_0 = arith.constant 0 : i32
    return %arg0, %arg1, %c0_i32 : i32, i32, i32
  }
  func.func @transform_2(%arg0: i32, %arg1: i32, %arg2: i32) -> (i32, i32, i32) {
    %0 = arith.minsi %arg2, %arg1 : i32
    %c0_i32 = arith.constant 0 : i32
    %c0_i32_0 = arith.constant 0 : i32
    return %arg0, %c0_i32, %0 : i32, i32, i32
  }
  func.func @transform_3(%arg0: i32, %arg1: i32, %arg2: i32) -> (i32, i32, i32) {
    %0 = arith.minsi %arg2, %arg1 : i32
    %c0_i32 = arith.constant 0 : i32
    %c0_i32_0 = arith.constant 0 : i32
    return %arg0, %0, %c0_i32 : i32, i32, i32
  }
  func.func @transform_4(%arg0: i32, %arg1: i32, %arg2: i32) -> (i32, i32) {
    %c0_i32 = arith.constant 0 : i32
    %c0_i32_0 = arith.constant 0 : i32
    %c0_i32_1 = arith.constant 0 : i32
    return %c0_i32, %c0_i32_0 : i32, i32
  }
  func.func @transform_5(%arg0: i32, %arg1: i32, %arg2: i32) -> (i32, i32, i32) {
    %c0_i32 = arith.constant 0 : i32
    %c0_i32_0 = arith.constant 0 : i32
    return %arg0, %arg1, %c0_i32 : i32, i32, i32
  }
}

module attributes {stable_mosaic.version = 11 : i64} {
  func.func @_qkv_rope_kernel(%arg0: i32, %arg1: i32, %arg2: memref<1x8x32xbf16, #tpu.memory_space<vmem>>, %arg3: memref<1x8x8xf32, #tpu.memory_space<vmem>>, %arg4: memref<1x8x8xf32, #tpu.memory_space<vmem>>, %arg5: memref<1x32xf32, #tpu.memory_space<vmem>>, %arg6: memref<1x32xf32, #tpu.memory_space<vmem>>, %arg7: memref<32x96xbf16, #tpu.memory_space<vmem>>, %arg8: memref<1x8x32xbf16, #tpu.memory_space<vmem>>, %arg9: memref<1x32x8xbf16, #tpu.memory_space<vmem>>, %arg10: memref<1x8x32xbf16, #tpu.memory_space<vmem>>) attributes {dimension_semantics = [#tpu.dimension_semantics<parallel>, #tpu.dimension_semantics<parallel>], iteration_bounds = array<i64: 2, 1>, scalar_prefetch = 0 : i64, scratch_operands = 0 : i64, tpu.core_type = #tpu.core_type<tc>, window_params = [{transform_indices = @transform_0, window_bounds = array<i64: 1, 8, 32>}, {transform_indices = @transform_1, window_bounds = array<i64: 1, 8, 8>}, {transform_indices = @transform_2, window_bounds = array<i64: 1, 8, 8>}, {pipeline_mode = #tpu.pipeline_mode<synchronous>, transform_indices = @transform_3, window_bounds = array<i64: 1, 32>}, {pipeline_mode = #tpu.pipeline_mode<synchronous>, transform_indices = @transform_4, window_bounds = array<i64: 1, 32>}, {pipeline_mode = #tpu.pipeline_mode<synchronous>, transform_indices = @transform_5, window_bounds = array<i64: 32, 96>}, {transform_indices = @transform_6, window_bounds = array<i64: 1, 8, 32>}, {transform_indices = @transform_7, window_bounds = array<i64: 1, 32, 8>}, {transform_indices = @transform_8, window_bounds = array<i64: 1, 8, 32>}]} {
    %c0 = arith.constant 0 : index
    %c0_0 = arith.constant 0 : index
    %c0_1 = arith.constant 0 : index
    %0 = vector.load %arg2[%c0, %c0_0, %c0_1] : memref<1x8x32xbf16, #tpu.memory_space<vmem>>, vector<1x8x32xbf16>
    %1 = vector.shape_cast %0 : vector<1x8x32xbf16> to vector<8x32xbf16>
    %2 = arith.extf %1 : vector<8x32xbf16> to vector<8x32xf32>
    %cst = arith.constant dense<0.000000e+00> : vector<8xf32>
    %3 = vector.multi_reduction <add>, %2, %cst [1] : vector<8x32xf32> to vector<8xf32>
    %4 = vector.shape_cast %3 : vector<8xf32> to vector<8x1xf32>
    %cst_2 = arith.constant 3.200000e+01 : f32
    %5 = vector.broadcast %cst_2 : f32 to vector<8x1xf32>
    %6 = arith.divf %4, %5 : vector<8x1xf32>
    %7 = vector.broadcast %6 : vector<8x1xf32> to vector<8x32xf32>
    %8 = arith.subf %2, %7 : vector<8x32xf32>
    %9 = arith.mulf %8, %8 : vector<8x32xf32>
    %cst_3 = arith.constant dense<0.000000e+00> : vector<8xf32>
    %10 = vector.multi_reduction <add>, %9, %cst_3 [1] : vector<8x32xf32> to vector<8xf32>
    %11 = vector.shape_cast %10 : vector<8xf32> to vector<8x1xf32>
    %cst_4 = arith.constant 3.200000e+01 : f32
    %12 = vector.broadcast %cst_4 : f32 to vector<8x1xf32>
    %13 = arith.divf %11, %12 : vector<8x1xf32>
    %14 = vector.broadcast %6 : vector<8x1xf32> to vector<8x32xf32>
    %15 = arith.subf %2, %14 : vector<8x32xf32>
    %cst_5 = arith.constant 9.99999974E-6 : f32
    %16 = vector.broadcast %cst_5 : f32 to vector<8x1xf32>
    %17 = arith.addf %13, %16 : vector<8x1xf32>
    %18 = math.rsqrt %17 : vector<8x1xf32>
    %19 = vector.broadcast %18 : vector<8x1xf32> to vector<8x32xf32>
    %20 = arith.mulf %15, %19 : vector<8x32xf32>
    %c0_6 = arith.constant 0 : index
    %c0_7 = arith.constant 0 : index
    %21 = vector.load %arg5[%c0_6, %c0_7] : memref<1x32xf32, #tpu.memory_space<vmem>>, vector<1x32xf32>
    %22 = vector.shape_cast %21 : vector<1x32xf32> to vector<32xf32>
    %23 = vector.shape_cast %22 : vector<32xf32> to vector<1x32xf32>
    %24 = vector.broadcast %23 : vector<1x32xf32> to vector<8x32xf32>
    %25 = arith.mulf %20, %24 : vector<8x32xf32>
    %c0_8 = arith.constant 0 : index
    %c0_9 = arith.constant 0 : index
    %26 = vector.load %arg6[%c0_8, %c0_9] : memref<1x32xf32, #tpu.memory_space<vmem>>, vector<1x32xf32>
    %27 = vector.shape_cast %26 : vector<1x32xf32> to vector<32xf32>
    %28 = vector.shape_cast %27 : vector<32xf32> to vector<1x32xf32>
    %29 = vector.broadcast %28 : vector<1x32xf32> to vector<8x32xf32>
    %30 = arith.addf %25, %29 : vector<8x32xf32>
    %31 = arith.truncf %30 : vector<8x32xf32> to vector<8x32xbf16>
    %c0_10 = arith.constant 0 : index
    %c0_11 = arith.constant 0 : index
    %32 = vector.load %arg7[%c0_10, %c0_11] : memref<32x96xbf16, #tpu.memory_space<vmem>>, vector<32x96xbf16>
    %cst_12 = arith.constant dense<0.000000e+00> : vector<8x96xf32>
    %33 = tpu.matmul %31, %32, %cst_12 {dimension_numbers = #tpu.dot_dimension_numbers<[1], [0], [0], [1], [0, 0, 1, 1], [], []>} : vector<8x32xbf16>, vector<32x96xbf16>, vector<8x96xf32> -> vector<8x96xf32>
    %c0_13 = arith.constant 0 : index
    %c0_14 = arith.constant 0 : index
    %c0_15 = arith.constant 0 : index
    %34 = vector.load %arg3[%c0_13, %c0_14, %c0_15] : memref<1x8x8xf32, #tpu.memory_space<vmem>>, vector<1x8x8xf32>
    %35 = vector.shape_cast %34 : vector<1x8x8xf32> to vector<8x8xf32>
    %c0_16 = arith.constant 0 : index
    %c0_17 = arith.constant 0 : index
    %c0_18 = arith.constant 0 : index
    %36 = vector.load %arg4[%c0_16, %c0_17, %c0_18] : memref<1x8x8xf32, #tpu.memory_space<vmem>>, vector<1x8x8xf32>
    %37 = vector.shape_cast %36 : vector<1x8x8xf32> to vector<8x8xf32>
    %38 = vector.extract_strided_slice %33 {offsets = [0, 64], sizes = [8, 32], strides = [1, 1]} : vector<8x96xf32> to vector<8x32xf32>
    %39 = arith.truncf %38 : vector<8x32xf32> to vector<8x32xbf16>
    %c0_19 = arith.constant 0 : index
    %c0_20 = arith.constant 0 : index
    %c0_21 = arith.constant 0 : index
    %40 = vector.load %arg10[%c0_19, %c0_20, %c0_21] : memref<1x8x32xbf16, #tpu.memory_space<vmem>>, vector<1x8x32xbf16>
    %41 = vector.shape_cast %40 : vector<1x8x32xbf16> to vector<8x32xbf16>
    %42 = vector.shape_cast %39 : vector<8x32xbf16> to vector<1x8x32xbf16>
    tpu.vector_store %arg10[%c0_19, %c0_20, %c0_21], %42 {strides = array<i32>} : memref<1x8x32xbf16, #tpu.memory_space<vmem>>, vector<1x8x32xbf16>,
    %43 = vector.extract_strided_slice %33 {offsets = [0, 0], sizes = [8, 8], strides = [1, 1]} : vector<8x96xf32> to vector<8x8xf32>
    %44 = vector.extract_strided_slice %33 {offsets = [0, 32], sizes = [8, 8], strides = [1, 1]} : vector<8x96xf32> to vector<8x8xf32>
    %45 = arith.mulf %43, %35 : vector<8x8xf32>
    %46 = vector.extract_strided_slice %43 {offsets = [0, 4], sizes = [8, 4], strides = [1, 1]} : vector<8x8xf32> to vector<8x4xf32>
    %cst_22 = arith.constant 0.000000e+00 : f32
    %47 = vector.broadcast %cst_22 : f32 to vector<8x4xf32>
    %48 = arith.subf %47, %46 : vector<8x4xf32>
    %49 = vector.extract_strided_slice %43 {offsets = [0, 0], sizes = [8, 4], strides = [1, 1]} : vector<8x8xf32> to vector<8x4xf32>
    %50 = tpu.concatenate %48, %49 in 1 : vector<8x4xf32>, vector<8x4xf32> -> vector<8x8xf32>
    %51 = arith.mulf %50, %37 : vector<8x8xf32>
    %52 = arith.addf %45, %51 : vector<8x8xf32>
    %53 = arith.truncf %52 : vector<8x8xf32> to vector<8x8xbf16>
    %c0_23 = arith.constant 0 : index
    %c0_24 = arith.constant 0 : index
    %c0_25 = arith.constant 0 : index
    %54 = vector.load %arg8[%c0_23, %c0_24, %c0_25] : memref<1x8x32xbf16, #tpu.memory_space<vmem>>, vector<1x8x8xbf16>
    %55 = vector.shape_cast %54 : vector<1x8x8xbf16> to vector<8x8xbf16>
    %56 = vector.shape_cast %53 : vector<8x8xbf16> to vector<1x8x8xbf16>
    tpu.vector_store %arg8[%c0_23, %c0_24, %c0_25], %56 {strides = array<i32>} : memref<1x8x32xbf16, #tpu.memory_space<vmem>>, vector<1x8x8xbf16>,
    %57 = arith.mulf %44, %35 : vector<8x8xf32>
    %58 = vector.extract_strided_slice %44 {offsets = [0, 4], sizes = [8, 4], strides = [1, 1]} : vector<8x8xf32> to vector<8x4xf32>
    %cst_26 = arith.constant 0.000000e+00 : f32
    %59 = vector.broadcast %cst_26 : f32 to vector<8x4xf32>
    %60 = arith.subf %59, %58 : vector<8x4xf32>
    %61 = vector.extract_strided_slice %44 {offsets = [0, 0], sizes = [8, 4], strides = [1, 1]} : vector<8x8xf32> to vector<8x4xf32>
    %62 = tpu.concatenate %60, %61 in 1 : vector<8x4xf32>, vector<8x4xf32> -> vector<8x8xf32>
    %63 = arith.mulf %62, %37 : vector<8x8xf32>
    %64 = arith.addf %57, %63 : vector<8x8xf32>
    %65 = tpu.transpose %64, [1, 0] : vector<8x8xf32> -> vector<8x8xf32>
    %66 = arith.truncf %65 : vector<8x8xf32> to vector<8x8xbf16>
    %c0_27 = arith.constant 0 : index
    %c0_28 = arith.constant 0 : index
    %c0_29 = arith.constant 0 : index
    %67 = vector.load %arg9[%c0_27, %c0_28, %c0_29] : memref<1x32x8xbf16, #tpu.memory_space<vmem>>, vector<1x8x8xbf16>
    %68 = vector.shape_cast %67 : vector<1x8x8xbf16> to vector<8x8xbf16>
    %69 = vector.shape_cast %66 : vector<8x8xbf16> to vector<1x8x8xbf16>
    tpu.vector_store %arg9[%c0_27, %c0_28, %c0_29], %69 {strides = array<i32>} : memref<1x32x8xbf16, #tpu.memory_space<vmem>>, vector<1x8x8xbf16>,
    %70 = vector.extract_strided_slice %33 {offsets = [0, 8], sizes = [8, 8], strides = [1, 1]} : vector<8x96xf32> to vector<8x8xf32>
    %71 = vector.extract_strided_slice %33 {offsets = [0, 40], sizes = [8, 8], strides = [1, 1]} : vector<8x96xf32> to vector<8x8xf32>
    %72 = arith.mulf %70, %35 : vector<8x8xf32>
    %73 = vector.extract_strided_slice %70 {offsets = [0, 4], sizes = [8, 4], strides = [1, 1]} : vector<8x8xf32> to vector<8x4xf32>
    %cst_30 = arith.constant 0.000000e+00 : f32
    %74 = vector.broadcast %cst_30 : f32 to vector<8x4xf32>
    %75 = arith.subf %74, %73 : vector<8x4xf32>
    %76 = vector.extract_strided_slice %70 {offsets = [0, 0], sizes = [8, 4], strides = [1, 1]} : vector<8x8xf32> to vector<8x4xf32>
    %77 = tpu.concatenate %75, %76 in 1 : vector<8x4xf32>, vector<8x4xf32> -> vector<8x8xf32>
    %78 = arith.mulf %77, %37 : vector<8x8xf32>
    %79 = arith.addf %72, %78 : vector<8x8xf32>
    %80 = arith.truncf %79 : vector<8x8xf32> to vector<8x8xbf16>
    %c0_31 = arith.constant 0 : index
    %c0_32 = arith.constant 0 : index
    %c8 = arith.constant 8 : index
    %81 = vector.load %arg8[%c0_31, %c0_32, %c8] : memref<1x8x32xbf16, #tpu.memory_space<vmem>>, vector<1x8x8xbf16>
    %82 = vector.shape_cast %81 : vector<1x8x8xbf16> to vector<8x8xbf16>
    %83 = vector.shape_cast %80 : vector<8x8xbf16> to vector<1x8x8xbf16>
    tpu.vector_store %arg8[%c0_31, %c0_32, %c8], %83 {strides = array<i32>} : memref<1x8x32xbf16, #tpu.memory_space<vmem>>, vector<1x8x8xbf16>,
    %84 = arith.mulf %71, %35 : vector<8x8xf32>
    %85 = vector.extract_strided_slice %71 {offsets = [0, 4], sizes = [8, 4], strides = [1, 1]} : vector<8x8xf32> to vector<8x4xf32>
    %cst_33 = arith.constant 0.000000e+00 : f32
    %86 = vector.broadcast %cst_33 : f32 to vector<8x4xf32>
    %87 = arith.subf %86, %85 : vector<8x4xf32>
    %88 = vector.extract_strided_slice %71 {offsets = [0, 0], sizes = [8, 4], strides = [1, 1]} : vector<8x8xf32> to vector<8x4xf32>
    %89 = tpu.concatenate %87, %88 in 1 : vector<8x4xf32>, vector<8x4xf32> -> vector<8x8xf32>
    %90 = arith.mulf %89, %37 : vector<8x8xf32>
    %91 = arith.addf %84, %90 : vector<8x8xf32>
    %92 = tpu.transpose %91, [1, 0] : vector<8x8xf32> -> vector<8x8xf32>
    %93 = arith.truncf %92 : vector<8x8xf32> to vector<8x8xbf16>
    %c0_34 = arith.constant 0 : index
    %c8_35 = arith.constant 8 : index
    %c0_36 = arith.constant 0 : index
    %94 = vector.load %arg9[%c0_34, %c8_35, %c0_36] : memref<1x32x8xbf16, #tpu.memory_space<vmem>>, vector<1x8x8xbf16>
    %95 = vector.shape_cast %94 : vector<1x8x8xbf16> to vector<8x8xbf16>
    %96 = vector.shape_cast %93 : vector<8x8xbf16> to vector<1x8x8xbf16>
    tpu.vector_store %arg9[%c0_34, %c8_35, %c0_36], %96 {strides = array<i32>} : memref<1x32x8xbf16, #tpu.memory_space<vmem>>, vector<1x8x8xbf16>,
    %97 = vector.extract_strided_slice %33 {offsets = [0, 16], sizes = [8, 8], strides = [1, 1]} : vector<8x96xf32> to vector<8x8xf32>
    %98 = vector.extract_strided_slice %33 {offsets = [0, 48], sizes = [8, 8], strides = [1, 1]} : vector<8x96xf32> to vector<8x8xf32>
    %99 = arith.mulf %97, %35 : vector<8x8xf32>
    %100 = vector.extract_strided_slice %97 {offsets = [0, 4], sizes = [8, 4], strides = [1, 1]} : vector<8x8xf32> to vector<8x4xf32>
    %cst_37 = arith.constant 0.000000e+00 : f32
    %101 = vector.broadcast %cst_37 : f32 to vector<8x4xf32>
    %102 = arith.subf %101, %100 : vector<8x4xf32>
    %103 = vector.extract_strided_slice %97 {offsets = [0, 0], sizes = [8, 4], strides = [1, 1]} : vector<8x8xf32> to vector<8x4xf32>
    %104 = tpu.concatenate %102, %103 in 1 : vector<8x4xf32>, vector<8x4xf32> -> vector<8x8xf32>
    %105 = arith.mulf %104, %37 : vector<8x8xf32>
    %106 = arith.addf %99, %105 : vector<8x8xf32>
    %107 = arith.truncf %106 : vector<8x8xf32> to vector<8x8xbf16>
    %c0_38 = arith.constant 0 : index
    %c0_39 = arith.constant 0 : index
    %c16 = arith.constant 16 : index
    %108 = vector.load %arg8[%c0_38, %c0_39, %c16] : memref<1x8x32xbf16, #tpu.memory_space<vmem>>, vector<1x8x8xbf16>
    %109 = vector.shape_cast %108 : vector<1x8x8xbf16> to vector<8x8xbf16>
    %110 = vector.shape_cast %107 : vector<8x8xbf16> to vector<1x8x8xbf16>
    tpu.vector_store %arg8[%c0_38, %c0_39, %c16], %110 {strides = array<i32>} : memref<1x8x32xbf16, #tpu.memory_space<vmem>>, vector<1x8x8xbf16>,
    %111 = arith.mulf %98, %35 : vector<8x8xf32>
    %112 = vector.extract_strided_slice %98 {offsets = [0, 4], sizes = [8, 4], strides = [1, 1]} : vector<8x8xf32> to vector<8x4xf32>
    %cst_40 = arith.constant 0.000000e+00 : f32
    %113 = vector.broadcast %cst_40 : f32 to vector<8x4xf32>
    %114 = arith.subf %113, %112 : vector<8x4xf32>
    %115 = vector.extract_strided_slice %98 {offsets = [0, 0], sizes = [8, 4], strides = [1, 1]} : vector<8x8xf32> to vector<8x4xf32>
    %116 = tpu.concatenate %114, %115 in 1 : vector<8x4xf32>, vector<8x4xf32> -> vector<8x8xf32>
    %117 = arith.mulf %116, %37 : vector<8x8xf32>
    %118 = arith.addf %111, %117 : vector<8x8xf32>
    %119 = tpu.transpose %118, [1, 0] : vector<8x8xf32> -> vector<8x8xf32>
    %120 = arith.truncf %119 : vector<8x8xf32> to vector<8x8xbf16>
    %c0_41 = arith.constant 0 : index
    %c16_42 = arith.constant 16 : index
    %c0_43 = arith.constant 0 : index
    %121 = vector.load %arg9[%c0_41, %c16_42, %c0_43] : memref<1x32x8xbf16, #tpu.memory_space<vmem>>, vector<1x8x8xbf16>
    %122 = vector.shape_cast %121 : vector<1x8x8xbf16> to vector<8x8xbf16>
    %123 = vector.shape_cast %120 : vector<8x8xbf16> to vector<1x8x8xbf16>
    tpu.vector_store %arg9[%c0_41, %c16_42, %c0_43], %123 {strides = array<i32>} : memref<1x32x8xbf16, #tpu.memory_space<vmem>>, vector<1x8x8xbf16>,
    %124 = vector.extract_strided_slice %33 {offsets = [0, 24], sizes = [8, 8], strides = [1, 1]} : vector<8x96xf32> to vector<8x8xf32>
    %125 = vector.extract_strided_slice %33 {offsets = [0, 56], sizes = [8, 8], strides = [1, 1]} : vector<8x96xf32> to vector<8x8xf32>
    %126 = arith.mulf %124, %35 : vector<8x8xf32>
    %127 = vector.extract_strided_slice %124 {offsets = [0, 4], sizes = [8, 4], strides = [1, 1]} : vector<8x8xf32> to vector<8x4xf32>
    %cst_44 = arith.constant 0.000000e+00 : f32
    %128 = vector.broadcast %cst_44 : f32 to vector<8x4xf32>
    %129 = arith.subf %128, %127 : vector<8x4xf32>
    %130 = vector.extract_strided_slice %124 {offsets = [0, 0], sizes = [8, 4], strides = [1, 1]} : vector<8x8xf32> to vector<8x4xf32>
    %131 = tpu.concatenate %129, %130 in 1 : vector<8x4xf32>, vector<8x4xf32> -> vector<8x8xf32>
    %132 = arith.mulf %131, %37 : vector<8x8xf32>
    %133 = arith.addf %126, %132 : vector<8x8xf32>
    %134 = arith.truncf %133 : vector<8x8xf32> to vector<8x8xbf16>
    %c0_45 = arith.constant 0 : index
    %c0_46 = arith.constant 0 : index
    %c24 = arith.constant 24 : index
    %135 = vector.load %arg8[%c0_45, %c0_46, %c24] : memref<1x8x32xbf16, #tpu.memory_space<vmem>>, vector<1x8x8xbf16>
    %136 = vector.shape_cast %135 : vector<1x8x8xbf16> to vector<8x8xbf16>
    %137 = vector.shape_cast %134 : vector<8x8xbf16> to vector<1x8x8xbf16>
    tpu.vector_store %arg8[%c0_45, %c0_46, %c24], %137 {strides = array<i32>} : memref<1x8x32xbf16, #tpu.memory_space<vmem>>, vector<1x8x8xbf16>,
    %138 = arith.mulf %125, %35 : vector<8x8xf32>
    %139 = vector.extract_strided_slice %125 {offsets = [0, 4], sizes = [8, 4], strides = [1, 1]} : vector<8x8xf32> to vector<8x4xf32>
    %cst_47 = arith.constant 0.000000e+00 : f32
    %140 = vector.broadcast %cst_47 : f32 to vector<8x4xf32>
    %141 = arith.subf %140, %139 : vector<8x4xf32>
    %142 = vector.extract_strided_slice %125 {offsets = [0, 0], sizes = [8, 4], strides = [1, 1]} : vector<8x8xf32> to vector<8x4xf32>
    %143 = tpu.concatenate %141, %142 in 1 : vector<8x4xf32>, vector<8x4xf32> -> vector<8x8xf32>
    %144 = arith.mulf %143, %37 : vector<8x8xf32>
    %145 = arith.addf %138, %144 : vector<8x8xf32>
    %146 = tpu.transpose %145, [1, 0] : vector<8x8xf32> -> vector<8x8xf32>
    %147 = arith.truncf %146 : vector<8x8xf32> to vector<8x8xbf16>
    %c0_48 = arith.constant 0 : index
    %c24_49 = arith.constant 24 : index
    %c0_50 = arith.constant 0 : index
    %148 = vector.load %arg9[%c0_48, %c24_49, %c0_50] : memref<1x32x8xbf16, #tpu.memory_space<vmem>>, vector<1x8x8xbf16>
    %149 = vector.shape_cast %148 : vector<1x8x8xbf16> to vector<8x8xbf16>
    %150 = vector.shape_cast %147 : vector<8x8xbf16> to vector<1x8x8xbf16>
    tpu.vector_store %arg9[%c0_48, %c24_49, %c0_50], %150 {strides = array<i32>} : memref<1x32x8xbf16, #tpu.memory_space<vmem>>, vector<1x8x8xbf16>,
    return
  }
  func.func @transform_0(%arg0: i32, %arg1: i32) -> (i32, i32, i32) {
    %c0_i32 = arith.constant 0 : i32
    %c0_i32_0 = arith.constant 0 : i32
    return %arg0, %arg1, %c0_i32 : i32, i32, i32
  }
  func.func @transform_1(%arg0: i32, %arg1: i32) -> (i32, i32, i32) {
    %c0_i32 = arith.constant 0 : i32
    %c0_i32_0 = arith.constant 0 : i32
    return %arg0, %arg1, %c0_i32 : i32, i32, i32
  }
  func.func @transform_2(%arg0: i32, %arg1: i32) -> (i32, i32, i32) {
    %c0_i32 = arith.constant 0 : i32
    %c0_i32_0 = arith.constant 0 : i32
    return %arg0, %arg1, %c0_i32 : i32, i32, i32
  }
  func.func @transform_3(%arg0: i32, %arg1: i32) -> (i32, i32) {
    %c0_i32 = arith.constant 0 : i32
    %c0_i32_0 = arith.constant 0 : i32
    %c0_i32_1 = arith.constant 0 : i32
    return %c0_i32, %c0_i32_0 : i32, i32
  }
  func.func @transform_4(%arg0: i32, %arg1: i32) -> (i32, i32) {
    %c0_i32 = arith.constant 0 : i32
    %c0_i32_0 = arith.constant 0 : i32
    %c0_i32_1 = arith.constant 0 : i32
    return %c0_i32, %c0_i32_0 : i32, i32
  }
  func.func @transform_5(%arg0: i32, %arg1: i32) -> (i32, i32) {
    %c0_i32 = arith.constant 0 : i32
    %c0_i32_0 = arith.constant 0 : i32
    %c0_i32_1 = arith.constant 0 : i32
    return %c0_i32, %c0_i32_0 : i32, i32
  }
  func.func @transform_6(%arg0: i32, %arg1: i32) -> (i32, i32, i32) {
    %c0_i32 = arith.constant 0 : i32
    %c0_i32_0 = arith.constant 0 : i32
    return %arg0, %arg1, %c0_i32 : i32, i32, i32
  }
  func.func @transform_7(%arg0: i32, %arg1: i32) -> (i32, i32, i32) {
    %c0_i32 = arith.constant 0 : i32
    %c0_i32_0 = arith.constant 0 : i32
    return %arg0, %c0_i32, %arg1 : i32, i32, i32
  }
  func.func @transform_8(%arg0: i32, %arg1: i32) -> (i32, i32, i32) {
    %c0_i32 = arith.constant 0 : i32
    %c0_i32_0 = arith.constant 0 : i32
    return %arg0, %arg1, %c0_i32 : i32, i32, i32
  }
}

module attributes {stable_mosaic.version = 11 : i64} {
  func.func @_ffn_kernel(%arg0: i32, %arg1: i32, %arg2: i32, %arg3: memref<1x8x32xbf16, #tpu.memory_space<vmem>>, %arg4: memref<1x32xf32, #tpu.memory_space<vmem>>, %arg5: memref<1x32xf32, #tpu.memory_space<vmem>>, %arg6: memref<2x32x64xbf16, #tpu.memory_space<vmem>>, %arg7: memref<64x32xbf16, #tpu.memory_space<vmem>>, %arg8: memref<1x8x32xbf16, #tpu.memory_space<vmem>>, %arg9: memref<8x32xbf16, #tpu.memory_space<vmem>>, %arg10: memref<8x32xf32, #tpu.memory_space<vmem>>) attributes {dimension_semantics = [#tpu.dimension_semantics<parallel>, #tpu.dimension_semantics<parallel>, #tpu.dimension_semantics<arbitrary>], iteration_bounds = array<i64: 2, 1, 1>, scalar_prefetch = 0 : i64, scratch_operands = 2 : i64, tpu.core_type = #tpu.core_type<tc>, window_params = [{transform_indices = @transform_0, window_bounds = array<i64: 1, 8, 32>}, {pipeline_mode = #tpu.pipeline_mode<synchronous>, transform_indices = @transform_1, window_bounds = array<i64: 1, 32>}, {pipeline_mode = #tpu.pipeline_mode<synchronous>, transform_indices = @transform_2, window_bounds = array<i64: 1, 32>}, {transform_indices = @transform_3, window_bounds = array<i64: 2, 32, 64>}, {transform_indices = @transform_4, window_bounds = array<i64: 64, 32>}, {transform_indices = @transform_5, window_bounds = array<i64: 1, 8, 32>}]} {
    %c0_i32 = arith.constant 0 : i32
    %0 = arith.cmpi eq, %arg2, %c0_i32 : i32
    %1 = arith.extui %0 : i1 to i32
    %c0_i32_0 = arith.constant 0 : i32
    %2 = arith.cmpi ne, %1, %c0_i32_0 : i32
    scf.if %2 {
      %c0_18 = arith.constant 0 : index
      %c0_19 = arith.constant 0 : index
      %c0_20 = arith.constant 0 : index
      %26 = vector.load %arg3[%c0_18, %c0_19, %c0_20] : memref<1x8x32xbf16, #tpu.memory_space<vmem>>, vector<1x8x32xbf16>
      %27 = vector.shape_cast %26 : vector<1x8x32xbf16> to vector<8x32xbf16>
      %28 = arith.extf %27 : vector<8x32xbf16> to vector<8x32xf32>
      %cst_21 = arith.constant dense<0.000000e+00> : vector<8xf32>
      %29 = vector.multi_reduction <add>, %28, %cst_21 [1] : vector<8x32xf32> to vector<8xf32>
      %30 = vector.shape_cast %29 : vector<8xf32> to vector<8x1xf32>
      %cst_22 = arith.constant 3.200000e+01 : f32
      %31 = vector.broadcast %cst_22 : f32 to vector<8x1xf32>
      %32 = arith.divf %30, %31 : vector<8x1xf32>
      %33 = vector.broadcast %32 : vector<8x1xf32> to vector<8x32xf32>
      %34 = arith.subf %28, %33 : vector<8x32xf32>
      %35 = arith.mulf %34, %34 : vector<8x32xf32>
      %cst_23 = arith.constant dense<0.000000e+00> : vector<8xf32>
      %36 = vector.multi_reduction <add>, %35, %cst_23 [1] : vector<8x32xf32> to vector<8xf32>
      %37 = vector.shape_cast %36 : vector<8xf32> to vector<8x1xf32>
      %cst_24 = arith.constant 3.200000e+01 : f32
      %38 = vector.broadcast %cst_24 : f32 to vector<8x1xf32>
      %39 = arith.divf %37, %38 : vector<8x1xf32>
      %40 = vector.broadcast %32 : vector<8x1xf32> to vector<8x32xf32>
      %41 = arith.subf %28, %40 : vector<8x32xf32>
      %cst_25 = arith.constant 9.99999974E-6 : f32
      %42 = vector.broadcast %cst_25 : f32 to vector<8x1xf32>
      %43 = arith.addf %39, %42 : vector<8x1xf32>
      %44 = math.rsqrt %43 : vector<8x1xf32>
      %45 = vector.broadcast %44 : vector<8x1xf32> to vector<8x32xf32>
      %46 = arith.mulf %41, %45 : vector<8x32xf32>
      %c0_26 = arith.constant 0 : index
      %c0_27 = arith.constant 0 : index
      %47 = vector.load %arg4[%c0_26, %c0_27] : memref<1x32xf32, #tpu.memory_space<vmem>>, vector<1x32xf32>
      %48 = vector.shape_cast %47 : vector<1x32xf32> to vector<32xf32>
      %49 = vector.shape_cast %48 : vector<32xf32> to vector<1x32xf32>
      %50 = vector.broadcast %49 : vector<1x32xf32> to vector<8x32xf32>
      %51 = arith.mulf %46, %50 : vector<8x32xf32>
      %c0_28 = arith.constant 0 : index
      %c0_29 = arith.constant 0 : index
      %52 = vector.load %arg5[%c0_28, %c0_29] : memref<1x32xf32, #tpu.memory_space<vmem>>, vector<1x32xf32>
      %53 = vector.shape_cast %52 : vector<1x32xf32> to vector<32xf32>
      %54 = vector.shape_cast %53 : vector<32xf32> to vector<1x32xf32>
      %55 = vector.broadcast %54 : vector<1x32xf32> to vector<8x32xf32>
      %56 = arith.addf %51, %55 : vector<8x32xf32>
      %57 = arith.truncf %56 : vector<8x32xf32> to vector<8x32xbf16>
      %c0_30 = arith.constant 0 : index
      %c0_31 = arith.constant 0 : index
      %58 = vector.load %arg9[%c0_30, %c0_31] : memref<8x32xbf16, #tpu.memory_space<vmem>>, vector<8x32xbf16>
      tpu.vector_store %arg9[%c0_30, %c0_31], %57 {strides = array<i32>} : memref<8x32xbf16, #tpu.memory_space<vmem>>, vector<8x32xbf16>,
      %cst_32 = arith.constant 0.000000e+00 : f32
      %59 = vector.broadcast %cst_32 : f32 to vector<8x32xf32>
      %c0_33 = arith.constant 0 : index
      %c0_34 = arith.constant 0 : index
      %60 = vector.load %arg10[%c0_33, %c0_34] : memref<8x32xf32, #tpu.memory_space<vmem>>, vector<8x32xf32>
      tpu.vector_store %arg10[%c0_33, %c0_34], %59 {strides = array<i32>} : memref<8x32xf32, #tpu.memory_space<vmem>>, vector<8x32xf32>,
    } else {
    }
    %c0 = arith.constant 0 : index
    %c0_1 = arith.constant 0 : index
    %3 = vector.load %arg9[%c0, %c0_1] : memref<8x32xbf16, #tpu.memory_space<vmem>>, vector<8x32xbf16>
    %c0_2 = arith.constant 0 : index
    %c0_3 = arith.constant 0 : index
    %c0_4 = arith.constant 0 : index
    %4 = vector.load %arg6[%c0_2, %c0_3, %c0_4] : memref<2x32x64xbf16, #tpu.memory_space<vmem>>, vector<1x32x64xbf16>
    %5 = vector.shape_cast %4 : vector<1x32x64xbf16> to vector<32x64xbf16>
    %cst = arith.constant dense<0.000000e+00> : vector<8x64xf32>
    %6 = tpu.matmul %3, %5, %cst {dimension_numbers = #tpu.dot_dimension_numbers<[1], [0], [0], [1], [0, 0, 1, 1], [], []>} : vector<8x32xbf16>, vector<32x64xbf16>, vector<8x64xf32> -> vector<8x64xf32>
    %c1 = arith.constant 1 : index
    %c0_5 = arith.constant 0 : index
    %c0_6 = arith.constant 0 : index
    %7 = vector.load %arg6[%c1, %c0_5, %c0_6] : memref<2x32x64xbf16, #tpu.memory_space<vmem>>, vector<1x32x64xbf16>
    %8 = vector.shape_cast %7 : vector<1x32x64xbf16> to vector<32x64xbf16>
    %cst_7 = arith.constant dense<0.000000e+00> : vector<8x64xf32>
    %9 = tpu.matmul %3, %8, %cst_7 {dimension_numbers = #tpu.dot_dimension_numbers<[1], [0], [0], [1], [0, 0, 1, 1], [], []>} : vector<8x32xbf16>, vector<32x64xbf16>, vector<8x64xf32> -> vector<8x64xf32>
    %10 = arith.negf %6 : vector<8x64xf32>
    %11 = math.exp %10 : vector<8x64xf32>
    %cst_8 = arith.constant 1.000000e+00 : f32
    %12 = vector.broadcast %cst_8 : f32 to vector<8x64xf32>
    %13 = arith.addf %12, %11 : vector<8x64xf32>
    %14 = arith.divf %12, %13 : vector<8x64xf32>
    %15 = arith.mulf %6, %14 : vector<8x64xf32>
    %16 = arith.mulf %15, %9 : vector<8x64xf32>
    %17 = arith.truncf %16 : vector<8x64xf32> to vector<8x64xbf16>
    %c0_9 = arith.constant 0 : index
    %c0_10 = arith.constant 0 : index
    %18 = vector.load %arg10[%c0_9, %c0_10] : memref<8x32xf32, #tpu.memory_space<vmem>>, vector<8x32xf32>
    %c0_11 = arith.constant 0 : index
    %c0_12 = arith.constant 0 : index
    %19 = vector.load %arg7[%c0_11, %c0_12] : memref<64x32xbf16, #tpu.memory_space<vmem>>, vector<64x32xbf16>
    %cst_13 = arith.constant dense<0.000000e+00> : vector<8x32xf32>
    %20 = tpu.matmul %17, %19, %cst_13 {dimension_numbers = #tpu.dot_dimension_numbers<[1], [0], [0], [1], [0, 0, 1, 1], [], []>} : vector<8x64xbf16>, vector<64x32xbf16>, vector<8x32xf32> -> vector<8x32xf32>
    %21 = arith.addf %18, %20 : vector<8x32xf32>
    %c0_14 = arith.constant 0 : index
    %c0_15 = arith.constant 0 : index
    %22 = vector.load %arg10[%c0_14, %c0_15] : memref<8x32xf32, #tpu.memory_space<vmem>>, vector<8x32xf32>
    tpu.vector_store %arg10[%c0_14, %c0_15], %21 {strides = array<i32>} : memref<8x32xf32, #tpu.memory_space<vmem>>, vector<8x32xf32>,
    %c0_i32_16 = arith.constant 0 : i32
    %23 = arith.cmpi eq, %arg2, %c0_i32_16 : i32
    %24 = arith.extui %23 : i1 to i32
    %c0_i32_17 = arith.constant 0 : i32
    %25 = arith.cmpi ne, %24, %c0_i32_17 : i32
    scf.if %25 {
      %c0_18 = arith.constant 0 : index
      %c0_19 = arith.constant 0 : index
      %c0_20 = arith.constant 0 : index
      %26 = vector.load %arg3[%c0_18, %c0_19, %c0_20] : memref<1x8x32xbf16, #tpu.memory_space<vmem>>, vector<1x8x32xbf16>
      %27 = vector.shape_cast %26 : vector<1x8x32xbf16> to vector<8x32xbf16>
      %28 = arith.extf %27 : vector<8x32xbf16> to vector<8x32xf32>
      %c0_21 = arith.constant 0 : index
      %c0_22 = arith.constant 0 : index
      %29 = vector.load %arg10[%c0_21, %c0_22] : memref<8x32xf32, #tpu.memory_space<vmem>>, vector<8x32xf32>
      %30 = arith.addf %28, %29 : vector<8x32xf32>
      %31 = arith.truncf %30 : vector<8x32xf32> to vector<8x32xbf16>
      %c0_23 = arith.constant 0 : index
      %c0_24 = arith.constant 0 : index
      %c0_25 = arith.constant 0 : index
      %32 = vector.load %arg8[%c0_23, %c0_24, %c0_25] : memref<1x8x32xbf16, #tpu.memory_space<vmem>>, vector<1x8x32xbf16>
      %33 = vector.shape_cast %32 : vector<1x8x32xbf16> to vector<8x32xbf16>
      %34 = vector.shape_cast %31 : vector<8x32xbf16> to vector<1x8x32xbf16>
      tpu.vector_store %arg8[%c0_23, %c0_24, %c0_25], %34 {strides = array<i32>} : memref<1x8x32xbf16, #tpu.memory_space<vmem>>, vector<1x8x32xbf16>,
    } else {
    }
    return
  }
  func.func @transform_0(%arg0: i32, %arg1: i32, %arg2: i32) -> (i32, i32, i32) {
    %c0_i32 = arith.constant 0 : i32
    %c0_i32_0 = arith.constant 0 : i32
    return %arg0, %arg1, %c0_i32 : i32, i32, i32
  }
  func.func @transform_1(%arg0: i32, %arg1: i32, %arg2: i32) -> (i32, i32) {
    %c0_i32 = arith.constant 0 : i32
    %c0_i32_0 = arith.constant 0 : i32
    %c0_i32_1 = arith.constant 0 : i32
    return %c0_i32, %c0_i32_0 : i32, i32
  }
  func.func @transform_2(%arg0: i32, %arg1: i32, %arg2: i32) -> (i32, i32) {
    %c0_i32 = arith.constant 0 : i32
    %c0_i32_0 = arith.constant 0 : i32
    %c0_i32_1 = arith.constant 0 : i32
    return %c0_i32, %c0_i32_0 : i32, i32
  }
  func.func @transform_3(%arg0: i32, %arg1: i32, %arg2: i32) -> (i32, i32, i32) {
    %c0_i32 = arith.constant 0 : i32
    %c0_i32_0 = arith.constant 0 : i32
    %c0_i32_1 = arith.constant 0 : i32
    return %c0_i32, %c0_i32_0, %arg2 : i32, i32, i32
  }
  func.func @transform_4(%arg0: i32, %arg1: i32, %arg2: i32) -> (i32, i32) {
    %c0_i32 = arith.constant 0 : i32
    %c0_i32_0 = arith.constant 0 : i32
    return %arg2, %c0_i32 : i32, i32
  }
  func.func @transform_5(%arg0: i32, %arg1: i32, %arg2: i32) -> (i32, i32, i32) {
    %c0_i32 = arith.constant 0 : i32
    %c0_i32_0 = arith.constant 0 : i32
    return %arg0, %arg1, %c0_i32 : i32, i32, i32
  }
}

module attributes {stable_mosaic.version = 11 : i64} {
  func.func @_logits_kernel(%arg0: i32, %arg1: i32, %arg2: i32, %arg3: memref<1x8x32xbf16, #tpu.memory_space<vmem>>, %arg4: memref<1x32xf32, #tpu.memory_space<vmem>>, %arg5: memref<32x64xbf16, #tpu.memory_space<vmem>>, %arg6: memref<1x8x64xf32, #tpu.memory_space<vmem>>, %arg7: memref<8x32xbf16, #tpu.memory_space<vmem>>) attributes {dimension_semantics = [#tpu.dimension_semantics<parallel>, #tpu.dimension_semantics<parallel>, #tpu.dimension_semantics<arbitrary>], iteration_bounds = array<i64: 2, 1, 1>, scalar_prefetch = 0 : i64, scratch_operands = 1 : i64, tpu.core_type = #tpu.core_type<tc>, window_params = [{transform_indices = @transform_0, window_bounds = array<i64: 1, 8, 32>}, {pipeline_mode = #tpu.pipeline_mode<synchronous>, transform_indices = @transform_1, window_bounds = array<i64: 1, 32>}, {transform_indices = @transform_2, window_bounds = array<i64: 32, 64>}, {transform_indices = @transform_3, window_bounds = array<i64: 1, 8, 64>}]} {
    %c0_i32 = arith.constant 0 : i32
    %0 = arith.cmpi eq, %arg2, %c0_i32 : i32
    %1 = arith.extui %0 : i1 to i32
    %c0_i32_0 = arith.constant 0 : i32
    %2 = arith.cmpi ne, %1, %c0_i32_0 : i32
    scf.if %2 {
      %c0_7 = arith.constant 0 : index
      %c0_8 = arith.constant 0 : index
      %c0_9 = arith.constant 0 : index
      %9 = vector.load %arg3[%c0_7, %c0_8, %c0_9] : memref<1x8x32xbf16, #tpu.memory_space<vmem>>, vector<1x8x32xbf16>
      %10 = vector.shape_cast %9 : vector<1x8x32xbf16> to vector<8x32xbf16>
      %11 = arith.extf %10 : vector<8x32xbf16> to vector<8x32xf32>
      %12 = arith.mulf %11, %11 : vector<8x32xf32>
      %cst_10 = arith.constant dense<0.000000e+00> : vector<8xf32>
      %13 = vector.multi_reduction <add>, %12, %cst_10 [1] : vector<8x32xf32> to vector<8xf32>
      %14 = vector.shape_cast %13 : vector<8xf32> to vector<8x1xf32>
      %cst_11 = arith.constant 3.200000e+01 : f32
      %15 = vector.broadcast %cst_11 : f32 to vector<8x1xf32>
      %16 = arith.divf %14, %15 : vector<8x1xf32>
      %cst_12 = arith.constant 1.1920929E-7 : f32
      %17 = vector.broadcast %cst_12 : f32 to vector<8x1xf32>
      %18 = arith.addf %16, %17 : vector<8x1xf32>
      %19 = math.rsqrt %18 : vector<8x1xf32>
      %20 = vector.broadcast %19 : vector<8x1xf32> to vector<8x32xf32>
      %21 = arith.mulf %11, %20 : vector<8x32xf32>
      %c0_13 = arith.constant 0 : index
      %c0_14 = arith.constant 0 : index
      %22 = vector.load %arg4[%c0_13, %c0_14] : memref<1x32xf32, #tpu.memory_space<vmem>>, vector<1x32xf32>
      %23 = vector.shape_cast %22 : vector<1x32xf32> to vector<32xf32>
      %24 = vector.shape_cast %23 : vector<32xf32> to vector<1x32xf32>
      %25 = vector.broadcast %24 : vector<1x32xf32> to vector<8x32xf32>
      %26 = arith.mulf %21, %25 : vector<8x32xf32>
      %27 = arith.truncf %26 : vector<8x32xf32> to vector<8x32xbf16>
      %c0_15 = arith.constant 0 : index
      %c0_16 = arith.constant 0 : index
      %28 = vector.load %arg7[%c0_15, %c0_16] : memref<8x32xbf16, #tpu.memory_space<vmem>>, vector<8x32xbf16>
      tpu.vector_store %arg7[%c0_15, %c0_16], %27 {strides = array<i32>} : memref<8x32xbf16, #tpu.memory_space<vmem>>, vector<8x32xbf16>,
    } else {
    }
    %c0 = arith.constant 0 : index
    %c0_1 = arith.constant 0 : index
    %3 = vector.load %arg7[%c0, %c0_1] : memref<8x32xbf16, #tpu.memory_space<vmem>>, vector<8x32xbf16>
    %c0_2 = arith.constant 0 : index
    %c0_3 = arith.constant 0 : index
    %4 = vector.load %arg5[%c0_2, %c0_3] : memref<32x64xbf16, #tpu.memory_space<vmem>>, vector<32x64xbf16>
    %cst = arith.constant dense<0.000000e+00> : vector<8x64xf32>
    %5 = tpu.matmul %3, %4, %cst {dimension_numbers = #tpu.dot_dimension_numbers<[1], [0], [0], [1], [0, 0, 1, 1], [], []>} : vector<8x32xbf16>, vector<32x64xbf16>, vector<8x64xf32> -> vector<8x64xf32>
    %c0_4 = arith.constant 0 : index
    %c0_5 = arith.constant 0 : index
    %c0_6 = arith.constant 0 : index
    %6 = vector.load %arg6[%c0_4, %c0_5, %c0_6] : memref<1x8x64xf32, #tpu.memory_space<vmem>>, vector<1x8x64xf32>
    %7 = vector.shape_cast %6 : vector<1x8x64xf32> to vector<8x64xf32>
    %8 = vector.shape_cast %5 : vector<8x64xf32> to vector<1x8x64xf32>
    tpu.vector_store %arg6[%c0_4, %c0_5, %c0_6], %8 {strides = array<i32>} : memref<1x8x64xf32, #tpu.memory_space<vmem>>, vector<1x8x64xf32>,
    return
  }
  func.func @transform_0(%arg0: i32, %arg1: i32, %arg2: i32) -> (i32, i32, i32) {
    %c0_i32 = arith.constant 0 : i32
    %c0_i32_0 = arith.constant 0 : i32
    return %arg0, %arg1, %c0_i32 : i32, i32, i32
  }
  func.func @transform_1(%arg0: i32, %arg1: i32, %arg2: i32) -> (i32, i32) {
    %c0_i32 = arith.constant 0 : i32
    %c0_i32_0 = arith.constant 0 : i32
    %c0_i32_1 = arith.constant 0 : i32
    return %c0_i32, %c0_i32_0 : i32, i32
  }
  func.func @transform_2(%arg0: i32, %arg1: i32, %arg2: i32) -> (i32, i32) {
    %c0_i32 = arith.constant 0 : i32
    %c0_i32_0 = arith.constant 0 : i32
    return %c0_i32, %arg2 : i32, i32
  }
  func.func @transform_3(%arg0: i32, %arg1: i32, %arg2: i32) -> (i32, i32, i32) {
    %c0_i32 = arith.constant 0 : i32
    return %arg0, %arg1, %arg2 : i32, i32, i32
  }
}

</mosaic_0001>

<llo_original>
// kernel: tpu_custom_call.1
$region0: #{tpu_custom_call.1}
  #allocation0 [shape = 'u32[]', space=smem, size = 0x4, offset = 0x4, fixed_abs, tag = 'smem constant byte address 0x4 - core index']
  #allocation1 [shape = 'u32[144,128]{1,0:T(1,128)}', space=vmem, size = 0x12000, scoped, tag = 'internal scratch']
  %s0 = inlined_call_operand.hbm [shape: f32[8,128], index: 0, kind: input, shape index: {}]
  %s1 = inlined_call_operand.hbm [shape: f32[16,128], index: 1, kind: output, shape index: {}]
  %s2 = sld [smem:[#allocation0]]
  $region41: #{tpu_custom_call.1} parent=0
    _
  %s4 = ssub.s32 1, %s2
  %s5 = scalar_select 0, %s4, %s2
  $region1: #{tpu_custom_call.1} parent=0
    #allocation2 [shape = 'u8[4096]{0}', space=vmem, size = 0x1000, scoped, tag = 'input window, operand 0, single buffered']
    #allocation3 [shape = 's32[2]{0}', space=sflag, size = 0x8, scoped, tag = 'scoped memory for tpu_custom_call.1']
    #allocation4 [shape = 's32[2]{0}', space=sflag, size = 0x8, scoped, tag = 'scoped memory for tpu_custom_call.1']
    #allocation5 [shape = 'u8[8192]{0}', space=vmem, size = 0x2000, scoped, tag = 'output window, operand 0']
    %6 = vsyncpa [#allocation3], 0
    %7 = vsyncpa [#allocation4], 0
    %s8 = scalar_lea.sflag [#allocation4], 1
    %9 = vsyncpa %s8, 0
    loop: start=0, step=1, limit=4
    $region2: #{tpu_custom_call.1} parent=1 // loop_pre_header
      _
    $region3: #{tpu_custom_call.1} parent=1 // loop_header
      %s11 = sphi 0, %s15
      %p12 = scmp.ge.s32.totalorder %s11, 4
      %s19 = sphi 0, %s19
      %s21 = sphi 0, %s19
      %s22 = sphi 0, %s21
      %s36 = sphi 0, %s22
      %s42 = sphi 0, %s44
      %s45 = sphi 0, %s42
      %s46 = sphi 0, %s45
      %s62 = sphi 0, %s46
    $region4: #{tpu_custom_call.1} parent=1 // loop_header_branch
      %14 = sbr.rel (%p12) target = $region8
    $region5: #{tpu_custom_call.1} parent=1 // loop_body
      %s16 = ssub.s32 %s11, 1
      %s17 = ssub.s32 %s11, 2
      %s18 = sadd.s32 %s11, 1
      %s20 = sadd.s32 %s19, 1
      %p23 = scmp.eq.s32.totalorder %s11, 1
      %p24 = scmp.ne.s32.totalorder %s19, %s21
      %p25 = scmp.eq.s32.totalorder %s11, 0
      %p26 = por %p24, %p25
      %p27 = scmp.ne.s32.totalorder %s19, %s21
      %p28 = scmp.eq.s32.totalorder %s16, 1
      %p29 = por %p27, %p28
      %p30 = scmp.ne.s32.totalorder %s21, %s22
      %p31 = scmp.eq.s32.totalorder %s16, 0
      %p32 = por %p30, %p31
      %p33 = scmp.ne.s32.totalorder %s21, %s22
      %p34 = scmp.eq.s32.totalorder %s17, 1
      %p35 = por %p33, %p34
      %p37 = scmp.ne.s32.totalorder %s22, %s36
      %p38 = scmp.eq.s32.totalorder %s17, 0
      %p39 = por %p37, %p38
      %s40 = ssub.s32 %s11, %s18
      %p41 = scmp.eq.s32.totalorder %s40, 0
      %s43 = sadd.s32 %s42, 1
      %s44 = scalar_select %p41, %s42, %s43
      %p47 = pneg %p41
      %p48 = scmp.eq.s32.totalorder %s11, 1
      %p49 = por %p47, %p48
      %p50 = scmp.ne.s32.totalorder %s42, %s45
      %p51 = scmp.eq.s32.totalorder %s11, 0
      %p52 = por %p50, %p51
      %p53 = scmp.ne.s32.totalorder %s42, %s45
      %p54 = scmp.eq.s32.totalorder %s16, 1
      %p55 = por %p53, %p54
      %p56 = scmp.ne.s32.totalorder %s45, %s46
      %p57 = scmp.eq.s32.totalorder %s16, 0
      %p58 = por %p56, %p57
      %p59 = scmp.ne.s32.totalorder %s45, %s46
      %p60 = scmp.eq.s32.totalorder %s17, 1
      %p61 = por %p59, %p60
      %p63 = scmp.ne.s32.totalorder %s46, %s62
      %p64 = scmp.eq.s32.totalorder %s17, 0
      %p65 = por %p63, %p64
      %p66 = scmp.le.s32.totalorder 1, %s11
      %p67 = scmp.lt.s32.totalorder %s11, 3
      %p68 = pnand %p66, %p67
      %p69 = pneg %p68
      // Predicated region
      $region9: #{tpu_custom_call.1} parent=5 // pred_check
        _
      $region10: #{tpu_custom_call.1} parent=5 // pred_check_branch
        %71 = sbr.rel (%p68) target = $region12
      $region11: #{tpu_custom_call.1} parent=5 // pred_region
        %s72 = ssub.s32 %s11, 1
        // Predicated region
        $region13: #{tpu_custom_call.1} parent=11 // pred_check
          %p73 = pneg %p32
        $region14: #{tpu_custom_call.1} parent=11 // pred_check_branch
          %75 = sbr.rel (%p73) target = $region16
        $region15: #{tpu_custom_call.1} parent=11 // pred_region
          %s77 = ssub.s32 128, 128
          %78 = vsyncadd [#allocation3], %s77
          %s80 = sshll.u32 [#allocation2], 4
          %s81 = int_to_ptr.vmem [resolvable:$true] %s80
          %83 = dma.hbm_to_vmem [thread:$0]  %s0, 128, %s81, [#allocation3]
        $region16: #{tpu_custom_call.1} parent=11 // pred_fallthru
          _
      $region12: #{tpu_custom_call.1} parent=5 // pred_fallthru
        _
      %p84 = scmp.lt.s32.totalorder %s11, 2
      // Predicated region
      $region17: #{tpu_custom_call.1} parent=5 // pred_check
        %p85 = pneg %p84
      $region18: #{tpu_custom_call.1} parent=5 // pred_check_branch
        %87 = sbr.rel (%p85) target = $region20
      $region19: #{tpu_custom_call.1} parent=5 // pred_region
        _
      $region20: #{tpu_custom_call.1} parent=5 // pred_fallthru
        _
      %p88 = scmp.le.s32.totalorder 1, %s11
      %p89 = scmp.lt.s32.totalorder %s11, 3
      %p90 = pnand %p88, %p89
      %p91 = pneg %p90
      // Predicated region
      $region21: #{tpu_custom_call.1} parent=5 // pred_check
        _
      $region22: #{tpu_custom_call.1} parent=5 // pred_check_branch
        %93 = sbr.rel (%p90) target = $region24
      $region23: #{tpu_custom_call.1} parent=5 // pred_region
        %s94 = ssub.s32 %s11, 1
        // Predicated region
        $region25: #{tpu_custom_call.1} parent=23 // pred_check
          %p95 = pneg %p32
        $region26: #{tpu_custom_call.1} parent=23 // pred_check_branch
          %97 = sbr.rel (%p95) target = $region28
        $region27: #{tpu_custom_call.1} parent=23 // pred_region
          %98 = dma.done [#allocation3], 128
        $region28: #{tpu_custom_call.1} parent=23 // pred_fallthru
          _
        %p99 = pneg %p32
        %p100 = pneg %p29
        %p101 = pneg %p58
        %p102 = pneg %p55
        %s103 = sand.u32 %s45, 1
        %s104 = scalar_lea.sflag [#allocation4], %s103
        %s105 = sand.u32 %s45, 1
        %s106 = smul.addr %s105, 8
        %s107 = scalar_lea.vmem [#allocation5], %s106
        %v108 = vld [vmem:[#allocation2] sm:$0xff]
        %v109 = vadd.f32 %v108, 1.0
        %110 = vst [vmem:[%s107] sm:$0xff] %v109
        %s111 = sand.u32 %s45, 1
        %s112 = scalar_lea.sflag [#allocation4], %s111
        %s113 = sand.u32 %s45, 1
        %s114 = smul.addr %s113, 8
        %s115 = scalar_lea.vmem [#allocation5], %s114
        // Predicated region
        $region29: #{tpu_custom_call.1} parent=23 // pred_check
          %p116 = pneg %p55
        $region30: #{tpu_custom_call.1} parent=23 // pred_check_branch
          %118 = sbr.rel (%p116) target = $region32
        $region31: #{tpu_custom_call.1} parent=23 // pred_region
          %s120 = ssub.s32 128, 128
          %121 = vsyncadd %s112, %s120
          %s122 = smul.addr %s16, 128
          %s123 = scalar_lea.hbm %s1, %s122
          %s125 = sshll.u32 %s115, 4
          %s126 = int_to_ptr.vmem [resolvable:$true] %s125
          %128 = dma.vmem_to_hbm [thread:$0]  %s126, 128, %s123, %s112
        $region32: #{tpu_custom_call.1} parent=23 // pred_fallthru
          _
      $region24: #{tpu_custom_call.1} parent=5 // pred_fallthru
        _
      %p129 = scmp.le.s32.totalorder 2, %s11
      // Predicated region
      $region33: #{tpu_custom_call.1} parent=5 // pred_check
        %p130 = pneg %p129
      $region34: #{tpu_custom_call.1} parent=5 // pred_check_branch
        %132 = sbr.rel (%p130) target = $region36
      $region35: #{tpu_custom_call.1} parent=5 // pred_region
        %s133 = ssub.s32 %s11, 2
        // Predicated region
        $region37: #{tpu_custom_call.1} parent=35 // pred_check
          %p134 = pneg %p61
        $region38: #{tpu_custom_call.1} parent=35 // pred_check_branch
          %136 = sbr.rel (%p134) target = $region40
        $region39: #{tpu_custom_call.1} parent=35 // pred_region
          %s137 = sand.u32 %s46, 1
          %s138 = scalar_lea.sflag [#allocation4], %s137
          %s139 = sand.u32 %s46, 1
          %s140 = smul.addr %s139, 8
          %s141 = scalar_lea.vmem [#allocation5], %s140
          %142 = dma.done %s138, 128
        $region40: #{tpu_custom_call.1} parent=35 // pred_fallthru
          _
      $region36: #{tpu_custom_call.1} parent=5 // pred_fallthru
        _
    $region6: #{tpu_custom_call.1} parent=1 // loop_footer
      %s15 = sadd.s32 1, %s11
    $region7: #{tpu_custom_call.1} parent=1 // loop_footer_branch
      %10 = sbr.rel target = $region3
    $region8: #{tpu_custom_call.1} parent=1 // loop_exit
      _
    %143 = vsyncpa [#allocation3], 1
    %s144 = scalar_lea.sflag [#allocation3], 1
    %145 = vsyncpa %s144, 1
    %146 = vsyncpa [#allocation4], 1
    %s147 = scalar_lea.sflag [#allocation4], 1
    %148 = vsyncpa %s147, 1

// kernel: transformer_forward.13
$region0: #{transformer_forward.13}
  #allocation0 [shape = 'u32[]', space=smem, size = 0x4, offset = 0x4, fixed_abs, tag = 'smem constant byte address 0x4 - core index']
  #allocation1 [shape = 'u32[144,128]{1,0:T(1,128)}', space=vmem, size = 0x12000, scoped, tag = 'internal scratch']
  #allocation2 [shape = 'bf16[8,32]{1,0:T(8,128)(2,1)}', space=vmem, size = 0x800, scoped, tag = 'scratch operand']
  %s0 = inlined_call_operand.vmem [shape: bf16[2,8,32], index: 0, kind: input, shape index: {}]
  %s1 = inlined_call_operand.vmem [shape: f32[1,32], index: 1, kind: input, shape index: {}]
  %s2 = inlined_call_operand.vmem [shape: bf16[32,64], index: 2, kind: input, shape index: {}]
  %s3 = inlined_call_operand.hbm [shape: f32[2,8,64], index: 3, kind: output, shape index: {}]
  %s4 = sld [smem:[#allocation0]]
  $region49: #{transformer_forward.13} parent=0
    _
  %s6 = ssub.s32 1, %s4
  %s7 = scalar_select 0, %s6, %s4
  $region1: #{transformer_forward.13} parent=0
    #allocation3 [shape = 'u8[8192]{0}', space=vmem, size = 0x2000, scoped, tag = 'output window, operand 0']
    #allocation4 [shape = 's32[2]{0}', space=sflag, size = 0x8, scoped, tag = 'scoped memory for transformer_forward.13']
    %8 = vsyncpa [#allocation4], 0
    %s9 = scalar_lea.sflag [#allocation4], 1
    %10 = vsyncpa %s9, 0
    loop: start=0, step=1, limit=4
    $region2: #{transformer_forward.13} parent=1 // loop_pre_header
      _
    $region3: #{transformer_forward.13} parent=1 // loop_header
      %s12 = sphi 0, %s16
      %p13 = scmp.ge.s32.totalorder %s12, 4
      %s19 = sphi 0, %s38
      %s20 = sphi 0, %s34
      %s21 = sphi 0, %s30
      %s22 = sphi 0, %s19
      %s23 = sphi 0, %s20
      %s24 = sphi 0, %s21
      %s25 = sphi 0, %s22
      %s26 = sphi 0, %s23
      %s27 = sphi 0, %s24
      %s43 = sphi 0, %s45
      %s46 = sphi 0, %s43
      %s47 = sphi 0, %s46
      %s63 = sphi 0, %s47
      %s67 = sphi 0, %s67
      %s69 = sphi 0, %s67
      %s70 = sphi 0, %s69
      %s84 = sphi 0, %s70
      %s90 = sphi 0, %s92
      %s93 = sphi 0, %s90
      %s94 = sphi 0, %s93
      %s110 = sphi 0, %s94
      %s120 = sphi 0, %s122
      %s123 = sphi 0, %s120
      %s124 = sphi 0, %s123
      %s140 = sphi 0, %s124
    $region4: #{transformer_forward.13} parent=1 // loop_header_branch
      %15 = sbr.rel (%p13) target = $region8
    $region5: #{transformer_forward.13} parent=1 // loop_body
      %s17 = ssub.s32 %s12, 1
      %s18 = ssub.s32 %s12, 2
      %s28 = sadd.s32 1, %s21
      %p29 = scmp.ge.s32.totalorder %s28, 1
      %s30 = scalar_select %p29, 0, %s28
      %s31 = sadd.s32 1, %s20
      %s32 = scalar_select %p29, %s31, %s20
      %p33 = scmp.ge.s32.totalorder %s32, 1
      %s34 = scalar_select %p33, 0, %s32
      %s35 = sadd.s32 1, %s19
      %s36 = scalar_select %p33, %s35, %s19
      %p37 = scmp.ge.s32.totalorder %s36, 2
      %s38 = scalar_select %p37, 0, %s36
      %s39 = ssub.s32 %s19, %s38
      %s40 = ssub.s32 %s20, %s34
      %s41 = sor.u32 %s39, %s40
      %p42 = scmp.eq.s32.totalorder %s41, 0
      %s44 = sadd.s32 %s43, 1
      %s45 = scalar_select %p42, %s43, %s44
      %p48 = pneg %p42
      %p49 = scmp.eq.s32.totalorder %s12, 1
      %p50 = por %p48, %p49
      %p51 = scmp.ne.s32.totalorder %s43, %s46
      %p52 = scmp.eq.s32.totalorder %s12, 0
      %p53 = por %p51, %p52
      %p54 = scmp.ne.s32.totalorder %s43, %s46
      %p55 = scmp.eq.s32.totalorder %s17, 1
      %p56 = por %p54, %p55
      %p57 = scmp.ne.s32.totalorder %s46, %s47
      %p58 = scmp.eq.s32.totalorder %s17, 0
      %p59 = por %p57, %p58
      %p60 = scmp.ne.s32.totalorder %s46, %s47
      %p61 = scmp.eq.s32.totalorder %s18, 1
      %p62 = por %p60, %p61
      %p64 = scmp.ne.s32.totalorder %s47, %s63
      %p65 = scmp.eq.s32.totalorder %s18, 0
      %p66 = por %p64, %p65
      %s68 = sadd.s32 %s67, 1
      %p71 = scmp.eq.s32.totalorder %s12, 1
      %p72 = scmp.ne.s32.totalorder %s67, %s69
      %p73 = scmp.eq.s32.totalorder %s12, 0
      %p74 = por %p72, %p73
      %p75 = scmp.ne.s32.totalorder %s67, %s69
      %p76 = scmp.eq.s32.totalorder %s17, 1
      %p77 = por %p75, %p76
      %p78 = scmp.ne.s32.totalorder %s69, %s70
      %p79 = scmp.eq.s32.totalorder %s17, 0
      %p80 = por %p78, %p79
      %p81 = scmp.ne.s32.totalorder %s69, %s70
      %p82 = scmp.eq.s32.totalorder %s18, 1
      %p83 = por %p81, %p82
      %p85 = scmp.ne.s32.totalorder %s70, %s84
      %p86 = scmp.eq.s32.totalorder %s18, 0
      %p87 = por %p85, %p86
      %s88 = ssub.s32 %s21, %s30
      %p89 = scmp.eq.s32.totalorder %s88, 0
      %s91 = sadd.s32 %s90, 1
      %s92 = scalar_select %p89, %s90, %s91
      %p95 = pneg %p89
      %p96 = scmp.eq.s32.totalorder %s12, 1
      %p97 = por %p95, %p96
      %p98 = scmp.ne.s32.totalorder %s90, %s93
      %p99 = scmp.eq.s32.totalorder %s12, 0
      %p100 = por %p98, %p99
      %p101 = scmp.ne.s32.totalorder %s90, %s93
      %p102 = scmp.eq.s32.totalorder %s17, 1
      %p103 = por %p101, %p102
      %p104 = scmp.ne.s32.totalorder %s93, %s94
      %p105 = scmp.eq.s32.totalorder %s17, 0
      %p106 = por %p104, %p105
      %p107 = scmp.ne.s32.totalorder %s93, %s94
      %p108 = scmp.eq.s32.totalorder %s18, 1
      %p109 = por %p107, %p108
      %p111 = scmp.ne.s32.totalorder %s94, %s110
      %p112 = scmp.eq.s32.totalorder %s18, 0
      %p113 = por %p111, %p112
      %s114 = ssub.s32 %s19, %s38
      %s115 = ssub.s32 %s20, %s34
      %s116 = sor.u32 %s114, %s115
      %s117 = ssub.s32 %s21, %s30
      %s118 = sor.u32 %s116, %s117
      %p119 = scmp.eq.s32.totalorder %s118, 0
      %s121 = sadd.s32 %s120, 1
      %s122 = scalar_select %p119, %s120, %s121
      %p125 = pneg %p119
      %p126 = scmp.eq.s32.totalorder %s12, 1
      %p127 = por %p125, %p126
      %p128 = scmp.ne.s32.totalorder %s120, %s123
      %p129 = scmp.eq.s32.totalorder %s12, 0
      %p130 = por %p128, %p129
      %p131 = scmp.ne.s32.totalorder %s120, %s123
      %p132 = scmp.eq.s32.totalorder %s17, 1
      %p133 = por %p131, %p132
      %p134 = scmp.ne.s32.totalorder %s123, %s124
      %p135 = scmp.eq.s32.totalorder %s17, 0
      %p136 = por %p134, %p135
      %p137 = scmp.ne.s32.totalorder %s123, %s124
      %p138 = scmp.eq.s32.totalorder %s18, 1
      %p139 = por %p137, %p138
      %p141 = scmp.ne.s32.totalorder %s124, %s140
      %p142 = scmp.eq.s32.totalorder %s18, 0
      %p143 = por %p141, %p142
      %p144 = scmp.le.s32.totalorder 1, %s12
      %p145 = scmp.lt.s32.totalorder %s12, 3
      %p146 = pnand %p144, %p145
      %p147 = pneg %p146
      // Predicated region
      $region9: #{transformer_forward.13} parent=5 // pred_check
        _
      $region10: #{transformer_forward.13} parent=5 // pred_check_branch
        %149 = sbr.rel (%p146) target = $region12
      $region11: #{transformer_forward.13} parent=5 // pred_region
        %s150 = ssub.s32 %s12, 1
        // Predicated region
        $region13: #{transformer_forward.13} parent=11 // pred_check
          %p151 = pneg %p80
        $region14: #{transformer_forward.13} parent=11 // pred_check_branch
          %153 = sbr.rel (%p151) target = $region16
        $region15: #{transformer_forward.13} parent=11 // pred_region
          _
        $region16: #{transformer_forward.13} parent=11 // pred_fallthru
          _
        // Predicated region
        $region17: #{transformer_forward.13} parent=11 // pred_check
          %p154 = pneg %p106
        $region18: #{transformer_forward.13} parent=11 // pred_check_branch
          %156 = sbr.rel (%p154) target = $region20
        $region19: #{transformer_forward.13} parent=11 // pred_region
          %p157 = scmp.lt.s32.totalorder %s24, 0
          %s158 = scalar_select %p157, %s24, 0
          %s159 = smul.addr %s158, 4
          %s160 = scalar_lea.vmem %s2, %s159
        $region20: #{transformer_forward.13} parent=11 // pred_fallthru
          _
      $region12: #{transformer_forward.13} parent=5 // pred_fallthru
        _
      %p161 = scmp.lt.s32.totalorder %s12, 2
      // Predicated region
      $region21: #{transformer_forward.13} parent=5 // pred_check
        %p162 = pneg %p161
      $region22: #{transformer_forward.13} parent=5 // pred_check_branch
        %164 = sbr.rel (%p162) target = $region24
      $region23: #{transformer_forward.13} parent=5 // pred_region
        // Predicated region
        $region25: #{transformer_forward.13} parent=23 // pred_check
          %p165 = pneg %p53
        $region26: #{transformer_forward.13} parent=23 // pred_check_branch
          %167 = sbr.rel (%p165) target = $region28
        $region27: #{transformer_forward.13} parent=23 // pred_region
          %p168 = scmp.lt.s32.totalorder %s19, 1
          %s169 = scalar_select %p168, %s19, 1
          %p170 = scmp.lt.s32.totalorder %s20, 0
          %s171 = scalar_select %p170, %s20, 0
          %s172 = sadd.s32 %s171, %s169
          %s173 = smul.addr %s172, 4
          %s174 = scalar_lea.vmem %s0, %s173
        $region28: #{transformer_forward.13} parent=23 // pred_fallthru
          _
      $region24: #{transformer_forward.13} parent=5 // pred_fallthru
        _
      %p175 = scmp.le.s32.totalorder 1, %s12
      %p176 = scmp.lt.s32.totalorder %s12, 3
      %p177 = pnand %p175, %p176
      %p178 = pneg %p177
      // Predicated region
      $region29: #{transformer_forward.13} parent=5 // pred_check
        _
      $region30: #{transformer_forward.13} parent=5 // pred_check_branch
        %180 = sbr.rel (%p177) target = $region32
      $region31: #{transformer_forward.13} parent=5 // pred_region
        %s181 = ssub.s32 %s12, 1
        %p182 = scmp.lt.s32.totalorder %s22, 1
        %s183 = scalar_select %p182, %s22, 1
        %p184 = scmp.lt.s32.totalorder %s23, 0
        %s185 = scalar_select %p184, %s23, 0
        %s186 = sadd.s32 %s185, %s183
        %s187 = smul.addr %s186, 4
        %s188 = scalar_lea.vmem %s0, %s187
        %p189 = pneg %p59
        %p190 = pneg %p56
        %p191 = pneg %p80
        %p192 = pneg %p77
        %p193 = scmp.lt.s32.totalorder %s24, 0
        %s194 = scalar_select %p193, %s24, 0
        %s195 = smul.addr %s194, 4
        %s196 = scalar_lea.vmem %s2, %s195
        %p197 = pneg %p106
        %p198 = pneg %p103
        %p199 = pneg %p136
        %p200 = pneg %p133
        %s201 = sand.u32 %s123, 1
        %s202 = scalar_lea.sflag [#allocation4], %s201
        %s203 = sand.u32 %s123, 1
        %s204 = smul.addr %s203, 8
        %s205 = scalar_lea.vmem [#allocation3], %s204
        %p206 = scmp.lt.s32.totalorder %s22, 1
        %s207 = scalar_select %p206, %s22, 1
        %p208 = scmp.lt.s32.totalorder %s23, 0
        %s209 = scalar_select %p208, %s23, 0
        %s210 = sadd.s32 %s209, %s207
        %s211 = smul.addr %s210, 4
        %s212 = scalar_lea.vmem %s0, %s211
        %p213 = scmp.lt.s32.totalorder %s24, 0
        %s214 = scalar_select %p213, %s24, 0
        %s215 = smul.addr %s214, 4
        %s216 = scalar_lea.vmem %s2, %s215
        %p218 = scmp.eq.s32.totalorder %s24, 0
        // Predicated region
        $region33: #{transformer_forward.13} parent=31 // pred_check
          %p219 = pneg %p218
        $region34: #{transformer_forward.13} parent=31 // pred_check_branch
          %221 = sbr.rel (%p219) target = $region36
        $region35: #{transformer_forward.13} parent=31 // pred_region
          %v222 = vld [vmem:[%s212] sm:$0xf]
          %v223 = vunpack.c.l.bf16 %v222
          %v224 = vmul.f32 %v223, %v223
          %vm225 = vcmask 261120
          %v226 = vsel %vm225, %v224, 0.0
          %227 = vadd.xlane.f32.xlu0 %v226
          %v228 = vpop.xlane.xlu0 %227
          %v229 = vrcp.pop 32.0
          %v230 = vmul.f32 %v228, %v229
          %v231 = vadd.f32 %v230, 1.1920929e-07
          %v232 = vrsqrt.pop %v231
          %v233 = vmul.f32 %v223, %v232
          %v234 = vld [vmem:[%s1] sm:$0x1]
          %v236 = vlaneseq
          %v237 = vshrl.u32 %v236, 7
          %v238 = vsub.s32 0, %v237
          %v239 = vrot.slane %v234, %v238
          %v241 = vmul.f32 %v233, %v239
          %v242 = vpack.c.bf16 %v241, %v241
          %vm243 = vcmask 257024
          %244 = vst.msk [vmem:[#allocation2] sm:$0xf] %vm243, %v242
        $region36: #{transformer_forward.13} parent=31 // pred_fallthru
          _
        %v245 = vld [vmem:[#allocation2] sm:$0xf]
        %v246 = vld [vmem:[%s216] sm:$0xf]
        %v247 = vld [vmem:[%s216 + $0x4] sm:$0xf]
        %v248 = vld [vmem:[%s216 + $0x8] sm:$0xf]
        %v249 = vld [vmem:[%s216 + $0xc] sm:$0xf]
        %v254 = vunpack.c.l.b16 %v246
        %v255 = vunpack.c.l.b16 %v247
        %v256 = vunpack.c.l.b16 %v248
        %v257 = vunpack.c.l.b16 %v249
        %v258 = vpack.c.b16 %v255, %v254
        %v259 = vpack.c.b16 %v257, %v256
        %vm262 = vcmask 261120
        %v264 = vsel %vm262, %v245, 0
        %266 = vmatprep.subr.bf16.mxu0 0
        %267 = vmatpush1.bf16.msra.mxu0 %v258
        %268 = vmatprep.subr.bf16.mxu0 0
        %269 = vmatpush1.bf16.msra.mxu0 %v259
        %270 = vmatprep.subr.bf16.mxu0 0
        %271 = vmatpush1.bf16.msra.mxu0 0
        %272 = vmatprep.subr.bf16.mxu0 0
        %273 = vmatpush1.bf16.msra.mxu0 0
        %274 = vmatprep.subr.bf16.mxu0 0
        %275 = vmatpush1.bf16.msra.mxu0 0
        %276 = vmatprep.subr.bf16.mxu0 0
        %277 = vmatpush1.bf16.msra.mxu0 0
        %278 = vmatprep.subr.bf16.mxu0 0
        %279 = vmatpush1.bf16.msra.mxu0 0
        %280 = vmatprep.subr.bf16.mxu0 0
        %281 = vmatpush1.bf16.msra.mxu0 0
        %282 = vmatprep.subr.bf16.mxu0 0
        %283 = vmatpush1.bf16.msra.mxu0 0
        %284 = vmatprep.subr.bf16.mxu0 0
        %285 = vmatpush1.bf16.msra.mxu0 0
        %286 = vmatprep.subr.bf16.mxu0 0
        %287 = vmatpush1.bf16.msra.mxu0 0
        %288 = vmatprep.subr.bf16.mxu0 0
        %289 = vmatpush1.bf16.msra.mxu0 0
        %290 = vmatprep.subr.bf16.mxu0 0
        %291 = vmatpush1.bf16.msra.mxu0 0
        %292 = vmatprep.subr.bf16.mxu0 0
        %293 = vmatpush1.bf16.msra.mxu0 0
        %294 = vmatprep.subr.bf16.mxu0 0
        %295 = vmatpush1.bf16.msra.mxu0 0
        %296 = vmatprep.subr.bf16.mxu0 0
        %297 = vmatpush1.bf16.msra.mxu0 0
        %298 = vmatprep.mubr.bf16.mxu0 0
        %299 = vmatmul.mubr.bf16.gmra.mrb[0].mxu0 %v264
        %v300 = vpop.f32.mrb[0].mxu0
        %v301 = vadd.f32 0.0, %v300
        %v302 = vpop.f32.mrb[0].mxu0
        %v303 = vpop.f32.mrb[0].mxu0
        %v304 = vpop.f32.mrb[0].mxu0
        %305 = vdwg.mxu0
        %vm306 = vcmask 523264
        %307 = vst.msk [vmem:[%s205] sm:$0xff] %vm306, %v301
        %s308 = sand.u32 %s123, 1
        %s309 = scalar_lea.sflag [#allocation4], %s308
        %s310 = sand.u32 %s123, 1
        %s311 = smul.addr %s310, 8
        %s312 = scalar_lea.vmem [#allocation3], %s311
        // Predicated region
        $region37: #{transformer_forward.13} parent=31 // pred_check
          %p313 = pneg %p133
        $region38: #{transformer_forward.13} parent=31 // pred_check_branch
          %315 = sbr.rel (%p313) target = $region40
        $region39: #{transformer_forward.13} parent=31 // pred_region
          %s317 = ssub.s32 128, 128
          %318 = vsyncadd %s309, %s317
          %s319 = sadd.s32 %s24, %s23
          %s320 = sadd.s32 %s319, %s22
          %s321 = smul.addr %s320, 128
          %s322 = scalar_lea.hbm %s3, %s321
          %s324 = sshll.u32 %s312, 4
          %s325 = int_to_ptr.vmem [resolvable:$true] %s324
          %327 = dma.vmem_to_hbm [thread:$0]  %s325, 128, %s322, %s309
        $region40: #{transformer_forward.13} parent=31 // pred_fallthru
          _
      $region32: #{transformer_forward.13} parent=5 // pred_fallthru
        _
      %p328 = scmp.le.s32.totalorder 2, %s12
      // Predicated region
      $region41: #{transformer_forward.13} parent=5 // pred_check
        %p329 = pneg %p328
      $region42: #{transformer_forward.13} parent=5 // pred_check_branch
        %331 = sbr.rel (%p329) target = $region44
      $region43: #{transformer_forward.13} parent=5 // pred_region
        %s332 = ssub.s32 %s12, 2
        // Predicated region
        $region45: #{transformer_forward.13} parent=43 // pred_check
          %p333 = pneg %p139
        $region46: #{transformer_forward.13} parent=43 // pred_check_branch
          %335 = sbr.rel (%p333) target = $region48
        $region47: #{transformer_forward.13} parent=43 // pred_region
          %s336 = sand.u32 %s124, 1
          %s337 = scalar_lea.sflag [#allocation4], %s336
          %s338 = sand.u32 %s124, 1
          %s339 = smul.addr %s338, 8
          %s340 = scalar_lea.vmem [#allocation3], %s339
          %341 = dma.done %s337, 128
        $region48: #{transformer_forward.13} parent=43 // pred_fallthru
          _
      $region44: #{transformer_forward.13} parent=5 // pred_fallthru
        _
    $region6: #{transformer_forward.13} parent=1 // loop_footer
      %s16 = sadd.s32 1, %s12
    $region7: #{transformer_forward.13} parent=1 // loop_footer_branch
      %11 = sbr.rel target = $region3
    $region8: #{transformer_forward.13} parent=1 // loop_exit
      _
    %342 = vsyncpa [#allocation4], 1
    %s343 = scalar_lea.sflag [#allocation4], 1
    %344 = vsyncpa %s343, 1

// kernel: transformer_forward.9
$region0: #{transformer_forward.9}
  #allocation0 [shape = 'u32[]', space=smem, size = 0x4, offset = 0x4, fixed_abs, tag = 'smem constant byte address 0x4 - core index']
  #allocation1 [shape = 'u32[144,128]{1,0:T(1,128)}', space=vmem, size = 0x12000, scoped, tag = 'internal scratch']
  #allocation2 [shape = 'bf16[8,32]{1,0:T(8,128)(2,1)}', space=vmem, size = 0x800, scoped, tag = 'scratch operand']
  #allocation3 [shape = 'f32[8,32]{1,0:T(8,128)}', space=vmem, size = 0x1000, scoped, tag = 'scratch operand']
  %s0 = inlined_call_operand.vmem [shape: bf16[2,8,32], index: 0, kind: input, shape index: {}]
  %s1 = inlined_call_operand.vmem [shape: f32[1,32], index: 1, kind: input, shape index: {}]
  %s2 = inlined_call_operand.vmem [shape: f32[1,32], index: 2, kind: input, shape index: {}]
  %s3 = inlined_call_operand.vmem [shape: bf16[2,32,64], index: 3, kind: input, shape index: {}]
  %s4 = inlined_call_operand.vmem [shape: bf16[64,32], index: 4, kind: input, shape index: {}]
  %s5 = inlined_call_operand.vmem [shape: bf16[2,8,32], index: 5, kind: output, shape index: {}]
  %s6 = sld [smem:[#allocation0]]
  $region61: #{transformer_forward.9} parent=0
    _
  %s8 = ssub.s32 1, %s6
  %s9 = scalar_select 0, %s8, %s6
  loop: start=0, step=1, limit=4
  $region2: #{transformer_forward.9} parent=0 // loop_pre_header
    _
  $region3: #{transformer_forward.9} parent=0 // loop_header
    %s11 = sphi 0, %s15
    %p12 = scmp.ge.s32.totalorder %s11, 4
    %s18 = sphi 0, %s37
    %s19 = sphi 0, %s33
    %s20 = sphi 0, %s29
    %s21 = sphi 0, %s18
    %s22 = sphi 0, %s19
    %s23 = sphi 0, %s20
    %s24 = sphi 0, %s21
    %s25 = sphi 0, %s22
    %s26 = sphi 0, %s23
    %s42 = sphi 0, %s44
    %s45 = sphi 0, %s42
    %s46 = sphi 0, %s45
    %s62 = sphi 0, %s46
    %s66 = sphi 0, %s66
    %s68 = sphi 0, %s66
    %s69 = sphi 0, %s68
    %s83 = sphi 0, %s69
    %s87 = sphi 0, %s87
    %s89 = sphi 0, %s87
    %s90 = sphi 0, %s89
    %s104 = sphi 0, %s90
    %s110 = sphi 0, %s112
    %s113 = sphi 0, %s110
    %s114 = sphi 0, %s113
    %s130 = sphi 0, %s114
    %s136 = sphi 0, %s138
    %s139 = sphi 0, %s136
    %s140 = sphi 0, %s139
    %s156 = sphi 0, %s140
    %s164 = sphi 0, %s166
    %s167 = sphi 0, %s164
    %s168 = sphi 0, %s167
    %s184 = sphi 0, %s168
  $region4: #{transformer_forward.9} parent=0 // loop_header_branch
    %14 = sbr.rel (%p12) target = $region8
  $region5: #{transformer_forward.9} parent=0 // loop_body
    %s16 = ssub.s32 %s11, 1
    %s17 = ssub.s32 %s11, 2
    %s27 = sadd.s32 1, %s20
    %p28 = scmp.ge.s32.totalorder %s27, 1
    %s29 = scalar_select %p28, 0, %s27
    %s30 = sadd.s32 1, %s19
    %s31 = scalar_select %p28, %s30, %s19
    %p32 = scmp.ge.s32.totalorder %s31, 1
    %s33 = scalar_select %p32, 0, %s31
    %s34 = sadd.s32 1, %s18
    %s35 = scalar_select %p32, %s34, %s18
    %p36 = scmp.ge.s32.totalorder %s35, 2
    %s37 = scalar_select %p36, 0, %s35
    %s38 = ssub.s32 %s18, %s37
    %s39 = ssub.s32 %s19, %s33
    %s40 = sor.u32 %s38, %s39
    %p41 = scmp.eq.s32.totalorder %s40, 0
    %s43 = sadd.s32 %s42, 1
    %s44 = scalar_select %p41, %s42, %s43
    %p47 = pneg %p41
    %p48 = scmp.eq.s32.totalorder %s11, 1
    %p49 = por %p47, %p48
    %p50 = scmp.ne.s32.totalorder %s42, %s45
    %p51 = scmp.eq.s32.totalorder %s11, 0
    %p52 = por %p50, %p51
    %p53 = scmp.ne.s32.totalorder %s42, %s45
    %p54 = scmp.eq.s32.totalorder %s16, 1
    %p55 = por %p53, %p54
    %p56 = scmp.ne.s32.totalorder %s45, %s46
    %p57 = scmp.eq.s32.totalorder %s16, 0
    %p58 = por %p56, %p57
    %p59 = scmp.ne.s32.totalorder %s45, %s46
    %p60 = scmp.eq.s32.totalorder %s17, 1
    %p61 = por %p59, %p60
    %p63 = scmp.ne.s32.totalorder %s46, %s62
    %p64 = scmp.eq.s32.totalorder %s17, 0
    %p65 = por %p63, %p64
    %s67 = sadd.s32 %s66, 1
    %p70 = scmp.eq.s32.totalorder %s11, 1
    %p71 = scmp.ne.s32.totalorder %s66, %s68
    %p72 = scmp.eq.s32.totalorder %s11, 0
    %p73 = por %p71, %p72
    %p74 = scmp.ne.s32.totalorder %s66, %s68
    %p75 = scmp.eq.s32.totalorder %s16, 1
    %p76 = por %p74, %p75
    %p77 = scmp.ne.s32.totalorder %s68, %s69
    %p78 = scmp.eq.s32.totalorder %s16, 0
    %p79 = por %p77, %p78
    %p80 = scmp.ne.s32.totalorder %s68, %s69
    %p81 = scmp.eq.s32.totalorder %s17, 1
    %p82 = por %p80, %p81
    %p84 = scmp.ne.s32.totalorder %s69, %s83
    %p85 = scmp.eq.s32.totalorder %s17, 0
    %p86 = por %p84, %p85
    %s88 = sadd.s32 %s87, 1
    %p91 = scmp.eq.s32.totalorder %s11, 1
    %p92 = scmp.ne.s32.totalorder %s87, %s89
    %p93 = scmp.eq.s32.totalorder %s11, 0
    %p94 = por %p92, %p93
    %p95 = scmp.ne.s32.totalorder %s87, %s89
    %p96 = scmp.eq.s32.totalorder %s16, 1
    %p97 = por %p95, %p96
    %p98 = scmp.ne.s32.totalorder %s89, %s90
    %p99 = scmp.eq.s32.totalorder %s16, 0
    %p100 = por %p98, %p99
    %p101 = scmp.ne.s32.totalorder %s89, %s90
    %p102 = scmp.eq.s32.totalorder %s17, 1
    %p103 = por %p101, %p102
    %p105 = scmp.ne.s32.totalorder %s90, %s104
    %p106 = scmp.eq.s32.totalorder %s17, 0
    %p107 = por %p105, %p106
    %s108 = ssub.s32 %s20, %s29
    %p109 = scmp.eq.s32.totalorder %s108, 0
    %s111 = sadd.s32 %s110, 1
    %s112 = scalar_select %p109, %s110, %s111
    %p115 = pneg %p109
    %p116 = scmp.eq.s32.totalorder %s11, 1
    %p117 = por %p115, %p116
    %p118 = scmp.ne.s32.totalorder %s110, %s113
    %p119 = scmp.eq.s32.totalorder %s11, 0
    %p120 = por %p118, %p119
    %p121 = scmp.ne.s32.totalorder %s110, %s113
    %p122 = scmp.eq.s32.totalorder %s16, 1
    %p123 = por %p121, %p122
    %p124 = scmp.ne.s32.totalorder %s113, %s114
    %p125 = scmp.eq.s32.totalorder %s16, 0
    %p126 = por %p124, %p125
    %p127 = scmp.ne.s32.totalorder %s113, %s114
    %p128 = scmp.eq.s32.totalorder %s17, 1
    %p129 = por %p127, %p128
    %p131 = scmp.ne.s32.totalorder %s114, %s130
    %p132 = scmp.eq.s32.totalorder %s17, 0
    %p133 = por %p131, %p132
    %s134 = ssub.s32 %s20, %s29
    %p135 = scmp.eq.s32.totalorder %s134, 0
    %s137 = sadd.s32 %s136, 1
    %s138 = scalar_select %p135, %s136, %s137
    %p141 = pneg %p135
    %p142 = scmp.eq.s32.totalorder %s11, 1
    %p143 = por %p141, %p142
    %p144 = scmp.ne.s32.totalorder %s136, %s139
    %p145 = scmp.eq.s32.totalorder %s11, 0
    %p146 = por %p144, %p145
    %p147 = scmp.ne.s32.totalorder %s136, %s139
    %p148 = scmp.eq.s32.totalorder %s16, 1
    %p149 = por %p147, %p148
    %p150 = scmp.ne.s32.totalorder %s139, %s140
    %p151 = scmp.eq.s32.totalorder %s16, 0
    %p152 = por %p150, %p151
    %p153 = scmp.ne.s32.totalorder %s139, %s140
    %p154 = scmp.eq.s32.totalorder %s17, 1
    %p155 = por %p153, %p154
    %p157 = scmp.ne.s32.totalorder %s140, %s156
    %p158 = scmp.eq.s32.totalorder %s17, 0
    %p159 = por %p157, %p158
    %s160 = ssub.s32 %s18, %s37
    %s161 = ssub.s32 %s19, %s33
    %s162 = sor.u32 %s160, %s161
    %p163 = scmp.eq.s32.totalorder %s162, 0
    %s165 = sadd.s32 %s164, 1
    %s166 = scalar_select %p163, %s164, %s165
    %p169 = pneg %p163
    %p170 = scmp.eq.s32.totalorder %s11, 1
    %p171 = por %p169, %p170
    %p172 = scmp.ne.s32.totalorder %s164, %s167
    %p173 = scmp.eq.s32.totalorder %s11, 0
    %p174 = por %p172, %p173
    %p175 = scmp.ne.s32.totalorder %s164, %s167
    %p176 = scmp.eq.s32.totalorder %s16, 1
    %p177 = por %p175, %p176
    %p178 = scmp.ne.s32.totalorder %s167, %s168
    %p179 = scmp.eq.s32.totalorder %s16, 0
    %p180 = por %p178, %p179
    %p181 = scmp.ne.s32.totalorder %s167, %s168
    %p182 = scmp.eq.s32.totalorder %s17, 1
    %p183 = por %p181, %p182
    %p185 = scmp.ne.s32.totalorder %s168, %s184
    %p186 = scmp.eq.s32.totalorder %s17, 0
    %p187 = por %p185, %p186
    %p188 = scmp.le.s32.totalorder 1, %s11
    %p189 = scmp.lt.s32.totalorder %s11, 3
    %p190 = pnand %p188, %p189
    %p191 = pneg %p190
    // Predicated region
    $region9: #{transformer_forward.9} parent=5 // pred_check
      _
    $region10: #{transformer_forward.9} parent=5 // pred_check_branch
      %193 = sbr.rel (%p190) target = $region12
    $region11: #{transformer_forward.9} parent=5 // pred_region
      %s194 = ssub.s32 %s11, 1
      // Predicated region
      $region13: #{transformer_forward.9} parent=11 // pred_check
        %p195 = pneg %p79
      $region14: #{transformer_forward.9} parent=11 // pred_check_branch
        %197 = sbr.rel (%p195) target = $region16
      $region15: #{transformer_forward.9} parent=11 // pred_region
        _
      $region16: #{transformer_forward.9} parent=11 // pred_fallthru
        _
      // Predicated region
      $region17: #{transformer_forward.9} parent=11 // pred_check
        %p198 = pneg %p100
      $region18: #{transformer_forward.9} parent=11 // pred_check_branch
        %200 = sbr.rel (%p198) target = $region20
      $region19: #{transformer_forward.9} parent=11 // pred_region
        _
      $region20: #{transformer_forward.9} parent=11 // pred_fallthru
        _
      // Predicated region
      $region21: #{transformer_forward.9} parent=11 // pred_check
        %p201 = pneg %p126
      $region22: #{transformer_forward.9} parent=11 // pred_check_branch
        %203 = sbr.rel (%p201) target = $region24
      $region23: #{transformer_forward.9} parent=11 // pred_region
        %p204 = scmp.lt.s32.totalorder %s23, 0
        %s205 = scalar_select %p204, %s23, 0
        %s206 = smul.addr %s205, 4
        %s207 = scalar_lea.vmem %s3, %s206
      $region24: #{transformer_forward.9} parent=11 // pred_fallthru
        _
      // Predicated region
      $region25: #{transformer_forward.9} parent=11 // pred_check
        %p208 = pneg %p152
      $region26: #{transformer_forward.9} parent=11 // pred_check_branch
        %210 = sbr.rel (%p208) target = $region28
      $region27: #{transformer_forward.9} parent=11 // pred_region
        %s211 = smul.u32 8, %s23
        %p212 = scmp.lt.s32.totalorder %s211, 7
        %s213 = scalar_select %p212, %s211, 7
        %s214 = smul.addr %s213, 4
        %s215 = scalar_lea.vmem %s4, %s214
        %s216 = smul.u32 8, %s23
      $region28: #{transformer_forward.9} parent=11 // pred_fallthru
        _
    $region12: #{transformer_forward.9} parent=5 // pred_fallthru
      _
    %p217 = scmp.lt.s32.totalorder %s11, 2
    // Predicated region
    $region29: #{transformer_forward.9} parent=5 // pred_check
      %p218 = pneg %p217
    $region30: #{transformer_forward.9} parent=5 // pred_check_branch
      %220 = sbr.rel (%p218) target = $region32
    $region31: #{transformer_forward.9} parent=5 // pred_region
      // Predicated region
      $region33: #{transformer_forward.9} parent=31 // pred_check
        %p221 = pneg %p52
      $region34: #{transformer_forward.9} parent=31 // pred_check_branch
        %223 = sbr.rel (%p221) target = $region36
      $region35: #{transformer_forward.9} parent=31 // pred_region
        %p224 = scmp.lt.s32.totalorder %s18, 1
        %s225 = scalar_select %p224, %s18, 1
        %p226 = scmp.lt.s32.totalorder %s19, 0
        %s227 = scalar_select %p226, %s19, 0
        %s228 = sadd.s32 %s227, %s225
        %s229 = smul.addr %s228, 4
        %s230 = scalar_lea.vmem %s0, %s229
      $region36: #{transformer_forward.9} parent=31 // pred_fallthru
        _
    $region32: #{transformer_forward.9} parent=5 // pred_fallthru
      _
    %p231 = scmp.le.s32.totalorder 1, %s11
    %p232 = scmp.lt.s32.totalorder %s11, 3
    %p233 = pnand %p231, %p232
    %p234 = pneg %p233
    // Predicated region
    $region37: #{transformer_forward.9} parent=5 // pred_check
      _
    $region38: #{transformer_forward.9} parent=5 // pred_check_branch
      %236 = sbr.rel (%p233) target = $region40
    $region39: #{transformer_forward.9} parent=5 // pred_region
      %s237 = ssub.s32 %s11, 1
      %p238 = scmp.lt.s32.totalorder %s21, 1
      %s239 = scalar_select %p238, %s21, 1
      %p240 = scmp.lt.s32.totalorder %s22, 0
      %s241 = scalar_select %p240, %s22, 0
      %s242 = sadd.s32 %s241, %s239
      %s243 = smul.addr %s242, 4
      %s244 = scalar_lea.vmem %s0, %s243
      %p245 = pneg %p58
      %p246 = pneg %p55
      %p247 = pneg %p79
      %p248 = pneg %p76
      %p249 = pneg %p100
      %p250 = pneg %p97
      %p251 = scmp.lt.s32.totalorder %s23, 0
      %s252 = scalar_select %p251, %s23, 0
      %s253 = smul.addr %s252, 4
      %s254 = scalar_lea.vmem %s3, %s253
      %p255 = pneg %p126
      %p256 = pneg %p123
      %s257 = smul.u32 8, %s23
      %p258 = scmp.lt.s32.totalorder %s257, 7
      %s259 = scalar_select %p258, %s257, 7
      %s260 = smul.addr %s259, 4
      %s261 = scalar_lea.vmem %s4, %s260
      %p262 = pneg %p152
      %p263 = pneg %p149
      %p264 = pneg %p180
      %p265 = pneg %p177
      %p266 = scmp.lt.s32.totalorder %s21, 1
      %s267 = scalar_select %p266, %s21, 1
      %p268 = scmp.lt.s32.totalorder %s22, 0
      %s269 = scalar_select %p268, %s22, 0
      %s270 = sadd.s32 %s269, %s267
      %s271 = smul.addr %s270, 4
      %s272 = scalar_lea.vmem %s5, %s271
      %p273 = scmp.lt.s32.totalorder %s21, 1
      %s274 = scalar_select %p273, %s21, 1
      %p275 = scmp.lt.s32.totalorder %s22, 0
      %s276 = scalar_select %p275, %s22, 0
      %s277 = sadd.s32 %s276, %s274
      %s278 = smul.addr %s277, 4
      %s279 = scalar_lea.vmem %s0, %s278
      %p280 = scmp.lt.s32.totalorder %s23, 0
      %s281 = scalar_select %p280, %s23, 0
      %s282 = smul.addr %s281, 4
      %s283 = scalar_lea.vmem %s3, %s282
      %s284 = smul.u32 8, %s23
      %p285 = scmp.lt.s32.totalorder %s284, 7
      %s286 = scalar_select %p285, %s284, 7
      %s287 = smul.addr %s286, 4
      %s288 = scalar_lea.vmem %s4, %s287
      %s289 = smul.u32 8, %s23
      %p290 = scmp.lt.s32.totalorder %s21, 1
      %s291 = scalar_select %p290, %s21, 1
      %p292 = scmp.lt.s32.totalorder %s22, 0
      %s293 = scalar_select %p292, %s22, 0
      %s294 = sadd.s32 %s293, %s291
      %s295 = smul.addr %s294, 4
      %s296 = scalar_lea.vmem %s5, %s295
      %p298 = scmp.eq.s32.totalorder %s23, 0
      // Predicated region
      $region41: #{transformer_forward.9} parent=39 // pred_check
        %p299 = pneg %p298
      $region42: #{transformer_forward.9} parent=39 // pred_check_branch
        %301 = sbr.rel (%p299) target = $region44
      $region43: #{transformer_forward.9} parent=39 // pred_region
        %v302 = vld [vmem:[%s279] sm:$0xf]
        %v303 = vunpack.c.l.bf16 %v302
        %vm304 = vcmask 261120
        %v305 = vsel %vm304, %v303, 0.0
        %306 = vadd.xlane.f32.xlu0 %v305
        %v307 = vpop.xlane.xlu0 %306
        %v308 = vrcp.pop 32.0
        %v309 = vmul.f32 %v307, %v308
        %v310 = vsub.f32 %v303, %v309
        %v311 = vmul.f32 %v310, %v310
        %v312 = vsel %vm304, %v311, 0.0
        %313 = vadd.xlane.f32.xlu0 %v312
        %v314 = vpop.xlane.xlu0 %313
        %v315 = vmul.f32 %v314, %v308
        %v316 = vadd.f32 %v315, 1e-05
        %v317 = vrsqrt.pop %v316
        %v318 = vmul.f32 %v310, %v317
        %v319 = vld [vmem:[%s1] sm:$0x1]
        %v321 = vlaneseq
        %v322 = vshrl.u32 %v321, 7
        %v323 = vsub.s32 0, %v322
        %v324 = vrot.slane %v319, %v323
        %v326 = vmul.f32 %v318, %v324
        %v327 = vld [vmem:[%s2] sm:$0x1]
        %v329 = vlaneseq
        %v330 = vshrl.u32 %v329, 7
        %v331 = vsub.s32 0, %v330
        %v332 = vrot.slane %v327, %v331
        %v334 = vadd.f32 %v326, %v332
        %v335 = vpack.c.bf16 %v334, %v334
        %vm336 = vcmask 257024
        %337 = vst.msk [vmem:[#allocation2] sm:$0xf] %vm336, %v335
        %338 = vst.msk [vmem:[#allocation3] sm:$0xff] %vm304, 0.0
      $region44: #{transformer_forward.9} parent=39 // pred_fallthru
        _
      %v339 = vld [vmem:[#allocation2] sm:$0xf]
      %v340 = vld [vmem:[%s283] sm:$0xf]
      %v341 = vld [vmem:[%s283 + $0x4] sm:$0xf]
      %v342 = vld [vmem:[%s283 + $0x8] sm:$0xf]
      %v343 = vld [vmem:[%s283 + $0xc] sm:$0xf]
      %v348 = vunpack.c.l.b16 %v340
      %v349 = vunpack.c.l.b16 %v341
      %v350 = vunpack.c.l.b16 %v342
      %v351 = vunpack.c.l.b16 %v343
      %v352 = vpack.c.b16 %v349, %v348
      %v353 = vpack.c.b16 %v351, %v350
      %vm356 = vcmask 261120
      %v358 = vsel %vm356, %v339, 0
      %360 = vmatprep.subr.bf16.mxu0 0
      %361 = vmatpush1.bf16.msra.mxu0 %v352
      %362 = vmatprep.subr.bf16.mxu0 0
      %363 = vmatpush1.bf16.msra.mxu0 %v353
      %364 = vmatprep.subr.bf16.mxu0 0
      %365 = vmatpush1.bf16.msra.mxu0 0
      %366 = vmatprep.subr.bf16.mxu0 0
      %367 = vmatpush1.bf16.msra.mxu0 0
      %368 = vmatprep.subr.bf16.mxu0 0
      %369 = vmatpush1.bf16.msra.mxu0 0
      %370 = vmatprep.subr.bf16.mxu0 0
      %371 = vmatpush1.bf16.msra.mxu0 0
      %372 = vmatprep.subr.bf16.mxu0 0
      %373 = vmatpush1.bf16.msra.mxu0 0
      %374 = vmatprep.subr.bf16.mxu0 0
      %375 = vmatpush1.bf16.msra.mxu0 0
      %376 = vmatprep.subr.bf16.mxu0 0
      %377 = vmatpush1.bf16.msra.mxu0 0
      %378 = vmatprep.subr.bf16.mxu0 0
      %379 = vmatpush1.bf16.msra.mxu0 0
      %380 = vmatprep.subr.bf16.mxu0 0
      %381 = vmatpush1.bf16.msra.mxu0 0
      %382 = vmatprep.subr.bf16.mxu0 0
      %383 = vmatpush1.bf16.msra.mxu0 0
      %384 = vmatprep.subr.bf16.mxu0 0
      %385 = vmatpush1.bf16.msra.mxu0 0
      %386 = vmatprep.subr.bf16.mxu0 0
      %387 = vmatpush1.bf16.msra.mxu0 0
      %388 = vmatprep.subr.bf16.mxu0 0
      %389 = vmatpush1.bf16.msra.mxu0 0
      %390 = vmatprep.subr.bf16.mxu0 0
      %391 = vmatpush1.bf16.msra.mxu0 0
      %392 = vmatprep.mubr.bf16.mxu0 0
      %393 = vmatmul.mubr.bf16.gmra.mrb[0].mxu0 %v358
      %v394 = vpop.f32.mrb[0].mxu0
      %v395 = vadd.f32 0.0, %v394
      %v396 = vpop.f32.mrb[0].mxu0
      %v397 = vpop.f32.mrb[0].mxu0
      %v398 = vpop.f32.mrb[0].mxu0
      %399 = vdwg.mxu0
      %s400 = scalar_lea.vmem %s283, 16
      %v401 = vld [vmem:[%s400] sm:$0xf]
      %v402 = vld [vmem:[%s400 + $0x4] sm:$0xf]
      %v403 = vld [vmem:[%s400 + $0x8] sm:$0xf]
      %v404 = vld [vmem:[%s400 + $0xc] sm:$0xf]
      %v409 = vunpack.c.l.b16 %v401
      %v410 = vunpack.c.l.b16 %v402
      %v411 = vunpack.c.l.b16 %v403
      %v412 = vunpack.c.l.b16 %v404
      %v413 = vpack.c.b16 %v410, %v409
      %v414 = vpack.c.b16 %v412, %v411
      %417 = vmatprep.subr.bf16.mxu0 0
      %418 = vmatpush1.bf16.msra.mxu0 %v413
      %419 = vmatprep.subr.bf16.mxu0 0
      %420 = vmatpush1.bf16.msra.mxu0 %v414
      %421 = vmatprep.subr.bf16.mxu0 0
      %422 = vmatpush1.bf16.msra.mxu0 0
      %423 = vmatprep.subr.bf16.mxu0 0
      %424 = vmatpush1.bf16.msra.mxu0 0
      %425 = vmatprep.subr.bf16.mxu0 0
      %426 = vmatpush1.bf16.msra.mxu0 0
      %427 = vmatprep.subr.bf16.mxu0 0
      %428 = vmatpush1.bf16.msra.mxu0 0
      %429 = vmatprep.subr.bf16.mxu0 0
      %430 = vmatpush1.bf16.msra.mxu0 0
      %431 = vmatprep.subr.bf16.mxu0 0
      %432 = vmatpush1.bf16.msra.mxu0 0
      %433 = vmatprep.subr.bf16.mxu0 0
      %434 = vmatpush1.bf16.msra.mxu0 0
      %435 = vmatprep.subr.bf16.mxu0 0
      %436 = vmatpush1.bf16.msra.mxu0 0
      %437 = vmatprep.subr.bf16.mxu0 0
      %438 = vmatpush1.bf16.msra.mxu0 0
      %439 = vmatprep.subr.bf16.mxu0 0
      %440 = vmatpush1.bf16.msra.mxu0 0
      %441 = vmatprep.subr.bf16.mxu0 0
      %442 = vmatpush1.bf16.msra.mxu0 0
      %443 = vmatprep.subr.bf16.mxu0 0
      %444 = vmatpush1.bf16.msra.mxu0 0
      %445 = vmatprep.subr.bf16.mxu0 0
      %446 = vmatpush1.bf16.msra.mxu0 0
      %447 = vmatprep.subr.bf16.mxu0 0
      %448 = vmatpush1.bf16.msra.mxu0 0
      %449 = vmatprep.mubr.bf16.mxu0 0
      %450 = vmatmul.mubr.bf16.gmra.mrb[0].mxu0 %v358
      %v451 = vpop.f32.mrb[0].mxu0
      %v452 = vadd.f32 0.0, %v451
      %v453 = vpop.f32.mrb[0].mxu0
      %v454 = vpop.f32.mrb[0].mxu0
      %v455 = vpop.f32.mrb[0].mxu0
      %456 = vdwg.mxu0
      %v457 = vxor.u32 %v395, 2147483648
      %v458 = vmul.f32 %v457, 1.442695
      %v459 = vpow.pop %v458
      %v460 = vadd.f32 %v459, 1.0
      %v461 = vrcp.pop %v460
      %v462 = vmul.f32 1.0, %v461
      %v463 = vmul.f32 %v395, %v462
      %v464 = vmul.f32 %v463, %v452
      %v465 = vpack.c.bf16 %v464, %v464
      %v466 = vld [vmem:[#allocation3] sm:$0xff]
      %v467 = vld [vmem:[%s288] sm:$0xf]
      %v468 = vld [vmem:[%s288 + $0x4] sm:$0xf]
      %v469 = vld [vmem:[%s288 + $0x8] sm:$0xf]
      %v470 = vld [vmem:[%s288 + $0xc] sm:$0xf]
      %v471 = vld [vmem:[%s288 + $0x10] sm:$0xf]
      %v472 = vld [vmem:[%s288 + $0x14] sm:$0xf]
      %v473 = vld [vmem:[%s288 + $0x18] sm:$0xf]
      %v474 = vld [vmem:[%s288 + $0x1c] sm:$0xf]
      %v483 = vunpack.c.l.b16 %v467
      %v484 = vunpack.c.l.b16 %v468
      %v485 = vunpack.c.l.b16 %v469
      %v486 = vunpack.c.l.b16 %v470
      %v487 = vunpack.c.l.b16 %v471
      %v488 = vunpack.c.l.b16 %v472
      %v489 = vunpack.c.l.b16 %v473
      %v490 = vunpack.c.l.b16 %v474
      %v491 = vpack.c.b16 %v484, %v483
      %v492 = vpack.c.b16 %v486, %v485
      %v493 = vpack.c.b16 %v488, %v487
      %v494 = vpack.c.b16 %v490, %v489
      %vm499 = vcmask 523264
      %v501 = vsel %vm499, %v465, 0
      %503 = vmatprep.subr.bf16.mxu0 0
      %504 = vmatpush1.bf16.msra.mxu0 %v491
      %505 = vmatprep.subr.bf16.mxu0 0
      %506 = vmatpush1.bf16.msra.mxu0 %v492
      %507 = vmatprep.subr.bf16.mxu0 0
      %508 = vmatpush1.bf16.msra.mxu0 %v493
      %509 = vmatprep.subr.bf16.mxu0 0
      %510 = vmatpush1.bf16.msra.mxu0 %v494
      %511 = vmatprep.subr.bf16.mxu0 0
      %512 = vmatpush1.bf16.msra.mxu0 0
      %513 = vmatprep.subr.bf16.mxu0 0
      %514 = vmatpush1.bf16.msra.mxu0 0
      %515 = vmatprep.subr.bf16.mxu0 0
      %516 = vmatpush1.bf16.msra.mxu0 0
      %517 = vmatprep.subr.bf16.mxu0 0
      %518 = vmatpush1.bf16.msra.mxu0 0
      %519 = vmatprep.subr.bf16.mxu0 0
      %520 = vmatpush1.bf16.msra.mxu0 0
      %521 = vmatprep.subr.bf16.mxu0 0
      %522 = vmatpush1.bf16.msra.mxu0 0
      %523 = vmatprep.subr.bf16.mxu0 0
      %524 = vmatpush1.bf16.msra.mxu0 0
      %525 = vmatprep.subr.bf16.mxu0 0
      %526 = vmatpush1.bf16.msra.mxu0 0
      %527 = vmatprep.subr.bf16.mxu0 0
      %528 = vmatpush1.bf16.msra.mxu0 0
      %529 = vmatprep.subr.bf16.mxu0 0
      %530 = vmatpush1.bf16.msra.mxu0 0
      %531 = vmatprep.subr.bf16.mxu0 0
      %532 = vmatpush1.bf16.msra.mxu0 0
      %533 = vmatprep.subr.bf16.mxu0 0
      %534 = vmatpush1.bf16.msra.mxu0 0
      %535 = vmatprep.mubr.bf16.mxu0 0
      %536 = vmatmul.mubr.bf16.gmra.mrb[0].mxu0 %v501
      %v537 = vpop.f32.mrb[0].mxu0
      %v538 = vadd.f32 0.0, %v537
      %v539 = vpop.f32.mrb[0].mxu0
      %v540 = vpop.f32.mrb[0].mxu0
      %v541 = vpop.f32.mrb[0].mxu0
      %542 = vdwg.mxu0
      %v543 = vadd.f32 %v466, %v538
      %544 = vst.msk [vmem:[#allocation3] sm:$0xff] %vm356, %v543
      // Predicated region
      $region45: #{transformer_forward.9} parent=39 // pred_check
        %p545 = pneg %p298
      $region46: #{transformer_forward.9} parent=39 // pred_check_branch
        %547 = sbr.rel (%p545) target = $region48
      $region47: #{transformer_forward.9} parent=39 // pred_region
        %v548 = vld [vmem:[%s279] sm:$0xf]
        %v549 = vunpack.c.l.bf16 %v548
        %v550 = vld [vmem:[#allocation3] sm:$0xff]
        %v551 = vadd.f32 %v549, %v550
        %v552 = vpack.c.bf16 %v551, %v551
        %vm553 = vcmask 257024
        %554 = vst.msk [vmem:[%s296] sm:$0xf] %vm553, %v552
      $region48: #{transformer_forward.9} parent=39 // pred_fallthru
        _
      %p555 = scmp.lt.s32.totalorder %s21, 1
      %s556 = scalar_select %p555, %s21, 1
      %p557 = scmp.lt.s32.totalorder %s22, 0
      %s558 = scalar_select %p557, %s22, 0
      %s559 = sadd.s32 %s558, %s556
      %s560 = smul.addr %s559, 4
      %s561 = scalar_lea.vmem %s5, %s560
      // Predicated region
      $region49: #{transformer_forward.9} parent=39 // pred_check
        %p562 = pneg %p177
      $region50: #{transformer_forward.9} parent=39 // pred_check_branch
        %564 = sbr.rel (%p562) target = $region52
      $region51: #{transformer_forward.9} parent=39 // pred_region
        _
      $region52: #{transformer_forward.9} parent=39 // pred_fallthru
        _
    $region40: #{transformer_forward.9} parent=5 // pred_fallthru
      _
    %p565 = scmp.le.s32.totalorder 2, %s11
    // Predicated region
    $region53: #{transformer_forward.9} parent=5 // pred_check
      %p566 = pneg %p565
    $region54: #{transformer_forward.9} parent=5 // pred_check_branch
      %568 = sbr.rel (%p566) target = $region56
    $region55: #{transformer_forward.9} parent=5 // pred_region
      %s569 = ssub.s32 %s11, 2
      // Predicated region
      $region57: #{transformer_forward.9} parent=55 // pred_check
        %p570 = pneg %p183
      $region58: #{transformer_forward.9} parent=55 // pred_check_branch
        %572 = sbr.rel (%p570) target = $region60
      $region59: #{transformer_forward.9} parent=55 // pred_region
        %p573 = scmp.lt.s32.totalorder %s24, 1
        %s574 = scalar_select %p573, %s24, 1
        %p575 = scmp.lt.s32.totalorder %s25, 0
        %s576 = scalar_select %p575, %s25, 0
        %s577 = sadd.s32 %s576, %s574
        %s578 = smul.addr %s577, 4
        %s579 = scalar_lea.vmem %s5, %s578
      $region60: #{transformer_forward.9} parent=55 // pred_fallthru
        _
    $region56: #{transformer_forward.9} parent=5 // pred_fallthru
      _
  $region6: #{transformer_forward.9} parent=0 // loop_footer
    %s15 = sadd.s32 1, %s11
  $region7: #{transformer_forward.9} parent=0 // loop_footer_branch
    %10 = sbr.rel target = $region3
  $region8: #{transformer_forward.9} parent=0 // loop_exit
    _

// kernel: transformer_forward.8
$region0: #{transformer_forward.8}
  #allocation0 [shape = 'u32[]', space=smem, size = 0x4, offset = 0x4, fixed_abs, tag = 'smem constant byte address 0x4 - core index']
  #allocation1 [shape = 'u32[144,128]{1,0:T(1,128)}', space=vmem, size = 0x12000, scoped, tag = 'internal scratch']
  #allocation2 [shape = 'f32[8,4]{1,0:T(8,128)}', space=vmem, size = 0x1000, scoped, tag = 'scratch operand']
  #allocation3 [shape = 'f32[8,4]{1,0:T(8,128)}', space=vmem, size = 0x1000, scoped, tag = 'scratch operand']
  #allocation4 [shape = 'f32[8,32]{1,0:T(8,128)}', space=vmem, size = 0x1000, scoped, tag = 'scratch operand']
  %s0 = inlined_call_operand.vmem [shape: bf16[2,8,32], index: 0, kind: input, shape index: {}]
  %s1 = inlined_call_operand.vmem [shape: bf16[2,8,32], index: 1, kind: input, shape index: {}]
  %s2 = inlined_call_operand.vmem [shape: bf16[2,32,8], index: 2, kind: input, shape index: {}]
  %s3 = inlined_call_operand.vmem [shape: bf16[2,8,32], index: 3, kind: input, shape index: {}]
  %s4 = inlined_call_operand.vmem [shape: bf16[32,32], index: 4, kind: input, shape index: {}]
  %s5 = inlined_call_operand.vmem [shape: bf16[2,8,32], index: 5, kind: output, shape index: {}]
  %s6 = sld [smem:[#allocation0]]
  $region65: #{transformer_forward.8} parent=0
    _
  %s8 = ssub.s32 1, %s6
  %s9 = scalar_select 0, %s8, %s6
  loop: start=0, step=1, limit=4
  $region2: #{transformer_forward.8} parent=0 // loop_pre_header
    _
  $region3: #{transformer_forward.8} parent=0 // loop_header
    %s11 = sphi 0, %s15
    %p12 = scmp.ge.s32.totalorder %s11, 4
    %s18 = sphi 0, %s37
    %s19 = sphi 0, %s33
    %s20 = sphi 0, %s29
    %s21 = sphi 0, %s18
    %s22 = sphi 0, %s19
    %s23 = sphi 0, %s20
    %s24 = sphi 0, %s21
    %s25 = sphi 0, %s22
    %s26 = sphi 0, %s23
    %s42 = sphi 0, %s44
    %s45 = sphi 0, %s42
    %s46 = sphi 0, %s45
    %s62 = sphi 0, %s46
    %s70 = sphi 0, %s72
    %s73 = sphi 0, %s70
    %s74 = sphi 0, %s73
    %s90 = sphi 0, %s74
    %s102 = sphi 0, %s104
    %s105 = sphi 0, %s102
    %s106 = sphi 0, %s105
    %s122 = sphi 0, %s106
    %s134 = sphi 0, %s136
    %s137 = sphi 0, %s134
    %s138 = sphi 0, %s137
    %s154 = sphi 0, %s138
    %s158 = sphi 0, %s158
    %s160 = sphi 0, %s158
    %s161 = sphi 0, %s160
    %s175 = sphi 0, %s161
    %s183 = sphi 0, %s185
    %s186 = sphi 0, %s183
    %s187 = sphi 0, %s186
    %s203 = sphi 0, %s187
  $region4: #{transformer_forward.8} parent=0 // loop_header_branch
    %14 = sbr.rel (%p12) target = $region8
  $region5: #{transformer_forward.8} parent=0 // loop_body
    %s16 = ssub.s32 %s11, 1
    %s17 = ssub.s32 %s11, 2
    %s27 = sadd.s32 1, %s20
    %p28 = scmp.ge.s32.totalorder %s27, 1
    %s29 = scalar_select %p28, 0, %s27
    %s30 = sadd.s32 1, %s19
    %s31 = scalar_select %p28, %s30, %s19
    %p32 = scmp.ge.s32.totalorder %s31, 1
    %s33 = scalar_select %p32, 0, %s31
    %s34 = sadd.s32 1, %s18
    %s35 = scalar_select %p32, %s34, %s18
    %p36 = scmp.ge.s32.totalorder %s35, 2
    %s37 = scalar_select %p36, 0, %s35
    %s38 = ssub.s32 %s18, %s37
    %s39 = ssub.s32 %s19, %s33
    %s40 = sor.u32 %s38, %s39
    %p41 = scmp.eq.s32.totalorder %s40, 0
    %s43 = sadd.s32 %s42, 1
    %s44 = scalar_select %p41, %s42, %s43
    %p47 = pneg %p41
    %p48 = scmp.eq.s32.totalorder %s11, 1
    %p49 = por %p47, %p48
    %p50 = scmp.ne.s32.totalorder %s42, %s45
    %p51 = scmp.eq.s32.totalorder %s11, 0
    %p52 = por %p50, %p51
    %p53 = scmp.ne.s32.totalorder %s42, %s45
    %p54 = scmp.eq.s32.totalorder %s16, 1
    %p55 = por %p53, %p54
    %p56 = scmp.ne.s32.totalorder %s45, %s46
    %p57 = scmp.eq.s32.totalorder %s16, 0
    %p58 = por %p56, %p57
    %p59 = scmp.ne.s32.totalorder %s45, %s46
    %p60 = scmp.eq.s32.totalorder %s17, 1
    %p61 = por %p59, %p60
    %p63 = scmp.ne.s32.totalorder %s46, %s62
    %p64 = scmp.eq.s32.totalorder %s17, 0
    %p65 = por %p63, %p64
    %s66 = ssub.s32 %s18, %s37
    %s67 = ssub.s32 %s19, %s33
    %s68 = sor.u32 %s66, %s67
    %p69 = scmp.eq.s32.totalorder %s68, 0
    %s71 = sadd.s32 %s70, 1
    %s72 = scalar_select %p69, %s70, %s71
    %p75 = pneg %p69
    %p76 = scmp.eq.s32.totalorder %s11, 1
    %p77 = por %p75, %p76
    %p78 = scmp.ne.s32.totalorder %s70, %s73
    %p79 = scmp.eq.s32.totalorder %s11, 0
    %p80 = por %p78, %p79
    %p81 = scmp.ne.s32.totalorder %s70, %s73
    %p82 = scmp.eq.s32.totalorder %s16, 1
    %p83 = por %p81, %p82
    %p84 = scmp.ne.s32.totalorder %s73, %s74
    %p85 = scmp.eq.s32.totalorder %s16, 0
    %p86 = por %p84, %p85
    %p87 = scmp.ne.s32.totalorder %s73, %s74
    %p88 = scmp.eq.s32.totalorder %s17, 1
    %p89 = por %p87, %p88
    %p91 = scmp.ne.s32.totalorder %s74, %s90
    %p92 = scmp.eq.s32.totalorder %s17, 0
    %p93 = por %p91, %p92
    %p94 = scmp.lt.s32.totalorder %s20, %s19
    %s95 = scalar_select %p94, %s20, %s19
    %p96 = scmp.lt.s32.totalorder %s29, %s33
    %s97 = scalar_select %p96, %s29, %s33
    %s98 = ssub.s32 %s18, %s37
    %s99 = ssub.s32 %s95, %s97
    %s100 = sor.u32 %s98, %s99
    %p101 = scmp.eq.s32.totalorder %s100, 0
    %s103 = sadd.s32 %s102, 1
    %s104 = scalar_select %p101, %s102, %s103
    %p107 = pneg %p101
    %p108 = scmp.eq.s32.totalorder %s11, 1
    %p109 = por %p107, %p108
    %p110 = scmp.ne.s32.totalorder %s102, %s105
    %p111 = scmp.eq.s32.totalorder %s11, 0
    %p112 = por %p110, %p111
    %p113 = scmp.ne.s32.totalorder %s102, %s105
    %p114 = scmp.eq.s32.totalorder %s16, 1
    %p115 = por %p113, %p114
    %p116 = scmp.ne.s32.totalorder %s105, %s106
    %p117 = scmp.eq.s32.totalorder %s16, 0
    %p118 = por %p116, %p117
    %p119 = scmp.ne.s32.totalorder %s105, %s106
    %p120 = scmp.eq.s32.totalorder %s17, 1
    %p121 = por %p119, %p120
    %p123 = scmp.ne.s32.totalorder %s106, %s122
    %p124 = scmp.eq.s32.totalorder %s17, 0
    %p125 = por %p123, %p124
    %p126 = scmp.lt.s32.totalorder %s20, %s19
    %s127 = scalar_select %p126, %s20, %s19
    %p128 = scmp.lt.s32.totalorder %s29, %s33
    %s129 = scalar_select %p128, %s29, %s33
    %s130 = ssub.s32 %s18, %s37
    %s131 = ssub.s32 %s127, %s129
    %s132 = sor.u32 %s130, %s131
    %p133 = scmp.eq.s32.totalorder %s132, 0
    %s135 = sadd.s32 %s134, 1
    %s136 = scalar_select %p133, %s134, %s135
    %p139 = pneg %p133
    %p140 = scmp.eq.s32.totalorder %s11, 1
    %p141 = por %p139, %p140
    %p142 = scmp.ne.s32.totalorder %s134, %s137
    %p143 = scmp.eq.s32.totalorder %s11, 0
    %p144 = por %p142, %p143
    %p145 = scmp.ne.s32.totalorder %s134, %s137
    %p146 = scmp.eq.s32.totalorder %s16, 1
    %p147 = por %p145, %p146
    %p148 = scmp.ne.s32.totalorder %s137, %s138
    %p149 = scmp.eq.s32.totalorder %s16, 0
    %p150 = por %p148, %p149
    %p151 = scmp.ne.s32.totalorder %s137, %s138
    %p152 = scmp.eq.s32.totalorder %s17, 1
    %p153 = por %p151, %p152
    %p155 = scmp.ne.s32.totalorder %s138, %s154
    %p156 = scmp.eq.s32.totalorder %s17, 0
    %p157 = por %p155, %p156
    %s159 = sadd.s32 %s158, 1
    %p162 = scmp.eq.s32.totalorder %s11, 1
    %p163 = scmp.ne.s32.totalorder %s158, %s160
    %p164 = scmp.eq.s32.totalorder %s11, 0
    %p165 = por %p163, %p164
    %p166 = scmp.ne.s32.totalorder %s158, %s160
    %p167 = scmp.eq.s32.totalorder %s16, 1
    %p168 = por %p166, %p167
    %p169 = scmp.ne.s32.totalorder %s160, %s161
    %p170 = scmp.eq.s32.totalorder %s16, 0
    %p171 = por %p169, %p170
    %p172 = scmp.ne.s32.totalorder %s160, %s161
    %p173 = scmp.eq.s32.totalorder %s17, 1
    %p174 = por %p172, %p173
    %p176 = scmp.ne.s32.totalorder %s161, %s175
    %p177 = scmp.eq.s32.totalorder %s17, 0
    %p178 = por %p176, %p177
    %s179 = ssub.s32 %s18, %s37
    %s180 = ssub.s32 %s19, %s33
    %s181 = sor.u32 %s179, %s180
    %p182 = scmp.eq.s32.totalorder %s181, 0
    %s184 = sadd.s32 %s183, 1
    %s185 = scalar_select %p182, %s183, %s184
    %p188 = pneg %p182
    %p189 = scmp.eq.s32.totalorder %s11, 1
    %p190 = por %p188, %p189
    %p191 = scmp.ne.s32.totalorder %s183, %s186
    %p192 = scmp.eq.s32.totalorder %s11, 0
    %p193 = por %p191, %p192
    %p194 = scmp.ne.s32.totalorder %s183, %s186
    %p195 = scmp.eq.s32.totalorder %s16, 1
    %p196 = por %p194, %p195
    %p197 = scmp.ne.s32.totalorder %s186, %s187
    %p198 = scmp.eq.s32.totalorder %s16, 0
    %p199 = por %p197, %p198
    %p200 = scmp.ne.s32.totalorder %s186, %s187
    %p201 = scmp.eq.s32.totalorder %s17, 1
    %p202 = por %p200, %p201
    %p204 = scmp.ne.s32.totalorder %s187, %s203
    %p205 = scmp.eq.s32.totalorder %s17, 0
    %p206 = por %p204, %p205
    %p207 = scmp.le.s32.totalorder 1, %s11
    %p208 = scmp.lt.s32.totalorder %s11, 3
    %p209 = pnand %p207, %p208
    %p210 = pneg %p209
    // Predicated region
    $region9: #{transformer_forward.8} parent=5 // pred_check
      _
    $region10: #{transformer_forward.8} parent=5 // pred_check_branch
      %212 = sbr.rel (%p209) target = $region12
    $region11: #{transformer_forward.8} parent=5 // pred_region
      %s213 = ssub.s32 %s11, 1
      // Predicated region
      $region13: #{transformer_forward.8} parent=11 // pred_check
        %p214 = pneg %p171
      $region14: #{transformer_forward.8} parent=11 // pred_check_branch
        %216 = sbr.rel (%p214) target = $region16
      $region15: #{transformer_forward.8} parent=11 // pred_region
        _
      $region16: #{transformer_forward.8} parent=11 // pred_fallthru
        _
    $region12: #{transformer_forward.8} parent=5 // pred_fallthru
      _
    %p217 = scmp.lt.s32.totalorder %s11, 2
    // Predicated region
    $region17: #{transformer_forward.8} parent=5 // pred_check
      %p218 = pneg %p217
    $region18: #{transformer_forward.8} parent=5 // pred_check_branch
      %220 = sbr.rel (%p218) target = $region20
    $region19: #{transformer_forward.8} parent=5 // pred_region
      // Predicated region
      $region21: #{transformer_forward.8} parent=19 // pred_check
        %p221 = pneg %p52
      $region22: #{transformer_forward.8} parent=19 // pred_check_branch
        %223 = sbr.rel (%p221) target = $region24
      $region23: #{transformer_forward.8} parent=19 // pred_region
        %p224 = scmp.lt.s32.totalorder %s18, 1
        %s225 = scalar_select %p224, %s18, 1
        %p226 = scmp.lt.s32.totalorder %s19, 0
        %s227 = scalar_select %p226, %s19, 0
        %s228 = sadd.s32 %s227, %s225
        %s229 = smul.addr %s228, 4
        %s230 = scalar_lea.vmem %s0, %s229
      $region24: #{transformer_forward.8} parent=19 // pred_fallthru
        _
      // Predicated region
      $region25: #{transformer_forward.8} parent=19 // pred_check
        %p231 = pneg %p80
      $region26: #{transformer_forward.8} parent=19 // pred_check_branch
        %233 = sbr.rel (%p231) target = $region28
      $region27: #{transformer_forward.8} parent=19 // pred_region
        %p234 = scmp.lt.s32.totalorder %s18, 1
        %s235 = scalar_select %p234, %s18, 1
        %p236 = scmp.lt.s32.totalorder %s19, 0
        %s237 = scalar_select %p236, %s19, 0
        %s238 = sadd.s32 %s237, %s235
        %s239 = smul.addr %s238, 4
        %s240 = scalar_lea.vmem %s1, %s239
      $region28: #{transformer_forward.8} parent=19 // pred_fallthru
        _
      // Predicated region
      $region29: #{transformer_forward.8} parent=19 // pred_check
        %p241 = pneg %p112
      $region30: #{transformer_forward.8} parent=19 // pred_check_branch
        %243 = sbr.rel (%p241) target = $region32
      $region31: #{transformer_forward.8} parent=19 // pred_region
        %p244 = scmp.lt.s32.totalorder %s20, %s19
        %s245 = scalar_select %p244, %s20, %s19
        %p246 = scmp.lt.s32.totalorder %s18, 1
        %s247 = scalar_select %p246, %s18, 1
        %p248 = scmp.lt.s32.totalorder %s245, 0
        %s249 = scalar_select %p248, %s245, 0
        %s250 = smul.addr %s247, 4
        %s251 = sadd.s32 %s249, %s250
        %s252 = smul.addr %s251, 4
        %s253 = scalar_lea.vmem %s2, %s252
        %p254 = scmp.lt.s32.totalorder %s20, %s19
        %s255 = scalar_select %p254, %s20, %s19
      $region32: #{transformer_forward.8} parent=19 // pred_fallthru
        _
      // Predicated region
      $region33: #{transformer_forward.8} parent=19 // pred_check
        %p256 = pneg %p144
      $region34: #{transformer_forward.8} parent=19 // pred_check_branch
        %258 = sbr.rel (%p256) target = $region36
      $region35: #{transformer_forward.8} parent=19 // pred_region
        %p259 = scmp.lt.s32.totalorder %s20, %s19
        %s260 = scalar_select %p259, %s20, %s19
        %p261 = scmp.lt.s32.totalorder %s18, 1
        %s262 = scalar_select %p261, %s18, 1
        %p263 = scmp.lt.s32.totalorder %s260, 0
        %s264 = scalar_select %p263, %s260, 0
        %s265 = sadd.s32 %s264, %s262
        %s266 = smul.addr %s265, 4
        %s267 = scalar_lea.vmem %s3, %s266
        %p268 = scmp.lt.s32.totalorder %s20, %s19
        %s269 = scalar_select %p268, %s20, %s19
      $region36: #{transformer_forward.8} parent=19 // pred_fallthru
        _
    $region20: #{transformer_forward.8} parent=5 // pred_fallthru
      _
    %p270 = scmp.le.s32.totalorder 1, %s11
    %p271 = scmp.lt.s32.totalorder %s11, 3
    %p272 = pnand %p270, %p271
    %p273 = pneg %p272
    // Predicated region
    $region37: #{transformer_forward.8} parent=5 // pred_check
      _
    $region38: #{transformer_forward.8} parent=5 // pred_check_branch
      %275 = sbr.rel (%p272) target = $region40
    $region39: #{transformer_forward.8} parent=5 // pred_region
      %s276 = ssub.s32 %s11, 1
      %p277 = scmp.lt.s32.totalorder %s21, 1
      %s278 = scalar_select %p277, %s21, 1
      %p279 = scmp.lt.s32.totalorder %s22, 0
      %s280 = scalar_select %p279, %s22, 0
      %s281 = sadd.s32 %s280, %s278
      %s282 = smul.addr %s281, 4
      %s283 = scalar_lea.vmem %s0, %s282
      %p284 = pneg %p58
      %p285 = pneg %p55
      %p286 = scmp.lt.s32.totalorder %s21, 1
      %s287 = scalar_select %p286, %s21, 1
      %p288 = scmp.lt.s32.totalorder %s22, 0
      %s289 = scalar_select %p288, %s22, 0
      %s290 = sadd.s32 %s289, %s287
      %s291 = smul.addr %s290, 4
      %s292 = scalar_lea.vmem %s1, %s291
      %p293 = pneg %p86
      %p294 = pneg %p83
      %p295 = scmp.lt.s32.totalorder %s23, %s22
      %s296 = scalar_select %p295, %s23, %s22
      %p297 = scmp.lt.s32.totalorder %s21, 1
      %s298 = scalar_select %p297, %s21, 1
      %p299 = scmp.lt.s32.totalorder %s296, 0
      %s300 = scalar_select %p299, %s296, 0
      %s301 = smul.addr %s298, 4
      %s302 = sadd.s32 %s300, %s301
      %s303 = smul.addr %s302, 4
      %s304 = scalar_lea.vmem %s2, %s303
      %p305 = pneg %p118
      %p306 = pneg %p115
      %p307 = scmp.lt.s32.totalorder %s23, %s22
      %s308 = scalar_select %p307, %s23, %s22
      %p309 = scmp.lt.s32.totalorder %s21, 1
      %s310 = scalar_select %p309, %s21, 1
      %p311 = scmp.lt.s32.totalorder %s308, 0
      %s312 = scalar_select %p311, %s308, 0
      %s313 = sadd.s32 %s312, %s310
      %s314 = smul.addr %s313, 4
      %s315 = scalar_lea.vmem %s3, %s314
      %p316 = pneg %p150
      %p317 = pneg %p147
      %p318 = pneg %p171
      %p319 = pneg %p168
      %p320 = pneg %p199
      %p321 = pneg %p196
      %p322 = scmp.lt.s32.totalorder %s21, 1
      %s323 = scalar_select %p322, %s21, 1
      %p324 = scmp.lt.s32.totalorder %s22, 0
      %s325 = scalar_select %p324, %s22, 0
      %s326 = sadd.s32 %s325, %s323
      %s327 = smul.addr %s326, 4
      %s328 = scalar_lea.vmem %s5, %s327
      %p329 = scmp.lt.s32.totalorder %s21, 1
      %s330 = scalar_select %p329, %s21, 1
      %p331 = scmp.lt.s32.totalorder %s22, 0
      %s332 = scalar_select %p331, %s22, 0
      %s333 = sadd.s32 %s332, %s330
      %s334 = smul.addr %s333, 4
      %s335 = scalar_lea.vmem %s0, %s334
      %p336 = scmp.lt.s32.totalorder %s21, 1
      %s337 = scalar_select %p336, %s21, 1
      %p338 = scmp.lt.s32.totalorder %s22, 0
      %s339 = scalar_select %p338, %s22, 0
      %s340 = sadd.s32 %s339, %s337
      %s341 = smul.addr %s340, 4
      %s342 = scalar_lea.vmem %s1, %s341
      %p343 = scmp.lt.s32.totalorder %s23, %s22
      %s344 = scalar_select %p343, %s23, %s22
      %p345 = scmp.lt.s32.totalorder %s21, 1
      %s346 = scalar_select %p345, %s21, 1
      %p347 = scmp.lt.s32.totalorder %s344, 0
      %s348 = scalar_select %p347, %s344, 0
      %s349 = smul.addr %s346, 4
      %s350 = sadd.s32 %s348, %s349
      %s351 = smul.addr %s350, 4
      %s352 = scalar_lea.vmem %s2, %s351
      %p353 = scmp.lt.s32.totalorder %s23, %s22
      %s354 = scalar_select %p353, %s23, %s22
      %p355 = scmp.lt.s32.totalorder %s23, %s22
      %s356 = scalar_select %p355, %s23, %s22
      %p357 = scmp.lt.s32.totalorder %s21, 1
      %s358 = scalar_select %p357, %s21, 1
      %p359 = scmp.lt.s32.totalorder %s356, 0
      %s360 = scalar_select %p359, %s356, 0
      %s361 = sadd.s32 %s360, %s358
      %s362 = smul.addr %s361, 4
      %s363 = scalar_lea.vmem %s3, %s362
      %p364 = scmp.lt.s32.totalorder %s23, %s22
      %s365 = scalar_select %p364, %s23, %s22
      %p366 = scmp.lt.s32.totalorder %s21, 1
      %s367 = scalar_select %p366, %s21, 1
      %p368 = scmp.lt.s32.totalorder %s22, 0
      %s369 = scalar_select %p368, %s22, 0
      %s370 = sadd.s32 %s369, %s367
      %s371 = smul.addr %s370, 4
      %s372 = scalar_lea.vmem %s5, %s371
      %p374 = scmp.eq.s32.totalorder %s23, 0
      // Predicated region
      $region41: #{transformer_forward.8} parent=39 // pred_check
        %p375 = pneg %p374
      $region42: #{transformer_forward.8} parent=39 // pred_check_branch
        %377 = sbr.rel (%p375) target = $region44
      $region43: #{transformer_forward.8} parent=39 // pred_region
        %vm378 = vcmask 31744
        %379 = vst.msk [vmem:[#allocation2] sm:$0xff] %vm378, -inf
        %380 = vst.msk [vmem:[#allocation3] sm:$0xff] %vm378, 0.0
        %vm381 = vcmask 261120
        %382 = vst.msk [vmem:[#allocation4] sm:$0xff] %vm381, 0.0
      $region44: #{transformer_forward.8} parent=39 // pred_fallthru
        _
      %p383 = scmp.le.s32.totalorder %s23, %s22
      // Predicated region
      $region45: #{transformer_forward.8} parent=39 // pred_check
        %p384 = pneg %p383
      $region46: #{transformer_forward.8} parent=39 // pred_check_branch
        %386 = sbr.rel (%p384) target = $region48
      $region47: #{transformer_forward.8} parent=39 // pred_region
        %s387 = smul.u32 %s22, 8
        %s388 = smul.u32 %s23, 8
        %v389 = vlaneseq
        %v390 = vshrl.u32 %v389, 7
        %v391 = vstv %s387
        %v392 = vadd.s32 %v391, %v390
        %v393 = vlaneseq
        %v394 = vand.u32 %v393, 127
        %v395 = vstv %s388
        %v396 = vadd.s32 %v395, %v394
        %vm397 = vcmp.ge.s32.totalorder %v392, %v396
        %v398 = vld [vmem:[%s342] sm:$0xf]
        %v399 = vld [vmem:[%s352] sm:$0xf]
        %v400 = vld [vmem:[%s363] sm:$0xf]
        %vm401 = vcmask 64512
        %v403 = vsel %vm401, %v398, 0
        %vm405 = vcmask 1043456
        %v407 = vsel %vm405, %v399, 0
        %409 = vmatprep.subr.bf16.mxu0 0
        %410 = vmatpush1.bf16.msra.mxu0 %v407
        %411 = vmatprep.subr.bf16.mxu0 0
        %412 = vmatpush1.bf16.msra.mxu0 0
        %413 = vmatprep.subr.bf16.mxu0 0
        %414 = vmatpush1.bf16.msra.mxu0 0
        %415 = vmatprep.subr.bf16.mxu0 0
        %416 = vmatpush1.bf16.msra.mxu0 0
        %417 = vmatprep.subr.bf16.mxu0 0
        %418 = vmatpush1.bf16.msra.mxu0 0
        %419 = vmatprep.subr.bf16.mxu0 0
        %420 = vmatpush1.bf16.msra.mxu0 0
        %421 = vmatprep.subr.bf16.mxu0 0
        %422 = vmatpush1.bf16.msra.mxu0 0
        %423 = vmatprep.subr.bf16.mxu0 0
        %424 = vmatpush1.bf16.msra.mxu0 0
        %425 = vmatprep.subr.bf16.mxu0 0
        %426 = vmatpush1.bf16.msra.mxu0 0
        %427 = vmatprep.subr.bf16.mxu0 0
        %428 = vmatpush1.bf16.msra.mxu0 0
        %429 = vmatprep.subr.bf16.mxu0 0
        %430 = vmatpush1.bf16.msra.mxu0 0
        %431 = vmatprep.subr.bf16.mxu0 0
        %432 = vmatpush1.bf16.msra.mxu0 0
        %433 = vmatprep.subr.bf16.mxu0 0
        %434 = vmatpush1.bf16.msra.mxu0 0
        %435 = vmatprep.subr.bf16.mxu0 0
        %436 = vmatpush1.bf16.msra.mxu0 0
        %437 = vmatprep.subr.bf16.mxu0 0
        %438 = vmatpush1.bf16.msra.mxu0 0
        %439 = vmatprep.subr.bf16.mxu0 0
        %440 = vmatpush1.bf16.msra.mxu0 0
        %441 = vmatprep.mubr.bf16.mxu0 0
        %442 = vmatmul.mubr.bf16.gmra.mrb[0].mxu0 %v403
        %v443 = vpop.f32.mrb[0].mxu0
        %v444 = vadd.f32 0.0, %v443
        %v445 = vpop.f32.mrb[0].mxu0
        %v446 = vpop.f32.mrb[0].mxu0
        %v447 = vpop.f32.mrb[0].mxu0
        %448 = vdwg.mxu0
        %v449 = vmul.f32 %v444, 0.35355338
        %v450 = vsel %vm397, %v449, -1e+30
        %v451 = vld [vmem:[#allocation2] sm:$0xff]
        %v452 = vsel %vm401, %v450, -inf
        %453 = vmax.xlane.f32.xlu0 %v452
        %v454 = vpop.xlane.xlu0 %453
        %v455 = vmax.f32 %v451, %v454
        %v456 = vsub.f32 %v451, %v455
        %v457 = vmul.f32 %v456, 1.442695
        %v458 = vpow.pop %v457
        %460 = vset.pattern.permute.xlu0 0
        %461 = vperm.xlu0 %460, %v455
        %v462 = vpop.permute.xlu0 %461
        %v464 = vsub.f32 %v450, %v462
        %v465 = vmul.f32 %v464, 1.442695
        %v466 = vpow.pop %v465
        %v467 = vld [vmem:[#allocation3] sm:$0xff]
        %v468 = vmul.f32 %v458, %v467
        %v469 = vsel %vm401, %v466, 0.0
        %470 = vadd.xlane.f32.xlu0 %v469
        %v471 = vpop.xlane.xlu0 %470
        %v472 = vadd.f32 %v468, %v471
        %vm473 = vcmask 7168
        %474 = vst.msk [vmem:[#allocation3] sm:$0xff] %vm473, %v472
        %v475 = vld [vmem:[#allocation4] sm:$0xff]
        %477 = vset.pattern.permute.xlu0 0
        %478 = vperm.xlu0 %477, %v458
        %v479 = vpop.permute.xlu0 %478
        %v481 = vmul.f32 %v479, %v475
        %v482 = vpack.c.bf16 %v466, %v466
        %v484 = vsel %vm401, %v482, 0
        %v487 = vsel %vm405, %v400, 0
        %489 = vmatprep.subr.bf16.mxu0 0
        %490 = vmatpush1.bf16.msra.mxu0 %v487
        %491 = vmatprep.subr.bf16.mxu0 0
        %492 = vmatpush1.bf16.msra.mxu0 0
        %493 = vmatprep.subr.bf16.mxu0 0
        %494 = vmatpush1.bf16.msra.mxu0 0
        %495 = vmatprep.subr.bf16.mxu0 0
        %496 = vmatpush1.bf16.msra.mxu0 0
        %497 = vmatprep.subr.bf16.mxu0 0
        %498 = vmatpush1.bf16.msra.mxu0 0
        %499 = vmatprep.subr.bf16.mxu0 0
        %500 = vmatpush1.bf16.msra.mxu0 0
        %501 = vmatprep.subr.bf16.mxu0 0
        %502 = vmatpush1.bf16.msra.mxu0 0
        %503 = vmatprep.subr.bf16.mxu0 0
        %504 = vmatpush1.bf16.msra.mxu0 0
        %505 = vmatprep.subr.bf16.mxu0 0
        %506 = vmatpush1.bf16.msra.mxu0 0
        %507 = vmatprep.subr.bf16.mxu0 0
        %508 = vmatpush1.bf16.msra.mxu0 0
        %509 = vmatprep.subr.bf16.mxu0 0
        %510 = vmatpush1.bf16.msra.mxu0 0
        %511 = vmatprep.subr.bf16.mxu0 0
        %512 = vmatpush1.bf16.msra.mxu0 0
        %513 = vmatprep.subr.bf16.mxu0 0
        %514 = vmatpush1.bf16.msra.mxu0 0
        %515 = vmatprep.subr.bf16.mxu0 0
        %516 = vmatpush1.bf16.msra.mxu0 0
        %517 = vmatprep.subr.bf16.mxu0 0
        %518 = vmatpush1.bf16.msra.mxu0 0
        %519 = vmatprep.subr.bf16.mxu0 0
        %520 = vmatpush1.bf16.msra.mxu0 0
        %521 = vmatprep.mubr.bf16.mxu0 0
        %522 = vmatmul.mubr.bf16.gmra.mrb[0].mxu0 %v484
        %v523 = vpop.f32.mrb[0].mxu0
        %v524 = vadd.f32 0.0, %v523
        %v525 = vpop.f32.mrb[0].mxu0
        %v526 = vpop.f32.mrb[0].mxu0
        %v527 = vpop.f32.mrb[0].mxu0
        %528 = vdwg.mxu0
        %v529 = vadd.f32 %v481, %v524
        %530 = vst.msk [vmem:[#allocation4] sm:$0xff] %vm401, %v529
        %531 = vst.msk [vmem:[#allocation2] sm:$0xff] %vm473, %v455
        %v532 = vld [vmem:[%s342] sm:$0xf]
        %v533 = vld [vmem:[%s352 + $0x4] sm:$0xf]
        %v534 = vld [vmem:[%s363] sm:$0xf]
        %v536 = vunpack.c.l.b16 %v532
        %v537 = vpack.c.b16 %v536, %v536
        %538 = vrot.lane.b32.xlu0 %v537, 120
        %v539 = vpop.permute.xlu0 %538
        %v541 = vsel %vm401, %v539, 0
        %v544 = vsel %vm405, %v533, 0
        %546 = vmatprep.subr.bf16.mxu0 0
        %547 = vmatpush1.bf16.msra.mxu0 %v544
        %548 = vmatprep.subr.bf16.mxu0 0
        %549 = vmatpush1.bf16.msra.mxu0 0
        %550 = vmatprep.subr.bf16.mxu0 0
        %551 = vmatpush1.bf16.msra.mxu0 0
        %552 = vmatprep.subr.bf16.mxu0 0
        %553 = vmatpush1.bf16.msra.mxu0 0
        %554 = vmatprep.subr.bf16.mxu0 0
        %555 = vmatpush1.bf16.msra.mxu0 0
        %556 = vmatprep.subr.bf16.mxu0 0
        %557 = vmatpush1.bf16.msra.mxu0 0
        %558 = vmatprep.subr.bf16.mxu0 0
        %559 = vmatpush1.bf16.msra.mxu0 0
        %560 = vmatprep.subr.bf16.mxu0 0
        %561 = vmatpush1.bf16.msra.mxu0 0
        %562 = vmatprep.subr.bf16.mxu0 0
        %563 = vmatpush1.bf16.msra.mxu0 0
        %564 = vmatprep.subr.bf16.mxu0 0
        %565 = vmatpush1.bf16.msra.mxu0 0
        %566 = vmatprep.subr.bf16.mxu0 0
        %567 = vmatpush1.bf16.msra.mxu0 0
        %568 = vmatprep.subr.bf16.mxu0 0
        %569 = vmatpush1.bf16.msra.mxu0 0
        %570 = vmatprep.subr.bf16.mxu0 0
        %571 = vmatpush1.bf16.msra.mxu0 0
        %572 = vmatprep.subr.bf16.mxu0 0
        %573 = vmatpush1.bf16.msra.mxu0 0
        %574 = vmatprep.subr.bf16.mxu0 0
        %575 = vmatpush1.bf16.msra.mxu0 0
        %576 = vmatprep.subr.bf16.mxu0 0
        %577 = vmatpush1.bf16.msra.mxu0 0
        %578 = vmatprep.mubr.bf16.mxu0 0
        %579 = vmatmul.mubr.bf16.gmra.mrb[0].mxu0 %v541
        %v580 = vpop.f32.mrb[0].mxu0
        %v581 = vadd.f32 0.0, %v580
        %v582 = vpop.f32.mrb[0].mxu0
        %v583 = vpop.f32.mrb[0].mxu0
        %v584 = vpop.f32.mrb[0].mxu0
        %585 = vdwg.mxu0
        %v586 = vmul.f32 %v581, 0.35355338
        %v587 = vsel %vm397, %v586, -1e+30
        %v588 = vld [vmem:[#allocation2] sm:$0xff]
        %v589 = vsel %vm401, %v587, -inf
        %590 = vmax.xlane.f32.xlu0 %v589
        %v591 = vpop.xlane.xlu0 %590
        %v592 = vmax.f32 %v588, %v591
        %v593 = vsub.f32 %v588, %v592
        %v594 = vmul.f32 %v593, 1.442695
        %v595 = vpow.pop %v594
        %597 = vset.pattern.permute.xlu0 1
        %598 = vperm.xlu0 %597, %v592
        %v599 = vpop.permute.xlu0 %598
        %v601 = vsub.f32 %v587, %v599
        %v602 = vmul.f32 %v601, 1.442695
        %v603 = vpow.pop %v602
        %v604 = vld [vmem:[#allocation3] sm:$0xff]
        %v605 = vmul.f32 %v595, %v604
        %v606 = vsel %vm401, %v603, 0.0
        %607 = vadd.xlane.f32.xlu0 %v606
        %v608 = vpop.xlane.xlu0 %607
        %v609 = vadd.f32 %v605, %v608
        %vm610 = vcmask 15368
        %611 = vst.msk [vmem:[#allocation3] sm:$0xff] %vm610, %v609
        %v612 = vld [vmem:[#allocation4] sm:$0xff]
        %614 = vset.pattern.permute.xlu0 1
        %615 = vperm.xlu0 %614, %v595
        %v616 = vpop.permute.xlu0 %615
        %v618 = vmul.f32 %v616, %v612
        %v619 = vpack.c.bf16 %v603, %v603
        %v621 = vunpack.c.l.b16 %v534
        %v622 = vpack.c.b16 %v621, %v621
        %623 = vrot.lane.b32.xlu0 %v622, 120
        %v624 = vpop.permute.xlu0 %623
        %v626 = vsel %vm401, %v619, 0
        %v629 = vsel %vm405, %v624, 0
        %631 = vmatprep.subr.bf16.mxu0 0
        %632 = vmatpush1.bf16.msra.mxu0 %v629
        %633 = vmatprep.subr.bf16.mxu0 0
        %634 = vmatpush1.bf16.msra.mxu0 0
        %635 = vmatprep.subr.bf16.mxu0 0
        %636 = vmatpush1.bf16.msra.mxu0 0
        %637 = vmatprep.subr.bf16.mxu0 0
        %638 = vmatpush1.bf16.msra.mxu0 0
        %639 = vmatprep.subr.bf16.mxu0 0
        %640 = vmatpush1.bf16.msra.mxu0 0
        %641 = vmatprep.subr.bf16.mxu0 0
        %642 = vmatpush1.bf16.msra.mxu0 0
        %643 = vmatprep.subr.bf16.mxu0 0
        %644 = vmatpush1.bf16.msra.mxu0 0
        %645 = vmatprep.subr.bf16.mxu0 0
        %646 = vmatpush1.bf16.msra.mxu0 0
        %647 = vmatprep.subr.bf16.mxu0 0
        %648 = vmatpush1.bf16.msra.mxu0 0
        %649 = vmatprep.subr.bf16.mxu0 0
        %650 = vmatpush1.bf16.msra.mxu0 0
        %651 = vmatprep.subr.bf16.mxu0 0
        %652 = vmatpush1.bf16.msra.mxu0 0
        %653 = vmatprep.subr.bf16.mxu0 0
        %654 = vmatpush1.bf16.msra.mxu0 0
        %655 = vmatprep.subr.bf16.mxu0 0
        %656 = vmatpush1.bf16.msra.mxu0 0
        %657 = vmatprep.subr.bf16.mxu0 0
        %658 = vmatpush1.bf16.msra.mxu0 0
        %659 = vmatprep.subr.bf16.mxu0 0
        %660 = vmatpush1.bf16.msra.mxu0 0
        %661 = vmatprep.subr.bf16.mxu0 0
        %662 = vmatpush1.bf16.msra.mxu0 0
        %663 = vmatprep.mubr.bf16.mxu0 0
        %664 = vmatmul.mubr.bf16.gmra.mrb[0].mxu0 %v626
        %v665 = vpop.f32.mrb[0].mxu0
        %v666 = vadd.f32 0.0, %v665
        %v667 = vpop.f32.mrb[0].mxu0
        %v668 = vpop.f32.mrb[0].mxu0
        %v669 = vpop.f32.mrb[0].mxu0
        %670 = vdwg.mxu0
        %672 = vrot.lane.b32.xlu0 %v666, 8
        %v673 = vpop.permute.xlu0 %672
        %v675 = vadd.f32 %v618, %v673
        %vm676 = vcmask 130112
        %677 = vst.msk [vmem:[#allocation4] sm:$0xff] %vm676, %v675
        %678 = vst.msk [vmem:[#allocation2] sm:$0xff] %vm610, %v592
        %v679 = vld [vmem:[%s342] sm:$0xf]
        %v680 = vld [vmem:[%s352 + $0x8] sm:$0xf]
        %v681 = vld [vmem:[%s363] sm:$0xf]
        %v683 = vunpack.c.l.b16 %v679
        %v684 = vpack.c.b16 %v683, %v683
        %685 = vrot.lane.b32.xlu0 %v684, 112
        %v686 = vpop.permute.xlu0 %685
        %v688 = vsel %vm401, %v686, 0
        %v691 = vsel %vm405, %v680, 0
        %693 = vmatprep.subr.bf16.mxu0 0
        %694 = vmatpush1.bf16.msra.mxu0 %v691
        %695 = vmatprep.subr.bf16.mxu0 0
        %696 = vmatpush1.bf16.msra.mxu0 0
        %697 = vmatprep.subr.bf16.mxu0 0
        %698 = vmatpush1.bf16.msra.mxu0 0
        %699 = vmatprep.subr.bf16.mxu0 0
        %700 = vmatpush1.bf16.msra.mxu0 0
        %701 = vmatprep.subr.bf16.mxu0 0
        %702 = vmatpush1.bf16.msra.mxu0 0
        %703 = vmatprep.subr.bf16.mxu0 0
        %704 = vmatpush1.bf16.msra.mxu0 0
        %705 = vmatprep.subr.bf16.mxu0 0
        %706 = vmatpush1.bf16.msra.mxu0 0
        %707 = vmatprep.subr.bf16.mxu0 0
        %708 = vmatpush1.bf16.msra.mxu0 0
        %709 = vmatprep.subr.bf16.mxu0 0
        %710 = vmatpush1.bf16.msra.mxu0 0
        %711 = vmatprep.subr.bf16.mxu0 0
        %712 = vmatpush1.bf16.msra.mxu0 0
        %713 = vmatprep.subr.bf16.mxu0 0
        %714 = vmatpush1.bf16.msra.mxu0 0
        %715 = vmatprep.subr.bf16.mxu0 0
        %716 = vmatpush1.bf16.msra.mxu0 0
        %717 = vmatprep.subr.bf16.mxu0 0
        %718 = vmatpush1.bf16.msra.mxu0 0
        %719 = vmatprep.subr.bf16.mxu0 0
        %720 = vmatpush1.bf16.msra.mxu0 0
        %721 = vmatprep.subr.bf16.mxu0 0
        %722 = vmatpush1.bf16.msra.mxu0 0
        %723 = vmatprep.subr.bf16.mxu0 0
        %724 = vmatpush1.bf16.msra.mxu0 0
        %725 = vmatprep.mubr.bf16.mxu0 0
        %726 = vmatmul.mubr.bf16.gmra.mrb[0].mxu0 %v688
        %v727 = vpop.f32.mrb[0].mxu0
        %v728 = vadd.f32 0.0, %v727
        %v729 = vpop.f32.mrb[0].mxu0
        %v730 = vpop.f32.mrb[0].mxu0
        %v731 = vpop.f32.mrb[0].mxu0
        %732 = vdwg.mxu0
        %v733 = vmul.f32 %v728, 0.35355338
        %v734 = vsel %vm397, %v733, -1e+30
        %v735 = vld [vmem:[#allocation2] sm:$0xff]
        %v736 = vsel %vm401, %v734, -inf
        %737 = vmax.xlane.f32.xlu0 %v736
        %v738 = vpop.xlane.xlu0 %737
        %v739 = vmax.f32 %v735, %v738
        %v740 = vsub.f32 %v735, %v739
        %v741 = vmul.f32 %v740, 1.442695
        %v742 = vpow.pop %v741
        %744 = vset.pattern.permute.xlu0 2
        %745 = vperm.xlu0 %744, %v739
        %v746 = vpop.permute.xlu0 %745
        %v748 = vsub.f32 %v734, %v746
        %v749 = vmul.f32 %v748, 1.442695
        %v750 = vpow.pop %v749
        %v751 = vld [vmem:[#allocation3] sm:$0xff]
        %v752 = vmul.f32 %v742, %v751
        %v753 = vsel %vm401, %v750, 0.0
        %754 = vadd.xlane.f32.xlu0 %v753
        %v755 = vpop.xlane.xlu0 %754
        %v756 = vadd.f32 %v752, %v755
        %vm757 = vcmask 23568
        %758 = vst.msk [vmem:[#allocation3] sm:$0xff] %vm757, %v756
        %v759 = vld [vmem:[#allocation4] sm:$0xff]
        %761 = vset.pattern.permute.xlu0 2
        %762 = vperm.xlu0 %761, %v742
        %v763 = vpop.permute.xlu0 %762
        %v765 = vmul.f32 %v763, %v759
        %v766 = vpack.c.bf16 %v750, %v750
        %v768 = vunpack.c.l.b16 %v681
        %v769 = vpack.c.b16 %v768, %v768
        %770 = vrot.lane.b32.xlu0 %v769, 112
        %v771 = vpop.permute.xlu0 %770
        %v773 = vsel %vm401, %v766, 0
        %v776 = vsel %vm405, %v771, 0
        %778 = vmatprep.subr.bf16.mxu0 0
        %779 = vmatpush1.bf16.msra.mxu0 %v776
        %780 = vmatprep.subr.bf16.mxu0 0
        %781 = vmatpush1.bf16.msra.mxu0 0
        %782 = vmatprep.subr.bf16.mxu0 0
        %783 = vmatpush1.bf16.msra.mxu0 0
        %784 = vmatprep.subr.bf16.mxu0 0
        %785 = vmatpush1.bf16.msra.mxu0 0
        %786 = vmatprep.subr.bf16.mxu0 0
        %787 = vmatpush1.bf16.msra.mxu0 0
        %788 = vmatprep.subr.bf16.mxu0 0
        %789 = vmatpush1.bf16.msra.mxu0 0
        %790 = vmatprep.subr.bf16.mxu0 0
        %791 = vmatpush1.bf16.msra.mxu0 0
        %792 = vmatprep.subr.bf16.mxu0 0
        %793 = vmatpush1.bf16.msra.mxu0 0
        %794 = vmatprep.subr.bf16.mxu0 0
        %795 = vmatpush1.bf16.msra.mxu0 0
        %796 = vmatprep.subr.bf16.mxu0 0
        %797 = vmatpush1.bf16.msra.mxu0 0
        %798 = vmatprep.subr.bf16.mxu0 0
        %799 = vmatpush1.bf16.msra.mxu0 0
        %800 = vmatprep.subr.bf16.mxu0 0
        %801 = vmatpush1.bf16.msra.mxu0 0
        %802 = vmatprep.subr.bf16.mxu0 0
        %803 = vmatpush1.bf16.msra.mxu0 0
        %804 = vmatprep.subr.bf16.mxu0 0
        %805 = vmatpush1.bf16.msra.mxu0 0
        %806 = vmatprep.subr.bf16.mxu0 0
        %807 = vmatpush1.bf16.msra.mxu0 0
        %808 = vmatprep.subr.bf16.mxu0 0
        %809 = vmatpush1.bf16.msra.mxu0 0
        %810 = vmatprep.mubr.bf16.mxu0 0
        %811 = vmatmul.mubr.bf16.gmra.mrb[0].mxu0 %v773
        %v812 = vpop.f32.mrb[0].mxu0
        %v813 = vadd.f32 0.0, %v812
        %v814 = vpop.f32.mrb[0].mxu0
        %v815 = vpop.f32.mrb[0].mxu0
        %v816 = vpop.f32.mrb[0].mxu0
        %817 = vdwg.mxu0
        %819 = vrot.lane.b32.xlu0 %v813, 16
        %v820 = vpop.permute.xlu0 %819
        %v822 = vadd.f32 %v765, %v820
        %vm823 = vcmask 195712
        %824 = vst.msk [vmem:[#allocation4] sm:$0xff] %vm823, %v822
        %825 = vst.msk [vmem:[#allocation2] sm:$0xff] %vm757, %v739
        %v826 = vld [vmem:[%s342] sm:$0xf]
        %v827 = vld [vmem:[%s352 + $0xc] sm:$0xf]
        %v828 = vld [vmem:[%s363] sm:$0xf]
        %v830 = vunpack.c.l.b16 %v826
        %v831 = vpack.c.b16 %v830, %v830
        %832 = vrot.lane.b32.xlu0 %v831, 104
        %v833 = vpop.permute.xlu0 %832
        %v835 = vsel %vm401, %v833, 0
        %v838 = vsel %vm405, %v827, 0
        %840 = vmatprep.subr.bf16.mxu0 0
        %841 = vmatpush1.bf16.msra.mxu0 %v838
        %842 = vmatprep.subr.bf16.mxu0 0
        %843 = vmatpush1.bf16.msra.mxu0 0
        %844 = vmatprep.subr.bf16.mxu0 0
        %845 = vmatpush1.bf16.msra.mxu0 0
        %846 = vmatprep.subr.bf16.mxu0 0
        %847 = vmatpush1.bf16.msra.mxu0 0
        %848 = vmatprep.subr.bf16.mxu0 0
        %849 = vmatpush1.bf16.msra.mxu0 0
        %850 = vmatprep.subr.bf16.mxu0 0
        %851 = vmatpush1.bf16.msra.mxu0 0
        %852 = vmatprep.subr.bf16.mxu0 0
        %853 = vmatpush1.bf16.msra.mxu0 0
        %854 = vmatprep.subr.bf16.mxu0 0
        %855 = vmatpush1.bf16.msra.mxu0 0
        %856 = vmatprep.subr.bf16.mxu0 0
        %857 = vmatpush1.bf16.msra.mxu0 0
        %858 = vmatprep.subr.bf16.mxu0 0
        %859 = vmatpush1.bf16.msra.mxu0 0
        %860 = vmatprep.subr.bf16.mxu0 0
        %861 = vmatpush1.bf16.msra.mxu0 0
        %862 = vmatprep.subr.bf16.mxu0 0
        %863 = vmatpush1.bf16.msra.mxu0 0
        %864 = vmatprep.subr.bf16.mxu0 0
        %865 = vmatpush1.bf16.msra.mxu0 0
        %866 = vmatprep.subr.bf16.mxu0 0
        %867 = vmatpush1.bf16.msra.mxu0 0
        %868 = vmatprep.subr.bf16.mxu0 0
        %869 = vmatpush1.bf16.msra.mxu0 0
        %870 = vmatprep.subr.bf16.mxu0 0
        %871 = vmatpush1.bf16.msra.mxu0 0
        %872 = vmatprep.mubr.bf16.mxu0 0
        %873 = vmatmul.mubr.bf16.gmra.mrb[0].mxu0 %v835
        %v874 = vpop.f32.mrb[0].mxu0
        %v875 = vadd.f32 0.0, %v874
        %v876 = vpop.f32.mrb[0].mxu0
        %v877 = vpop.f32.mrb[0].mxu0
        %v878 = vpop.f32.mrb[0].mxu0
        %879 = vdwg.mxu0
        %v880 = vmul.f32 %v875, 0.35355338
        %v881 = vsel %vm397, %v880, -1e+30
        %v882 = vld [vmem:[#allocation2] sm:$0xff]
        %v883 = vsel %vm401, %v881, -inf
        %884 = vmax.xlane.f32.xlu0 %v883
        %v885 = vpop.xlane.xlu0 %884
        %v886 = vmax.f32 %v882, %v885
        %v887 = vsub.f32 %v882, %v886
        %v888 = vmul.f32 %v887, 1.442695
        %v889 = vpow.pop %v888
        %891 = vset.pattern.permute.xlu0 3
        %892 = vperm.xlu0 %891, %v886
        %v893 = vpop.permute.xlu0 %892
        %v895 = vsub.f32 %v881, %v893
        %v896 = vmul.f32 %v895, 1.442695
        %v897 = vpow.pop %v896
        %v898 = vld [vmem:[#allocation3] sm:$0xff]
        %v899 = vmul.f32 %v889, %v898
        %v900 = vsel %vm401, %v897, 0.0
        %901 = vadd.xlane.f32.xlu0 %v900
        %v902 = vpop.xlane.xlu0 %901
        %v903 = vadd.f32 %v899, %v902
        %vm904 = vcmask 31768
        %905 = vst.msk [vmem:[#allocation3] sm:$0xff] %vm904, %v903
        %v906 = vld [vmem:[#allocation4] sm:$0xff]
        %908 = vset.pattern.permute.xlu0 3
        %909 = vperm.xlu0 %908, %v889
        %v910 = vpop.permute.xlu0 %909
        %v912 = vmul.f32 %v910, %v906
        %v913 = vpack.c.bf16 %v897, %v897
        %v915 = vunpack.c.l.b16 %v828
        %v916 = vpack.c.b16 %v915, %v915
        %917 = vrot.lane.b32.xlu0 %v916, 104
        %v918 = vpop.permute.xlu0 %917
        %v920 = vsel %vm401, %v913, 0
        %v923 = vsel %vm405, %v918, 0
        %925 = vmatprep.subr.bf16.mxu0 0
        %926 = vmatpush1.bf16.msra.mxu0 %v923
        %927 = vmatprep.subr.bf16.mxu0 0
        %928 = vmatpush1.bf16.msra.mxu0 0
        %929 = vmatprep.subr.bf16.mxu0 0
        %930 = vmatpush1.bf16.msra.mxu0 0
        %931 = vmatprep.subr.bf16.mxu0 0
        %932 = vmatpush1.bf16.msra.mxu0 0
        %933 = vmatprep.subr.bf16.mxu0 0
        %934 = vmatpush1.bf16.msra.mxu0 0
        %935 = vmatprep.subr.bf16.mxu0 0
        %936 = vmatpush1.bf16.msra.mxu0 0
        %937 = vmatprep.subr.bf16.mxu0 0
        %938 = vmatpush1.bf16.msra.mxu0 0
        %939 = vmatprep.subr.bf16.mxu0 0
        %940 = vmatpush1.bf16.msra.mxu0 0
        %941 = vmatprep.subr.bf16.mxu0 0
        %942 = vmatpush1.bf16.msra.mxu0 0
        %943 = vmatprep.subr.bf16.mxu0 0
        %944 = vmatpush1.bf16.msra.mxu0 0
        %945 = vmatprep.subr.bf16.mxu0 0
        %946 = vmatpush1.bf16.msra.mxu0 0
        %947 = vmatprep.subr.bf16.mxu0 0
        %948 = vmatpush1.bf16.msra.mxu0 0
        %949 = vmatprep.subr.bf16.mxu0 0
        %950 = vmatpush1.bf16.msra.mxu0 0
        %951 = vmatprep.subr.bf16.mxu0 0
        %952 = vmatpush1.bf16.msra.mxu0 0
        %953 = vmatprep.subr.bf16.mxu0 0
        %954 = vmatpush1.bf16.msra.mxu0 0
        %955 = vmatprep.subr.bf16.mxu0 0
        %956 = vmatpush1.bf16.msra.mxu0 0
        %957 = vmatprep.mubr.bf16.mxu0 0
        %958 = vmatmul.mubr.bf16.gmra.mrb[0].mxu0 %v920
        %v959 = vpop.f32.mrb[0].mxu0
        %v960 = vadd.f32 0.0, %v959
        %v961 = vpop.f32.mrb[0].mxu0
        %v962 = vpop.f32.mrb[0].mxu0
        %v963 = vpop.f32.mrb[0].mxu0
        %964 = vdwg.mxu0
        %966 = vrot.lane.b32.xlu0 %v960, 24
        %v967 = vpop.permute.xlu0 %966
        %v969 = vadd.f32 %v912, %v967
        %vm970 = vcmask 261312
        %971 = vst.msk [vmem:[#allocation4] sm:$0xff] %vm970, %v969
        %972 = vst.msk [vmem:[#allocation2] sm:$0xff] %vm904, %v886
      $region48: #{transformer_forward.8} parent=39 // pred_fallthru
        _
      // Predicated region
      $region49: #{transformer_forward.8} parent=39 // pred_check
        %p973 = pneg %p374
      $region50: #{transformer_forward.8} parent=39 // pred_check_branch
        %975 = sbr.rel (%p973) target = $region52
      $region51: #{transformer_forward.8} parent=39 // pred_region
        %v976 = vld [vmem:[#allocation4] sm:$0xff]
        %v977 = vld [vmem:[#allocation3] sm:$0xff]
        %v978 = vrcp.pop %v977
        %980 = vset.pattern.permute.xlu0 0
        %981 = vperm.xlu0 %980, %v978
        %v982 = vpop.permute.xlu0 %981
        %v984 = vmul.f32 %v976, %v982
        %vm985 = vcmask 64512
        %986 = vst.msk [vmem:[#allocation4] sm:$0xff] %vm985, %v984
        %v987 = vld [vmem:[#allocation4] sm:$0xff]
        %v988 = vld [vmem:[#allocation3] sm:$0xff]
        %v989 = vrcp.pop %v988
        %991 = vset.pattern.permute.xlu0 1
        %992 = vperm.xlu0 %991, %v989
        %v993 = vpop.permute.xlu0 %992
        %v995 = vmul.f32 %v987, %v993
        %vm996 = vcmask 130112
        %997 = vst.msk [vmem:[#allocation4] sm:$0xff] %vm996, %v995
        %v998 = vld [vmem:[#allocation4] sm:$0xff]
        %v999 = vld [vmem:[#allocation3] sm:$0xff]
        %v1000 = vrcp.pop %v999
        %1002 = vset.pattern.permute.xlu0 2
        %1003 = vperm.xlu0 %1002, %v1000
        %v1004 = vpop.permute.xlu0 %1003
        %v1006 = vmul.f32 %v998, %v1004
        %vm1007 = vcmask 195712
        %1008 = vst.msk [vmem:[#allocation4] sm:$0xff] %vm1007, %v1006
        %v1009 = vld [vmem:[#allocation4] sm:$0xff]
        %v1010 = vld [vmem:[#allocation3] sm:$0xff]
        %v1011 = vrcp.pop %v1010
        %1013 = vset.pattern.permute.xlu0 3
        %1014 = vperm.xlu0 %1013, %v1011
        %v1015 = vpop.permute.xlu0 %1014
        %v1017 = vmul.f32 %v1009, %v1015
        %vm1018 = vcmask 261312
        %1019 = vst.msk [vmem:[#allocation4] sm:$0xff] %vm1018, %v1017
        %v1020 = vld [vmem:[#allocation4] sm:$0xff]
        %v1021 = vpack.c.bf16 %v1020, %v1020
        %v1022 = vld [vmem:[%s4] sm:$0xf]
        %v1023 = vld [vmem:[%s4 + $0x4] sm:$0xf]
        %v1024 = vld [vmem:[%s4 + $0x8] sm:$0xf]
        %v1025 = vld [vmem:[%s4 + $0xc] sm:$0xf]
        %v1030 = vunpack.c.l.b16 %v1022
        %v1031 = vunpack.c.l.b16 %v1023
        %v1032 = vunpack.c.l.b16 %v1024
        %v1033 = vunpack.c.l.b16 %v1025
        %v1034 = vpack.c.b16 %v1031, %v1030
        %v1035 = vpack.c.b16 %v1033, %v1032
        %vm1038 = vcmask 261120
        %v1040 = vsel %vm1038, %v1021, 0
        %1042 = vmatprep.subr.bf16.mxu0 0
        %1043 = vmatpush1.bf16.msra.mxu0 %v1034
        %1044 = vmatprep.subr.bf16.mxu0 0
        %1045 = vmatpush1.bf16.msra.mxu0 %v1035
        %1046 = vmatprep.subr.bf16.mxu0 0
        %1047 = vmatpush1.bf16.msra.mxu0 0
        %1048 = vmatprep.subr.bf16.mxu0 0
        %1049 = vmatpush1.bf16.msra.mxu0 0
        %1050 = vmatprep.subr.bf16.mxu0 0
        %1051 = vmatpush1.bf16.msra.mxu0 0
        %1052 = vmatprep.subr.bf16.mxu0 0
        %1053 = vmatpush1.bf16.msra.mxu0 0
        %1054 = vmatprep.subr.bf16.mxu0 0
        %1055 = vmatpush1.bf16.msra.mxu0 0
        %1056 = vmatprep.subr.bf16.mxu0 0
        %1057 = vmatpush1.bf16.msra.mxu0 0
        %1058 = vmatprep.subr.bf16.mxu0 0
        %1059 = vmatpush1.bf16.msra.mxu0 0
        %1060 = vmatprep.subr.bf16.mxu0 0
        %1061 = vmatpush1.bf16.msra.mxu0 0
        %1062 = vmatprep.subr.bf16.mxu0 0
        %1063 = vmatpush1.bf16.msra.mxu0 0
        %1064 = vmatprep.subr.bf16.mxu0 0
        %1065 = vmatpush1.bf16.msra.mxu0 0
        %1066 = vmatprep.subr.bf16.mxu0 0
        %1067 = vmatpush1.bf16.msra.mxu0 0
        %1068 = vmatprep.subr.bf16.mxu0 0
        %1069 = vmatpush1.bf16.msra.mxu0 0
        %1070 = vmatprep.subr.bf16.mxu0 0
        %1071 = vmatpush1.bf16.msra.mxu0 0
        %1072 = vmatprep.subr.bf16.mxu0 0
        %1073 = vmatpush1.bf16.msra.mxu0 0
        %1074 = vmatprep.mubr.bf16.mxu0 0
        %1075 = vmatmul.mubr.bf16.gmra.mrb[0].mxu0 %v1040
        %v1076 = vpop.f32.mrb[0].mxu0
        %v1077 = vadd.f32 0.0, %v1076
        %v1078 = vpop.f32.mrb[0].mxu0
        %v1079 = vpop.f32.mrb[0].mxu0
        %v1080 = vpop.f32.mrb[0].mxu0
        %1081 = vdwg.mxu0
        %v1082 = vld [vmem:[%s335] sm:$0xf]
        %v1083 = vunpack.c.l.bf16 %v1082
        %v1084 = vadd.f32 %v1083, %v1077
        %v1085 = vpack.c.bf16 %v1084, %v1084
        %vm1086 = vcmask 257024
        %1087 = vst.msk [vmem:[%s372] sm:$0xf] %vm1086, %v1085
      $region52: #{transformer_forward.8} parent=39 // pred_fallthru
        _
      %p1088 = scmp.lt.s32.totalorder %s21, 1
      %s1089 = scalar_select %p1088, %s21, 1
      %p1090 = scmp.lt.s32.totalorder %s22, 0
      %s1091 = scalar_select %p1090, %s22, 0
      %s1092 = sadd.s32 %s1091, %s1089
      %s1093 = smul.addr %s1092, 4
      %s1094 = scalar_lea.vmem %s5, %s1093
      // Predicated region
      $region53: #{transformer_forward.8} parent=39 // pred_check
        %p1095 = pneg %p196
      $region54: #{transformer_forward.8} parent=39 // pred_check_branch
        %1097 = sbr.rel (%p1095) target = $region56
      $region55: #{transformer_forward.8} parent=39 // pred_region
        _
      $region56: #{transformer_forward.8} parent=39 // pred_fallthru
        _
    $region40: #{transformer_forward.8} parent=5 // pred_fallthru
      _
    %p1098 = scmp.le.s32.totalorder 2, %s11
    // Predicated region
    $region57: #{transformer_forward.8} parent=5 // pred_check
      %p1099 = pneg %p1098
    $region58: #{transformer_forward.8} parent=5 // pred_check_branch
      %1101 = sbr.rel (%p1099) target = $region60
    $region59: #{transformer_forward.8} parent=5 // pred_region
      %s1102 = ssub.s32 %s11, 2
      // Predicated region
      $region61: #{transformer_forward.8} parent=59 // pred_check
        %p1103 = pneg %p202
      $region62: #{transformer_forward.8} parent=59 // pred_check_branch
        %1105 = sbr.rel (%p1103) target = $region64
      $region63: #{transformer_forward.8} parent=59 // pred_region
        %p1106 = scmp.lt.s32.totalorder %s24, 1
        %s1107 = scalar_select %p1106, %s24, 1
        %p1108 = scmp.lt.s32.totalorder %s25, 0
        %s1109 = scalar_select %p1108, %s25, 0
        %s1110 = sadd.s32 %s1109, %s1107
        %s1111 = smul.addr %s1110, 4
        %s1112 = scalar_lea.vmem %s5, %s1111
      $region64: #{transformer_forward.8} parent=59 // pred_fallthru
        _
    $region60: #{transformer_forward.8} parent=5 // pred_fallthru
      _
  $region6: #{transformer_forward.8} parent=0 // loop_footer
    %s15 = sadd.s32 1, %s11
  $region7: #{transformer_forward.8} parent=0 // loop_footer_branch
    %10 = sbr.rel target = $region3
  $region8: #{transformer_forward.8} parent=0 // loop_exit
    _

// kernel: transformer_forward.7
$region0: #{transformer_forward.7}
  #allocation0 [shape = 'u32[]', space=smem, size = 0x4, offset = 0x4, fixed_abs, tag = 'smem constant byte address 0x4 - core index']
  #allocation1 [shape = 'u32[144,128]{1,0:T(1,128)}', space=vmem, size = 0x12000, scoped, tag = 'internal scratch']
  %s0 = inlined_call_operand.vmem [shape: bf16[2,8,32], index: 0, kind: input, shape index: {}]
  %s1 = inlined_call_operand.vmem [shape: f32[2,8,8], index: 1, kind: input, shape index: {}]
  %s2 = inlined_call_operand.vmem [shape: f32[2,8,8], index: 2, kind: input, shape index: {}]
  %s3 = inlined_call_operand.vmem [shape: f32[1,32], index: 3, kind: input, shape index: {}]
  %s4 = inlined_call_operand.vmem [shape: f32[1,32], index: 4, kind: input, shape index: {}]
  %s5 = inlined_call_operand.vmem [shape: bf16[32,96], index: 5, kind: input, shape index: {}]
  %s6 = inlined_call_operand.vmem [shape: bf16[2,8,32], index: 6, kind: output, shape index: {0}]
  %s7 = inlined_call_operand.vmem [shape: bf16[2,32,8], index: 7, kind: output, shape index: {1}]
  %s8 = inlined_call_operand.vmem [shape: bf16[2,8,32], index: 8, kind: output, shape index: {2}]
  %9 = xla_tuple %s6, %s7, %s8
  %s10 = sld [smem:[#allocation0]]
  $region73: #{transformer_forward.7} parent=0
    _
  %s12 = ssub.s32 1, %s10
  %s13 = scalar_select 0, %s12, %s10
  loop: start=0, step=1, limit=4
  $region2: #{transformer_forward.7} parent=0 // loop_pre_header
    _
  $region3: #{transformer_forward.7} parent=0 // loop_header
    %s15 = sphi 0, %s19
    %p16 = scmp.ge.s32.totalorder %s15, 4
    %s22 = sphi 0, %s34
    %s23 = sphi 0, %s30
    %s24 = sphi 0, %s22
    %s25 = sphi 0, %s23
    %s26 = sphi 0, %s24
    %s27 = sphi 0, %s25
    %s39 = sphi 0, %s41
    %s42 = sphi 0, %s39
    %s43 = sphi 0, %s42
    %s59 = sphi 0, %s43
    %s67 = sphi 0, %s69
    %s70 = sphi 0, %s67
    %s71 = sphi 0, %s70
    %s87 = sphi 0, %s71
    %s95 = sphi 0, %s97
    %s98 = sphi 0, %s95
    %s99 = sphi 0, %s98
    %s115 = sphi 0, %s99
    %s119 = sphi 0, %s119
    %s121 = sphi 0, %s119
    %s122 = sphi 0, %s121
    %s136 = sphi 0, %s122
    %s140 = sphi 0, %s140
    %s142 = sphi 0, %s140
    %s143 = sphi 0, %s142
    %s157 = sphi 0, %s143
    %s161 = sphi 0, %s161
    %s163 = sphi 0, %s161
    %s164 = sphi 0, %s163
    %s178 = sphi 0, %s164
    %s186 = sphi 0, %s188
    %s189 = sphi 0, %s186
    %s190 = sphi 0, %s189
    %s206 = sphi 0, %s190
    %s214 = sphi 0, %s216
    %s217 = sphi 0, %s214
    %s218 = sphi 0, %s217
    %s234 = sphi 0, %s218
    %s242 = sphi 0, %s244
    %s245 = sphi 0, %s242
    %s246 = sphi 0, %s245
    %s262 = sphi 0, %s246
  $region4: #{transformer_forward.7} parent=0 // loop_header_branch
    %18 = sbr.rel (%p16) target = $region8
  $region5: #{transformer_forward.7} parent=0 // loop_body
    %s20 = ssub.s32 %s15, 1
    %s21 = ssub.s32 %s15, 2
    %s28 = sadd.s32 1, %s23
    %p29 = scmp.ge.s32.totalorder %s28, 1
    %s30 = scalar_select %p29, 0, %s28
    %s31 = sadd.s32 1, %s22
    %s32 = scalar_select %p29, %s31, %s22
    %p33 = scmp.ge.s32.totalorder %s32, 2
    %s34 = scalar_select %p33, 0, %s32
    %s35 = ssub.s32 %s22, %s34
    %s36 = ssub.s32 %s23, %s30
    %s37 = sor.u32 %s35, %s36
    %p38 = scmp.eq.s32.totalorder %s37, 0
    %s40 = sadd.s32 %s39, 1
    %s41 = scalar_select %p38, %s39, %s40
    %p44 = pneg %p38
    %p45 = scmp.eq.s32.totalorder %s15, 1
    %p46 = por %p44, %p45
    %p47 = scmp.ne.s32.totalorder %s39, %s42
    %p48 = scmp.eq.s32.totalorder %s15, 0
    %p49 = por %p47, %p48
    %p50 = scmp.ne.s32.totalorder %s39, %s42
    %p51 = scmp.eq.s32.totalorder %s20, 1
    %p52 = por %p50, %p51
    %p53 = scmp.ne.s32.totalorder %s42, %s43
    %p54 = scmp.eq.s32.totalorder %s20, 0
    %p55 = por %p53, %p54
    %p56 = scmp.ne.s32.totalorder %s42, %s43
    %p57 = scmp.eq.s32.totalorder %s21, 1
    %p58 = por %p56, %p57
    %p60 = scmp.ne.s32.totalorder %s43, %s59
    %p61 = scmp.eq.s32.totalorder %s21, 0
    %p62 = por %p60, %p61
    %s63 = ssub.s32 %s22, %s34
    %s64 = ssub.s32 %s23, %s30
    %s65 = sor.u32 %s63, %s64
    %p66 = scmp.eq.s32.totalorder %s65, 0
    %s68 = sadd.s32 %s67, 1
    %s69 = scalar_select %p66, %s67, %s68
    %p72 = pneg %p66
    %p73 = scmp.eq.s32.totalorder %s15, 1
    %p74 = por %p72, %p73
    %p75 = scmp.ne.s32.totalorder %s67, %s70
    %p76 = scmp.eq.s32.totalorder %s15, 0
    %p77 = por %p75, %p76
    %p78 = scmp.ne.s32.totalorder %s67, %s70
    %p79 = scmp.eq.s32.totalorder %s20, 1
    %p80 = por %p78, %p79
    %p81 = scmp.ne.s32.totalorder %s70, %s71
    %p82 = scmp.eq.s32.totalorder %s20, 0
    %p83 = por %p81, %p82
    %p84 = scmp.ne.s32.totalorder %s70, %s71
    %p85 = scmp.eq.s32.totalorder %s21, 1
    %p86 = por %p84, %p85
    %p88 = scmp.ne.s32.totalorder %s71, %s87
    %p89 = scmp.eq.s32.totalorder %s21, 0
    %p90 = por %p88, %p89
    %s91 = ssub.s32 %s22, %s34
    %s92 = ssub.s32 %s23, %s30
    %s93 = sor.u32 %s91, %s92
    %p94 = scmp.eq.s32.totalorder %s93, 0
    %s96 = sadd.s32 %s95, 1
    %s97 = scalar_select %p94, %s95, %s96
    %p100 = pneg %p94
    %p101 = scmp.eq.s32.totalorder %s15, 1
    %p102 = por %p100, %p101
    %p103 = scmp.ne.s32.totalorder %s95, %s98
    %p104 = scmp.eq.s32.totalorder %s15, 0
    %p105 = por %p103, %p104
    %p106 = scmp.ne.s32.totalorder %s95, %s98
    %p107 = scmp.eq.s32.totalorder %s20, 1
    %p108 = por %p106, %p107
    %p109 = scmp.ne.s32.totalorder %s98, %s99
    %p110 = scmp.eq.s32.totalorder %s20, 0
    %p111 = por %p109, %p110
    %p112 = scmp.ne.s32.totalorder %s98, %s99
    %p113 = scmp.eq.s32.totalorder %s21, 1
    %p114 = por %p112, %p113
    %p116 = scmp.ne.s32.totalorder %s99, %s115
    %p117 = scmp.eq.s32.totalorder %s21, 0
    %p118 = por %p116, %p117
    %s120 = sadd.s32 %s119, 1
    %p123 = scmp.eq.s32.totalorder %s15, 1
    %p124 = scmp.ne.s32.totalorder %s119, %s121
    %p125 = scmp.eq.s32.totalorder %s15, 0
    %p126 = por %p124, %p125
    %p127 = scmp.ne.s32.totalorder %s119, %s121
    %p128 = scmp.eq.s32.totalorder %s20, 1
    %p129 = por %p127, %p128
    %p130 = scmp.ne.s32.totalorder %s121, %s122
    %p131 = scmp.eq.s32.totalorder %s20, 0
    %p132 = por %p130, %p131
    %p133 = scmp.ne.s32.totalorder %s121, %s122
    %p134 = scmp.eq.s32.totalorder %s21, 1
    %p135 = por %p133, %p134
    %p137 = scmp.ne.s32.totalorder %s122, %s136
    %p138 = scmp.eq.s32.totalorder %s21, 0
    %p139 = por %p137, %p138
    %s141 = sadd.s32 %s140, 1
    %p144 = scmp.eq.s32.totalorder %s15, 1
    %p145 = scmp.ne.s32.totalorder %s140, %s142
    %p146 = scmp.eq.s32.totalorder %s15, 0
    %p147 = por %p145, %p146
    %p148 = scmp.ne.s32.totalorder %s140, %s142
    %p149 = scmp.eq.s32.totalorder %s20, 1
    %p150 = por %p148, %p149
    %p151 = scmp.ne.s32.totalorder %s142, %s143
    %p152 = scmp.eq.s32.totalorder %s20, 0
    %p153 = por %p151, %p152
    %p154 = scmp.ne.s32.totalorder %s142, %s143
    %p155 = scmp.eq.s32.totalorder %s21, 1
    %p156 = por %p154, %p155
    %p158 = scmp.ne.s32.totalorder %s143, %s157
    %p159 = scmp.eq.s32.totalorder %s21, 0
    %p160 = por %p158, %p159
    %s162 = sadd.s32 %s161, 1
    %p165 = scmp.eq.s32.totalorder %s15, 1
    %p166 = scmp.ne.s32.totalorder %s161, %s163
    %p167 = scmp.eq.s32.totalorder %s15, 0
    %p168 = por %p166, %p167
    %p169 = scmp.ne.s32.totalorder %s161, %s163
    %p170 = scmp.eq.s32.totalorder %s20, 1
    %p171 = por %p169, %p170
    %p172 = scmp.ne.s32.totalorder %s163, %s164
    %p173 = scmp.eq.s32.totalorder %s20, 0
    %p174 = por %p172, %p173
    %p175 = scmp.ne.s32.totalorder %s163, %s164
    %p176 = scmp.eq.s32.totalorder %s21, 1
    %p177 = por %p175, %p176
    %p179 = scmp.ne.s32.totalorder %s164, %s178
    %p180 = scmp.eq.s32.totalorder %s21, 0
    %p181 = por %p179, %p180
    %s182 = ssub.s32 %s22, %s34
    %s183 = ssub.s32 %s23, %s30
    %s184 = sor.u32 %s182, %s183
    %p185 = scmp.eq.s32.totalorder %s184, 0
    %s187 = sadd.s32 %s186, 1
    %s188 = scalar_select %p185, %s186, %s187
    %p191 = pneg %p185
    %p192 = scmp.eq.s32.totalorder %s15, 1
    %p193 = por %p191, %p192
    %p194 = scmp.ne.s32.totalorder %s186, %s189
    %p195 = scmp.eq.s32.totalorder %s15, 0
    %p196 = por %p194, %p195
    %p197 = scmp.ne.s32.totalorder %s186, %s189
    %p198 = scmp.eq.s32.totalorder %s20, 1
    %p199 = por %p197, %p198
    %p200 = scmp.ne.s32.totalorder %s189, %s190
    %p201 = scmp.eq.s32.totalorder %s20, 0
    %p202 = por %p200, %p201
    %p203 = scmp.ne.s32.totalorder %s189, %s190
    %p204 = scmp.eq.s32.totalorder %s21, 1
    %p205 = por %p203, %p204
    %p207 = scmp.ne.s32.totalorder %s190, %s206
    %p208 = scmp.eq.s32.totalorder %s21, 0
    %p209 = por %p207, %p208
    %s210 = ssub.s32 %s22, %s34
    %s211 = ssub.s32 %s23, %s30
    %s212 = sor.u32 %s210, %s211
    %p213 = scmp.eq.s32.totalorder %s212, 0
    %s215 = sadd.s32 %s214, 1
    %s216 = scalar_select %p213, %s214, %s215
    %p219 = pneg %p213
    %p220 = scmp.eq.s32.totalorder %s15, 1
    %p221 = por %p219, %p220
    %p222 = scmp.ne.s32.totalorder %s214, %s217
    %p223 = scmp.eq.s32.totalorder %s15, 0
    %p224 = por %p222, %p223
    %p225 = scmp.ne.s32.totalorder %s214, %s217
    %p226 = scmp.eq.s32.totalorder %s20, 1
    %p227 = por %p225, %p226
    %p228 = scmp.ne.s32.totalorder %s217, %s218
    %p229 = scmp.eq.s32.totalorder %s20, 0
    %p230 = por %p228, %p229
    %p231 = scmp.ne.s32.totalorder %s217, %s218
    %p232 = scmp.eq.s32.totalorder %s21, 1
    %p233 = por %p231, %p232
    %p235 = scmp.ne.s32.totalorder %s218, %s234
    %p236 = scmp.eq.s32.totalorder %s21, 0
    %p237 = por %p235, %p236
    %s238 = ssub.s32 %s22, %s34
    %s239 = ssub.s32 %s23, %s30
    %s240 = sor.u32 %s238, %s239
    %p241 = scmp.eq.s32.totalorder %s240, 0
    %s243 = sadd.s32 %s242, 1
    %s244 = scalar_select %p241, %s242, %s243
    %p247 = pneg %p241
    %p248 = scmp.eq.s32.totalorder %s15, 1
    %p249 = por %p247, %p248
    %p250 = scmp.ne.s32.totalorder %s242, %s245
    %p251 = scmp.eq.s32.totalorder %s15, 0
    %p252 = por %p250, %p251
    %p253 = scmp.ne.s32.totalorder %s242, %s245
    %p254 = scmp.eq.s32.totalorder %s20, 1
    %p255 = por %p253, %p254
    %p256 = scmp.ne.s32.totalorder %s245, %s246
    %p257 = scmp.eq.s32.totalorder %s20, 0
    %p258 = por %p256, %p257
    %p259 = scmp.ne.s32.totalorder %s245, %s246
    %p260 = scmp.eq.s32.totalorder %s21, 1
    %p261 = por %p259, %p260
    %p263 = scmp.ne.s32.totalorder %s246, %s262
    %p264 = scmp.eq.s32.totalorder %s21, 0
    %p265 = por %p263, %p264
    %p266 = scmp.le.s32.totalorder 1, %s15
    %p267 = scmp.lt.s32.totalorder %s15, 3
    %p268 = pnand %p266, %p267
    %p269 = pneg %p268
    // Predicated region
    $region9: #{transformer_forward.7} parent=5 // pred_check
      _
    $region10: #{transformer_forward.7} parent=5 // pred_check_branch
      %271 = sbr.rel (%p268) target = $region12
    $region11: #{transformer_forward.7} parent=5 // pred_region
      %s272 = ssub.s32 %s15, 1
      // Predicated region
      $region13: #{transformer_forward.7} parent=11 // pred_check
        %p273 = pneg %p132
      $region14: #{transformer_forward.7} parent=11 // pred_check_branch
        %275 = sbr.rel (%p273) target = $region16
      $region15: #{transformer_forward.7} parent=11 // pred_region
        _
      $region16: #{transformer_forward.7} parent=11 // pred_fallthru
        _
      // Predicated region
      $region17: #{transformer_forward.7} parent=11 // pred_check
        %p276 = pneg %p153
      $region18: #{transformer_forward.7} parent=11 // pred_check_branch
        %278 = sbr.rel (%p276) target = $region20
      $region19: #{transformer_forward.7} parent=11 // pred_region
        _
      $region20: #{transformer_forward.7} parent=11 // pred_fallthru
        _
      // Predicated region
      $region21: #{transformer_forward.7} parent=11 // pred_check
        %p279 = pneg %p174
      $region22: #{transformer_forward.7} parent=11 // pred_check_branch
        %281 = sbr.rel (%p279) target = $region24
      $region23: #{transformer_forward.7} parent=11 // pred_region
        _
      $region24: #{transformer_forward.7} parent=11 // pred_fallthru
        _
    $region12: #{transformer_forward.7} parent=5 // pred_fallthru
      _
    %p282 = scmp.lt.s32.totalorder %s15, 2
    // Predicated region
    $region25: #{transformer_forward.7} parent=5 // pred_check
      %p283 = pneg %p282
    $region26: #{transformer_forward.7} parent=5 // pred_check_branch
      %285 = sbr.rel (%p283) target = $region28
    $region27: #{transformer_forward.7} parent=5 // pred_region
      // Predicated region
      $region29: #{transformer_forward.7} parent=27 // pred_check
        %p286 = pneg %p49
      $region30: #{transformer_forward.7} parent=27 // pred_check_branch
        %288 = sbr.rel (%p286) target = $region32
      $region31: #{transformer_forward.7} parent=27 // pred_region
        %p289 = scmp.lt.s32.totalorder %s22, 1
        %s290 = scalar_select %p289, %s22, 1
        %p291 = scmp.lt.s32.totalorder %s23, 0
        %s292 = scalar_select %p291, %s23, 0
        %s293 = sadd.s32 %s292, %s290
        %s294 = smul.addr %s293, 4
        %s295 = scalar_lea.vmem %s0, %s294
      $region32: #{transformer_forward.7} parent=27 // pred_fallthru
        _
      // Predicated region
      $region33: #{transformer_forward.7} parent=27 // pred_check
        %p296 = pneg %p77
      $region34: #{transformer_forward.7} parent=27 // pred_check_branch
        %298 = sbr.rel (%p296) target = $region36
      $region35: #{transformer_forward.7} parent=27 // pred_region
        %p299 = scmp.lt.s32.totalorder %s22, 1
        %s300 = scalar_select %p299, %s22, 1
        %p301 = scmp.lt.s32.totalorder %s23, 0
        %s302 = scalar_select %p301, %s23, 0
        %s303 = sadd.s32 %s302, %s300
        %s304 = smul.addr %s303, 8
        %s305 = scalar_lea.vmem %s1, %s304
      $region36: #{transformer_forward.7} parent=27 // pred_fallthru
        _
      // Predicated region
      $region37: #{transformer_forward.7} parent=27 // pred_check
        %p306 = pneg %p105
      $region38: #{transformer_forward.7} parent=27 // pred_check_branch
        %308 = sbr.rel (%p306) target = $region40
      $region39: #{transformer_forward.7} parent=27 // pred_region
        %p309 = scmp.lt.s32.totalorder %s22, 1
        %s310 = scalar_select %p309, %s22, 1
        %p311 = scmp.lt.s32.totalorder %s23, 0
        %s312 = scalar_select %p311, %s23, 0
        %s313 = sadd.s32 %s312, %s310
        %s314 = smul.addr %s313, 8
        %s315 = scalar_lea.vmem %s2, %s314
      $region40: #{transformer_forward.7} parent=27 // pred_fallthru
        _
    $region28: #{transformer_forward.7} parent=5 // pred_fallthru
      _
    %p316 = scmp.le.s32.totalorder 1, %s15
    %p317 = scmp.lt.s32.totalorder %s15, 3
    %p318 = pnand %p316, %p317
    %p319 = pneg %p318
    // Predicated region
    $region41: #{transformer_forward.7} parent=5 // pred_check
      _
    $region42: #{transformer_forward.7} parent=5 // pred_check_branch
      %321 = sbr.rel (%p318) target = $region44
    $region43: #{transformer_forward.7} parent=5 // pred_region
      %s322 = ssub.s32 %s15, 1
      %p323 = scmp.lt.s32.totalorder %s24, 1
      %s324 = scalar_select %p323, %s24, 1
      %p325 = scmp.lt.s32.totalorder %s25, 0
      %s326 = scalar_select %p325, %s25, 0
      %s327 = sadd.s32 %s326, %s324
      %s328 = smul.addr %s327, 4
      %s329 = scalar_lea.vmem %s0, %s328
      %p330 = pneg %p55
      %p331 = pneg %p52
      %p332 = scmp.lt.s32.totalorder %s24, 1
      %s333 = scalar_select %p332, %s24, 1
      %p334 = scmp.lt.s32.totalorder %s25, 0
      %s335 = scalar_select %p334, %s25, 0
      %s336 = sadd.s32 %s335, %s333
      %s337 = smul.addr %s336, 8
      %s338 = scalar_lea.vmem %s1, %s337
      %p339 = pneg %p83
      %p340 = pneg %p80
      %p341 = scmp.lt.s32.totalorder %s24, 1
      %s342 = scalar_select %p341, %s24, 1
      %p343 = scmp.lt.s32.totalorder %s25, 0
      %s344 = scalar_select %p343, %s25, 0
      %s345 = sadd.s32 %s344, %s342
      %s346 = smul.addr %s345, 8
      %s347 = scalar_lea.vmem %s2, %s346
      %p348 = pneg %p111
      %p349 = pneg %p108
      %p350 = pneg %p132
      %p351 = pneg %p129
      %p352 = pneg %p153
      %p353 = pneg %p150
      %p354 = pneg %p174
      %p355 = pneg %p171
      %p356 = pneg %p202
      %p357 = pneg %p199
      %p358 = scmp.lt.s32.totalorder %s24, 1
      %s359 = scalar_select %p358, %s24, 1
      %p360 = scmp.lt.s32.totalorder %s25, 0
      %s361 = scalar_select %p360, %s25, 0
      %s362 = sadd.s32 %s361, %s359
      %s363 = smul.addr %s362, 4
      %s364 = scalar_lea.vmem %s6, %s363
      %p365 = pneg %p230
      %p366 = pneg %p227
      %p367 = scmp.lt.s32.totalorder %s24, 1
      %s368 = scalar_select %p367, %s24, 1
      %p369 = scmp.lt.s32.totalorder %s25, 0
      %s370 = scalar_select %p369, %s25, 0
      %s371 = smul.addr %s368, 4
      %s372 = sadd.s32 %s370, %s371
      %s373 = smul.addr %s372, 4
      %s374 = scalar_lea.vmem %s7, %s373
      %p375 = pneg %p258
      %p376 = pneg %p255
      %p377 = scmp.lt.s32.totalorder %s24, 1
      %s378 = scalar_select %p377, %s24, 1
      %p379 = scmp.lt.s32.totalorder %s25, 0
      %s380 = scalar_select %p379, %s25, 0
      %s381 = sadd.s32 %s380, %s378
      %s382 = smul.addr %s381, 4
      %s383 = scalar_lea.vmem %s8, %s382
      %p384 = scmp.lt.s32.totalorder %s24, 1
      %s385 = scalar_select %p384, %s24, 1
      %p386 = scmp.lt.s32.totalorder %s25, 0
      %s387 = scalar_select %p386, %s25, 0
      %s388 = sadd.s32 %s387, %s385
      %s389 = smul.addr %s388, 4
      %s390 = scalar_lea.vmem %s0, %s389
      %p391 = scmp.lt.s32.totalorder %s24, 1
      %s392 = scalar_select %p391, %s24, 1
      %p393 = scmp.lt.s32.totalorder %s25, 0
      %s394 = scalar_select %p393, %s25, 0
      %s395 = sadd.s32 %s394, %s392
      %s396 = smul.addr %s395, 8
      %s397 = scalar_lea.vmem %s1, %s396
      %p398 = scmp.lt.s32.totalorder %s24, 1
      %s399 = scalar_select %p398, %s24, 1
      %p400 = scmp.lt.s32.totalorder %s25, 0
      %s401 = scalar_select %p400, %s25, 0
      %s402 = sadd.s32 %s401, %s399
      %s403 = smul.addr %s402, 8
      %s404 = scalar_lea.vmem %s2, %s403
      %p405 = scmp.lt.s32.totalorder %s24, 1
      %s406 = scalar_select %p405, %s24, 1
      %p407 = scmp.lt.s32.totalorder %s25, 0
      %s408 = scalar_select %p407, %s25, 0
      %s409 = sadd.s32 %s408, %s406
      %s410 = smul.addr %s409, 4
      %s411 = scalar_lea.vmem %s6, %s410
      %p412 = scmp.lt.s32.totalorder %s24, 1
      %s413 = scalar_select %p412, %s24, 1
      %p414 = scmp.lt.s32.totalorder %s25, 0
      %s415 = scalar_select %p414, %s25, 0
      %s416 = smul.addr %s413, 4
      %s417 = sadd.s32 %s415, %s416
      %s418 = smul.addr %s417, 4
      %s419 = scalar_lea.vmem %s7, %s418
      %p420 = scmp.lt.s32.totalorder %s24, 1
      %s421 = scalar_select %p420, %s24, 1
      %p422 = scmp.lt.s32.totalorder %s25, 0
      %s423 = scalar_select %p422, %s25, 0
      %s424 = sadd.s32 %s423, %s421
      %s425 = smul.addr %s424, 4
      %s426 = scalar_lea.vmem %s8, %s425
      %v428 = vld [vmem:[%s390] sm:$0xf]
      %v429 = vunpack.c.l.bf16 %v428
      %vm430 = vcmask 261120
      %v431 = vsel %vm430, %v429, 0.0
      %432 = vadd.xlane.f32.xlu0 %v431
      %v433 = vpop.xlane.xlu0 %432
      %v434 = vrcp.pop 32.0
      %v435 = vmul.f32 %v433, %v434
      %v436 = vsub.f32 %v429, %v435
      %v437 = vmul.f32 %v436, %v436
      %v438 = vsel %vm430, %v437, 0.0
      %439 = vadd.xlane.f32.xlu0 %v438
      %v440 = vpop.xlane.xlu0 %439
      %v441 = vmul.f32 %v440, %v434
      %v442 = vadd.f32 %v441, 1e-05
      %v443 = vrsqrt.pop %v442
      %v444 = vmul.f32 %v436, %v443
      %v445 = vld [vmem:[%s3] sm:$0x1]
      %v447 = vlaneseq
      %v448 = vshrl.u32 %v447, 7
      %v449 = vsub.s32 0, %v448
      %v450 = vrot.slane %v445, %v449
      %v452 = vmul.f32 %v444, %v450
      %v453 = vld [vmem:[%s4] sm:$0x1]
      %v455 = vlaneseq
      %v456 = vshrl.u32 %v455, 7
      %v457 = vsub.s32 0, %v456
      %v458 = vrot.slane %v453, %v457
      %v460 = vadd.f32 %v452, %v458
      %v461 = vpack.c.bf16 %v460, %v460
      %v462 = vld [vmem:[%s5] sm:$0xf]
      %v463 = vld [vmem:[%s5 + $0x4] sm:$0xf]
      %v464 = vld [vmem:[%s5 + $0x8] sm:$0xf]
      %v465 = vld [vmem:[%s5 + $0xc] sm:$0xf]
      %v470 = vunpack.c.l.b16 %v462
      %v471 = vunpack.c.l.b16 %v463
      %v472 = vunpack.c.l.b16 %v464
      %v473 = vunpack.c.l.b16 %v465
      %v474 = vpack.c.b16 %v471, %v470
      %v475 = vpack.c.b16 %v473, %v472
      %v479 = vsel %vm430, %v461, 0
      %481 = vmatprep.subr.bf16.mxu0 0
      %482 = vmatpush1.bf16.msra.mxu0 %v474
      %483 = vmatprep.subr.bf16.mxu0 0
      %484 = vmatpush1.bf16.msra.mxu0 %v475
      %485 = vmatprep.subr.bf16.mxu0 0
      %486 = vmatpush1.bf16.msra.mxu0 0
      %487 = vmatprep.subr.bf16.mxu0 0
      %488 = vmatpush1.bf16.msra.mxu0 0
      %489 = vmatprep.subr.bf16.mxu0 0
      %490 = vmatpush1.bf16.msra.mxu0 0
      %491 = vmatprep.subr.bf16.mxu0 0
      %492 = vmatpush1.bf16.msra.mxu0 0
      %493 = vmatprep.subr.bf16.mxu0 0
      %494 = vmatpush1.bf16.msra.mxu0 0
      %495 = vmatprep.subr.bf16.mxu0 0
      %496 = vmatpush1.bf16.msra.mxu0 0
      %497 = vmatprep.subr.bf16.mxu0 0
      %498 = vmatpush1.bf16.msra.mxu0 0
      %499 = vmatprep.subr.bf16.mxu0 0
      %500 = vmatpush1.bf16.msra.mxu0 0
      %501 = vmatprep.subr.bf16.mxu0 0
      %502 = vmatpush1.bf16.msra.mxu0 0
      %503 = vmatprep.subr.bf16.mxu0 0
      %504 = vmatpush1.bf16.msra.mxu0 0
      %505 = vmatprep.subr.bf16.mxu0 0
      %506 = vmatpush1.bf16.msra.mxu0 0
      %507 = vmatprep.subr.bf16.mxu0 0
      %508 = vmatpush1.bf16.msra.mxu0 0
      %509 = vmatprep.subr.bf16.mxu0 0
      %510 = vmatpush1.bf16.msra.mxu0 0
      %511 = vmatprep.subr.bf16.mxu0 0
      %512 = vmatpush1.bf16.msra.mxu0 0
      %513 = vmatprep.mubr.bf16.mxu0 0
      %514 = vmatmul.mubr.bf16.gmra.mrb[0].mxu0 %v479
      %v515 = vpop.f32.mrb[0].mxu0
      %v516 = vadd.f32 0.0, %v515
      %v517 = vpop.f32.mrb[0].mxu0
      %v518 = vpop.f32.mrb[0].mxu0
      %v519 = vpop.f32.mrb[0].mxu0
      %520 = vdwg.mxu0
      %v521 = vld [vmem:[%s397] sm:$0xff]
      %v522 = vld [vmem:[%s404] sm:$0xff]
      %v523 = vpack.c.bf16 %v516, %v516
      %v525 = vunpack.c.l.b16 %v523
      %v526 = vpack.c.b16 %v525, %v525
      %527 = vrot.lane.b32.xlu0 %v526, 64
      %v528 = vpop.permute.xlu0 %527
      %vm530 = vcmask 257024
      %531 = vst.msk [vmem:[%s426] sm:$0xf] %vm530, %v528
      %v532 = vmul.f32 %v516, %v521
      %v533 = vsub.f32 0.0, %v516
      %535 = vrot.lane.b32.xlu0 %v533, 124
      %v536 = vpop.permute.xlu0 %535
      %539 = vrot.lane.b32.xlu0 %v516, 4
      %v540 = vpop.permute.xlu0 %539
      %vm542 = vcmask 31744
      %v543 = vsel %vm542, %v536, %v540
      %v544 = vmul.f32 %v543, %v522
      %v545 = vadd.f32 %v532, %v544
      %v546 = vpack.c.bf16 %v545, %v545
      %vm547 = vcmask 60416
      %548 = vst.msk [vmem:[%s411] sm:$0xf] %vm547, %v546
      %550 = vrot.lane.b32.xlu0 %v521, 32
      %v551 = vpop.permute.xlu0 %550
      %v553 = vmul.f32 %v516, %v551
      %554 = vrot.lane.b32.xlu0 %v533, 92
      %v555 = vpop.permute.xlu0 %554
      %557 = vrot.lane.b32.xlu0 %v516, 100
      %v558 = vpop.permute.xlu0 %557
      %v560 = vsel %vm542, %v555, %v558
      %v561 = vmul.f32 %v560, %v522
      %563 = vrot.lane.b32.xlu0 %v561, 32
      %v564 = vpop.permute.xlu0 %563
      %v566 = vadd.f32 %v553, %v564
      %568 = vrot.lane.b32.xlu0 %v566, 96
      %v569 = vpop.permute.xlu0 %568
      %571 = vxpose.xlu0.b32.start [1/16] %v569, 128
      %572 = vxpose.xlu0.b32.cont [2/16] 0.0, 128
      %573 = vxpose.xlu0.b32.cont [3/16] 0.0, 128
      %574 = vxpose.xlu0.b32.cont [4/16] 0.0, 128
      %575 = vxpose.xlu0.b32.cont [5/16] 0.0, 128
      %576 = vxpose.xlu0.b32.cont [6/16] 0.0, 128
      %577 = vxpose.xlu0.b32.cont [7/16] 0.0, 128
      %578 = vxpose.xlu0.b32.cont [8/16] 0.0, 128
      %579 = vxpose.xlu0.b32.cont [9/16] 0.0, 128
      %580 = vxpose.xlu0.b32.cont [10/16] 0.0, 128
      %581 = vxpose.xlu0.b32.cont [11/16] 0.0, 128
      %582 = vxpose.xlu0.b32.cont [12/16] 0.0, 128
      %583 = vxpose.xlu0.b32.cont [13/16] 0.0, 128
      %584 = vxpose.xlu0.b32.cont [14/16] 0.0, 128
      %585 = vxpose.xlu0.b32.cont [15/16] 0.0, 128
      %586 = vxpose.xlu0.b32.end [16/16] 0.0, 128
      %v587 = vpop.trf.xlu0
      %v588 = vpop.trf.xlu0
      %v589 = vpop.trf.xlu0
      %v590 = vpop.trf.xlu0
      %v591 = vpop.trf.xlu0
      %v592 = vpop.trf.xlu0
      %v593 = vpop.trf.xlu0
      %v594 = vpop.trf.xlu0
      %v595 = vpop.trf.xlu0
      %v596 = vpop.trf.xlu0
      %v597 = vpop.trf.xlu0
      %v598 = vpop.trf.xlu0
      %v599 = vpop.trf.xlu0
      %v600 = vpop.trf.xlu0
      %v601 = vpop.trf.xlu0
      %v602 = vpop.trf.xlu0
      %v603 = vpack.c.bf16 %v587, %v587
      %604 = vst.msk [vmem:[%s419] sm:$0xf] %vm547, %v603
      %605 = vrot.lane.b32.xlu0 %v521, 8
      %v606 = vpop.permute.xlu0 %605
      %v608 = vmul.f32 %v516, %v606
      %609 = vrot.lane.b32.xlu0 %v533, 116
      %v610 = vpop.permute.xlu0 %609
      %612 = vrot.lane.b32.xlu0 %v516, 124
      %v613 = vpop.permute.xlu0 %612
      %v615 = vsel %vm542, %v610, %v613
      %v616 = vmul.f32 %v615, %v522
      %618 = vrot.lane.b32.xlu0 %v616, 8
      %v619 = vpop.permute.xlu0 %618
      %v621 = vadd.f32 %v608, %v619
      %v622 = vpack.c.bf16 %v621, %v621
      %vm623 = vcmask 126016
      %624 = vst.msk [vmem:[%s411] sm:$0xf] %vm623, %v622
      %625 = vrot.lane.b32.xlu0 %v521, 40
      %v626 = vpop.permute.xlu0 %625
      %v628 = vmul.f32 %v516, %v626
      %629 = vrot.lane.b32.xlu0 %v533, 84
      %v630 = vpop.permute.xlu0 %629
      %632 = vrot.lane.b32.xlu0 %v516, 92
      %v633 = vpop.permute.xlu0 %632
      %v635 = vsel %vm542, %v630, %v633
      %v636 = vmul.f32 %v635, %v522
      %638 = vrot.lane.b32.xlu0 %v636, 40
      %v639 = vpop.permute.xlu0 %638
      %v641 = vadd.f32 %v628, %v639
      %643 = vrot.lane.b32.xlu0 %v641, 88
      %v644 = vpop.permute.xlu0 %643
      %646 = vxpose.xlu0.b32.start [1/16] %v644, 128
      %647 = vxpose.xlu0.b32.cont [2/16] 0.0, 128
      %648 = vxpose.xlu0.b32.cont [3/16] 0.0, 128
      %649 = vxpose.xlu0.b32.cont [4/16] 0.0, 128
      %650 = vxpose.xlu0.b32.cont [5/16] 0.0, 128
      %651 = vxpose.xlu0.b32.cont [6/16] 0.0, 128
      %652 = vxpose.xlu0.b32.cont [7/16] 0.0, 128
      %653 = vxpose.xlu0.b32.cont [8/16] 0.0, 128
      %654 = vxpose.xlu0.b32.cont [9/16] 0.0, 128
      %655 = vxpose.xlu0.b32.cont [10/16] 0.0, 128
      %656 = vxpose.xlu0.b32.cont [11/16] 0.0, 128
      %657 = vxpose.xlu0.b32.cont [12/16] 0.0, 128
      %658 = vxpose.xlu0.b32.cont [13/16] 0.0, 128
      %659 = vxpose.xlu0.b32.cont [14/16] 0.0, 128
      %660 = vxpose.xlu0.b32.cont [15/16] 0.0, 128
      %661 = vxpose.xlu0.b32.end [16/16] 0.0, 128
      %v662 = vpop.trf.xlu0
      %v663 = vpop.trf.xlu0
      %v664 = vpop.trf.xlu0
      %v665 = vpop.trf.xlu0
      %v666 = vpop.trf.xlu0
      %v667 = vpop.trf.xlu0
      %v668 = vpop.trf.xlu0
      %v669 = vpop.trf.xlu0
      %v670 = vpop.trf.xlu0
      %v671 = vpop.trf.xlu0
      %v672 = vpop.trf.xlu0
      %v673 = vpop.trf.xlu0
      %v674 = vpop.trf.xlu0
      %v675 = vpop.trf.xlu0
      %v676 = vpop.trf.xlu0
      %v677 = vpop.trf.xlu0
      %v678 = vpack.c.bf16 %v662, %v662
      %679 = vst.msk [vmem:[%s419 + $0x4] sm:$0xf] %vm547, %v678
      %680 = vrot.lane.b32.xlu0 %v521, 16
      %v681 = vpop.permute.xlu0 %680
      %v683 = vmul.f32 %v516, %v681
      %684 = vrot.lane.b32.xlu0 %v533, 108
      %v685 = vpop.permute.xlu0 %684
      %687 = vrot.lane.b32.xlu0 %v516, 116
      %v688 = vpop.permute.xlu0 %687
      %v690 = vsel %vm542, %v685, %v688
      %v691 = vmul.f32 %v690, %v522
      %693 = vrot.lane.b32.xlu0 %v691, 16
      %v694 = vpop.permute.xlu0 %693
      %v696 = vadd.f32 %v683, %v694
      %v697 = vpack.c.bf16 %v696, %v696
      %vm698 = vcmask 191616
      %699 = vst.msk [vmem:[%s411] sm:$0xf] %vm698, %v697
      %700 = vrot.lane.b32.xlu0 %v521, 48
      %v701 = vpop.permute.xlu0 %700
      %v703 = vmul.f32 %v516, %v701
      %704 = vrot.lane.b32.xlu0 %v533, 76
      %v705 = vpop.permute.xlu0 %704
      %707 = vrot.lane.b32.xlu0 %v516, 84
      %v708 = vpop.permute.xlu0 %707
      %v710 = vsel %vm542, %v705, %v708
      %v711 = vmul.f32 %v710, %v522
      %713 = vrot.lane.b32.xlu0 %v711, 48
      %v714 = vpop.permute.xlu0 %713
      %v716 = vadd.f32 %v703, %v714
      %718 = vrot.lane.b32.xlu0 %v716, 80
      %v719 = vpop.permute.xlu0 %718
      %721 = vxpose.xlu0.b32.start [1/16] %v719, 128
      %722 = vxpose.xlu0.b32.cont [2/16] 0.0, 128
      %723 = vxpose.xlu0.b32.cont [3/16] 0.0, 128
      %724 = vxpose.xlu0.b32.cont [4/16] 0.0, 128
      %725 = vxpose.xlu0.b32.cont [5/16] 0.0, 128
      %726 = vxpose.xlu0.b32.cont [6/16] 0.0, 128
      %727 = vxpose.xlu0.b32.cont [7/16] 0.0, 128
      %728 = vxpose.xlu0.b32.cont [8/16] 0.0, 128
      %729 = vxpose.xlu0.b32.cont [9/16] 0.0, 128
      %730 = vxpose.xlu0.b32.cont [10/16] 0.0, 128
      %731 = vxpose.xlu0.b32.cont [11/16] 0.0, 128
      %732 = vxpose.xlu0.b32.cont [12/16] 0.0, 128
      %733 = vxpose.xlu0.b32.cont [13/16] 0.0, 128
      %734 = vxpose.xlu0.b32.cont [14/16] 0.0, 128
      %735 = vxpose.xlu0.b32.cont [15/16] 0.0, 128
      %736 = vxpose.xlu0.b32.end [16/16] 0.0, 128
      %v737 = vpop.trf.xlu0
      %v738 = vpop.trf.xlu0
      %v739 = vpop.trf.xlu0
      %v740 = vpop.trf.xlu0
      %v741 = vpop.trf.xlu0
      %v742 = vpop.trf.xlu0
      %v743 = vpop.trf.xlu0
      %v744 = vpop.trf.xlu0
      %v745 = vpop.trf.xlu0
      %v746 = vpop.trf.xlu0
      %v747 = vpop.trf.xlu0
      %v748 = vpop.trf.xlu0
      %v749 = vpop.trf.xlu0
      %v750 = vpop.trf.xlu0
      %v751 = vpop.trf.xlu0
      %v752 = vpop.trf.xlu0
      %v753 = vpack.c.bf16 %v737, %v737
      %754 = vst.msk [vmem:[%s419 + $0x8] sm:$0xf] %vm547, %v753
      %755 = vrot.lane.b32.xlu0 %v521, 24
      %v756 = vpop.permute.xlu0 %755
      %v758 = vmul.f32 %v516, %v756
      %759 = vrot.lane.b32.xlu0 %v533, 100
      %v760 = vpop.permute.xlu0 %759
      %762 = vrot.lane.b32.xlu0 %v516, 108
      %v763 = vpop.permute.xlu0 %762
      %v765 = vsel %vm542, %v760, %v763
      %v766 = vmul.f32 %v765, %v522
      %768 = vrot.lane.b32.xlu0 %v766, 24
      %v769 = vpop.permute.xlu0 %768
      %v771 = vadd.f32 %v758, %v769
      %v772 = vpack.c.bf16 %v771, %v771
      %vm773 = vcmask 257216
      %774 = vst.msk [vmem:[%s411] sm:$0xf] %vm773, %v772
      %775 = vrot.lane.b32.xlu0 %v521, 56
      %v776 = vpop.permute.xlu0 %775
      %v778 = vmul.f32 %v516, %v776
      %779 = vrot.lane.b32.xlu0 %v533, 68
      %v780 = vpop.permute.xlu0 %779
      %782 = vrot.lane.b32.xlu0 %v516, 76
      %v783 = vpop.permute.xlu0 %782
      %v785 = vsel %vm542, %v780, %v783
      %v786 = vmul.f32 %v785, %v522
      %788 = vrot.lane.b32.xlu0 %v786, 56
      %v789 = vpop.permute.xlu0 %788
      %v791 = vadd.f32 %v778, %v789
      %793 = vrot.lane.b32.xlu0 %v791, 72
      %v794 = vpop.permute.xlu0 %793
      %796 = vxpose.xlu0.b32.start [1/16] %v794, 128
      %797 = vxpose.xlu0.b32.cont [2/16] 0.0, 128
      %798 = vxpose.xlu0.b32.cont [3/16] 0.0, 128
      %799 = vxpose.xlu0.b32.cont [4/16] 0.0, 128
      %800 = vxpose.xlu0.b32.cont [5/16] 0.0, 128
      %801 = vxpose.xlu0.b32.cont [6/16] 0.0, 128
      %802 = vxpose.xlu0.b32.cont [7/16] 0.0, 128
      %803 = vxpose.xlu0.b32.cont [8/16] 0.0, 128
      %804 = vxpose.xlu0.b32.cont [9/16] 0.0, 128
      %805 = vxpose.xlu0.b32.cont [10/16] 0.0, 128
      %806 = vxpose.xlu0.b32.cont [11/16] 0.0, 128
      %807 = vxpose.xlu0.b32.cont [12/16] 0.0, 128
      %808 = vxpose.xlu0.b32.cont [13/16] 0.0, 128
      %809 = vxpose.xlu0.b32.cont [14/16] 0.0, 128
      %810 = vxpose.xlu0.b32.cont [15/16] 0.0, 128
      %811 = vxpose.xlu0.b32.end [16/16] 0.0, 128
      %v812 = vpop.trf.xlu0
      %v813 = vpop.trf.xlu0
      %v814 = vpop.trf.xlu0
      %v815 = vpop.trf.xlu0
      %v816 = vpop.trf.xlu0
      %v817 = vpop.trf.xlu0
      %v818 = vpop.trf.xlu0
      %v819 = vpop.trf.xlu0
      %v820 = vpop.trf.xlu0
      %v821 = vpop.trf.xlu0
      %v822 = vpop.trf.xlu0
      %v823 = vpop.trf.xlu0
      %v824 = vpop.trf.xlu0
      %v825 = vpop.trf.xlu0
      %v826 = vpop.trf.xlu0
      %v827 = vpop.trf.xlu0
      %v828 = vpack.c.bf16 %v812, %v812
      %829 = vst.msk [vmem:[%s419 + $0xc] sm:$0xf] %vm547, %v828
      %p830 = scmp.lt.s32.totalorder %s24, 1
      %s831 = scalar_select %p830, %s24, 1
      %p832 = scmp.lt.s32.totalorder %s25, 0
      %s833 = scalar_select %p832, %s25, 0
      %s834 = sadd.s32 %s833, %s831
      %s835 = smul.addr %s834, 4
      %s836 = scalar_lea.vmem %s6, %s835
      %p837 = scmp.lt.s32.totalorder %s24, 1
      %s838 = scalar_select %p837, %s24, 1
      %p839 = scmp.lt.s32.totalorder %s25, 0
      %s840 = scalar_select %p839, %s25, 0
      %s841 = smul.addr %s838, 4
      %s842 = sadd.s32 %s840, %s841
      %s843 = smul.addr %s842, 4
      %s844 = scalar_lea.vmem %s7, %s843
      %p845 = scmp.lt.s32.totalorder %s24, 1
      %s846 = scalar_select %p845, %s24, 1
      %p847 = scmp.lt.s32.totalorder %s25, 0
      %s848 = scalar_select %p847, %s25, 0
      %s849 = sadd.s32 %s848, %s846
      %s850 = smul.addr %s849, 4
      %s851 = scalar_lea.vmem %s8, %s850
      // Predicated region
      $region45: #{transformer_forward.7} parent=43 // pred_check
        %p852 = pneg %p199
      $region46: #{transformer_forward.7} parent=43 // pred_check_branch
        %854 = sbr.rel (%p852) target = $region48
      $region47: #{transformer_forward.7} parent=43 // pred_region
        _
      $region48: #{transformer_forward.7} parent=43 // pred_fallthru
        _
      // Predicated region
      $region49: #{transformer_forward.7} parent=43 // pred_check
        %p855 = pneg %p227
      $region50: #{transformer_forward.7} parent=43 // pred_check_branch
        %857 = sbr.rel (%p855) target = $region52
      $region51: #{transformer_forward.7} parent=43 // pred_region
        _
      $region52: #{transformer_forward.7} parent=43 // pred_fallthru
        _
      // Predicated region
      $region53: #{transformer_forward.7} parent=43 // pred_check
        %p858 = pneg %p255
      $region54: #{transformer_forward.7} parent=43 // pred_check_branch
        %860 = sbr.rel (%p858) target = $region56
      $region55: #{transformer_forward.7} parent=43 // pred_region
        _
      $region56: #{transformer_forward.7} parent=43 // pred_fallthru
        _
    $region44: #{transformer_forward.7} parent=5 // pred_fallthru
      _
    %p861 = scmp.le.s32.totalorder 2, %s15
    // Predicated region
    $region57: #{transformer_forward.7} parent=5 // pred_check
      %p862 = pneg %p861
    $region58: #{transformer_forward.7} parent=5 // pred_check_branch
      %864 = sbr.rel (%p862) target = $region60
    $region59: #{transformer_forward.7} parent=5 // pred_region
      %s865 = ssub.s32 %s15, 2
      // Predicated region
      $region61: #{transformer_forward.7} parent=59 // pred_check
        %p866 = pneg %p205
      $region62: #{transformer_forward.7} parent=59 // pred_check_branch
        %868 = sbr.rel (%p866) target = $region64
      $region63: #{transformer_forward.7} parent=59 // pred_region
        %p869 = scmp.lt.s32.totalorder %s26, 1
        %s870 = scalar_select %p869, %s26, 1
        %p871 = scmp.lt.s32.totalorder %s27, 0
        %s872 = scalar_select %p871, %s27, 0
        %s873 = sadd.s32 %s872, %s870
        %s874 = smul.addr %s873, 4
        %s875 = scalar_lea.vmem %s6, %s874
      $region64: #{transformer_forward.7} parent=59 // pred_fallthru
        _
      // Predicated region
      $region65: #{transformer_forward.7} parent=59 // pred_check
        %p876 = pneg %p233
      $region66: #{transformer_forward.7} parent=59 // pred_check_branch
        %878 = sbr.rel (%p876) target = $region68
      $region67: #{transformer_forward.7} parent=59 // pred_region
        %p879 = scmp.lt.s32.totalorder %s26, 1
        %s880 = scalar_select %p879, %s26, 1
        %p881 = scmp.lt.s32.totalorder %s27, 0
        %s882 = scalar_select %p881, %s27, 0
        %s883 = smul.addr %s880, 4
        %s884 = sadd.s32 %s882, %s883
        %s885 = smul.addr %s884, 4
        %s886 = scalar_lea.vmem %s7, %s885
      $region68: #{transformer_forward.7} parent=59 // pred_fallthru
        _
      // Predicated region
      $region69: #{transformer_forward.7} parent=59 // pred_check
        %p887 = pneg %p261
      $region70: #{transformer_forward.7} parent=59 // pred_check_branch
        %889 = sbr.rel (%p887) target = $region72
      $region71: #{transformer_forward.7} parent=59 // pred_region
        %p890 = scmp.lt.s32.totalorder %s26, 1
        %s891 = scalar_select %p890, %s26, 1
        %p892 = scmp.lt.s32.totalorder %s27, 0
        %s893 = scalar_select %p892, %s27, 0
        %s894 = sadd.s32 %s893, %s891
        %s895 = smul.addr %s894, 4
        %s896 = scalar_lea.vmem %s8, %s895
      $region72: #{transformer_forward.7} parent=59 // pred_fallthru
        _
    $region60: #{transformer_forward.7} parent=5 // pred_fallthru
      _
  $region6: #{transformer_forward.7} parent=0 // loop_footer
    %s19 = sadd.s32 1, %s15
  $region7: #{transformer_forward.7} parent=0 // loop_footer_branch
    %14 = sbr.rel target = $region3
  $region8: #{transformer_forward.7} parent=0 // loop_exit
    _

</llo_original>
